<compile_context>
chip_gen: v6e
topology: v6e:2x2x1
jax: 0.10.0
libtpu: 0.0.40
codegen_flags: <defaults>
</compile_context>

<pallas_src>
import jax
import jax.numpy as jnp
from jax import lax
from jax.experimental import pallas as pl
from jax.experimental.pallas import tpu as pltpu


# ---------------------------------------------------------------------------- kernel
def bottleneck3d_kernel(x_ref,
                        w1d_ref, b1_ref, bd_ref,
                        w2_ref, b2_ref,
                        w3_ref, b3_ref,
                        out_ref,
                        col_ref):
    TB, Hp2, W, threeP = col_ref.shape
    H = Hp2 - 2
    P = threeP // 3
    C4 = w3_ref.shape[1]
    rows = x_ref.shape[0]                 # = TB * H * W

    # ---- fused conv1 + downsample (both 1x1x1; BN scale pre-folded into weights).
    xm = x_ref[...]                                                    # bf16 (rows, Cin)
    h1d = jnp.dot(xm, w1d_ref[...],
                  preferred_element_type=jnp.float32)                  # (rows, C4 + P)
    # Residual carried in bf16 (halves its live/spill footprint across conv2/conv3).
    res = (h1d[:, :C4] + bd_ref[...]).astype(jnp.bfloat16)             # (rows, C4)
    h1 = jnp.maximum(h1d[:, C4:] + b1_ref[...], 0.0).astype(jnp.bfloat16)  # (rows, P)
    h1_4d = h1.reshape(TB, H, W, P)

    # ---- conv2 (1x3x3, spatial padding 1) via 3-tap im2col.
    # Bands of col_ref are the 3 kw shifts of padded h1 (built as values, one aligned
    # lane-dense store); the 3 kh shifts become accumulating dots over row-offset views.
    zcol = jnp.zeros((TB, H, 1, P), jnp.bfloat16)
    left = jnp.concatenate([zcol, h1_4d[:, :, :W - 1, :]], axis=2)     # h1pad[.., w]   (kw=0)
    right = jnp.concatenate([h1_4d[:, :, 1:, :], zcol], axis=2)        # h1pad[.., w+2] (kw=2)
    col_ref[:, 1:H + 1, :, :] = jnp.concatenate([left, h1_4d, right], axis=-1)
    # Zero only the top/bottom padding rows (re-written every grid step -> no reliance
    # on scratch persistence; megacore-safe).
    zrow = jnp.zeros((TB, 1, W, threeP), jnp.bfloat16)
    col_ref[:, 0:1, :, :] = zrow
    col_ref[:, H + 1:H + 2, :, :] = zrow

    h2 = None
    for kh in range(3):
        lhs = col_ref[:, kh:kh + H, :, :].reshape(rows, threeP)        # bf16 (rows, 3P)
        d = jnp.dot(lhs, w2_ref[kh], preferred_element_type=jnp.float32)
        h2 = d if h2 is None else h2 + d
    h2 = jnp.maximum(h2 + b2_ref[...], 0.0).astype(jnp.bfloat16)       # (rows, P)

    # ---- conv3 (1x1x1) + residual add + relu.
    h3 = jnp.dot(h2, w3_ref[...], preferred_element_type=jnp.float32) + b3_ref[...]
    out = jnp.maximum(h3 + res.astype(jnp.float32), 0.0)
    out_ref[...] = out.astype(out_ref.dtype)


# --------------------------------------------------------------------------- wrapper
def bottleneck3d_pallas(x_ncthw, kp, *, slab_batch, out_dtype=jnp.bfloat16):
    """x_ncthw: (N, Cin, T, H, W) float32.  Returns (N, C4, T, H, W) in `out_dtype`."""
    N, Cin, T, H, W = x_ncthw.shape
    P = kp["w2f"].shape[2]
    C4 = kp["w3"].shape[1]
    assert kp["w1d"].shape == (Cin, C4 + P)
    NT = N * T
    TB = slab_batch
    assert NT % TB == 0, "slab_batch must divide N*T"
    rows_blk = TB * H * W
    rows_total = NT * H * W
    assert rows_blk % 8 == 0

    # NCTHW -> lane-dense 2-D slab (N*T*H*W, Cin); bf16 operands for the MXU.
    x_k = jnp.transpose(x_ncthw, (0, 2, 3, 4, 1)).reshape(rows_total, Cin)
    x_k = x_k.astype(jnp.bfloat16)

    flops = 2 * rows_total * (Cin * (P + C4) + 9 * P * P + P * C4)
    bytes_accessed = int(
        x_k.size * x_k.dtype.itemsize                       # input stream
        + rows_total * C4 * jnp.dtype(out_dtype).itemsize   # output stream
        + rows_total * 3 * P * 2 + rows_total * 9 * P * 2   # im2col store + 3 reads (bf16)
        + sum(int(v.size) * v.dtype.itemsize for v in kp.values()))

    def wfull(name):
        shp = kp[name].shape
        nd = len(shp)
        return pl.BlockSpec(shp, lambda i, nd=nd: (0,) * nd)

    out = pl.pallas_call(
        bottleneck3d_kernel,
        out_shape=jax.ShapeDtypeStruct((rows_total, C4), out_dtype),
        grid_spec=pltpu.PrefetchScalarGridSpec(
            num_scalar_prefetch=0,
            grid=(NT // TB,),
            in_specs=[
                pl.BlockSpec((rows_blk, Cin), lambda i: (i, 0)),
                wfull("w1d"), wfull("b1"), wfull("bd"),
                wfull("w2f"), wfull("b2"),
                wfull("w3"), wfull("b3"),
            ],
            out_specs=pl.BlockSpec((rows_blk, C4), lambda i: (i, 0)),
            scratch_shapes=[
                # 3-tap im2col scratch (bf16): (TB, H+2, W, 3P)
                pltpu.VMEM((TB, H + 2, W, 3 * P), jnp.bfloat16),
            ],
        ),
        compiler_params=pltpu.CompilerParams(
            dimension_semantics=("parallel",),
            # Small here; raise toward 64-100 MiB when scaling TB/H/W on v5e/v6e,
            # keep the total block+scratch budget under ~48 MiB on v7x.
            vmem_limit_bytes=32 * 1024 * 1024),
        cost_estimate=pl.CostEstimate(
            flops=flops, transcendentals=0, bytes_accessed=bytes_accessed),
    )(x_k,
      kp["w1d"], kp["b1"], kp["bd"],
      kp["w2f"], kp["b2"],
      kp["w3"], kp["b3"])

    # (N*T*H*W, C4) -> NCTHW
    return jnp.transpose(out.reshape(N, T, H, W, C4), (0, 4, 1, 2, 3))


# ----------------------------------------------------------------- params / reference
def make_bn(key, C):
    ks = jax.random.split(key, 4)
    gamma = 1.0 + 0.1 * jax.random.normal(ks[0], (C,), jnp.float32)
    beta = 0.1 * jax.random.normal(ks[1], (C,), jnp.float32)
    mean = 0.1 * jax.random.normal(ks[2], (C,), jnp.float32)
    var = jnp.abs(jax.random.normal(ks[3], (C,), jnp.float32)) + 0.5
    return gamma, beta, mean, var


def make_kernel_params(w1, w2, w3, wd, bn1, bn2, bn3, bnd, eps=1e-5):
    """Fold BN scale into conv weights; channels-last matmul layouts; bf16 weights."""
    P = w1.shape[0]
    C4 = w3.shape[0]

    def fold(bn):
        gamma, beta, mean, var = bn
        s = gamma / jnp.sqrt(var + eps)
        return s, beta - mean * s

    s1, b1 = fold(bn1)
    s2, b2 = fold(bn2)
    s3, b3 = fold(bn3)
    sd, bd = fold(bnd)

    w1_2d = w1[:, :, 0, 0, 0]          # (P, Cin)
    w2_2d = w2[:, :, 0]                # (P, P, 3, 3)
    w3_2d = w3[:, :, 0, 0, 0]          # (C4, P)
    wd_2d = wd[:, :, 0, 0, 0]          # (C4, Cin)

    w1s = (w1_2d * s1[:, None]).T                    # (Cin, P)
    wds = (wd_2d * sd[:, None]).T                    # (Cin, C4)
    w1d = jnp.concatenate([wds, w1s], axis=1)        # (Cin, C4 + P); downsample first
    w2s = w2_2d * s2[:, None, None, None]            # (Cout, Cin, kh, kw)
    # (Cout,Cin,kh,kw) -> (kh, kw, Cin, Cout) -> (kh, 3P, P): per-kh band for the 3-tap dots.
    w2f = jnp.transpose(w2s, (2, 3, 1, 0)).reshape(3, 3 * P, P)
    w3s = (w3_2d * s3[:, None]).T                    # (P, C4)

    return dict(
        w1d=w1d.astype(jnp.bfloat16),
        w2f=w2f.astype(jnp.bfloat16),
        w3=w3s.astype(jnp.bfloat16),
        b1=b1.reshape(1, P).astype(jnp.float32),
        b2=b2.reshape(1, P).astype(jnp.float32),
        b3=b3.reshape(1, C4).astype(jnp.float32),
        bd=bd.reshape(1, C4).astype(jnp.float32),
    )


def ref_forward(x_ncthw, pt):
    """Pure-JAX f32 reference (time folded into batch since time_dim=1, stride=1)."""
    N, Cin, T, H, W = x_ncthw.shape
    x2 = jnp.transpose(x_ncthw, (0, 2, 1, 3, 4)).reshape(N * T, Cin, H, W)

    def conv2d(inp, w, padding):
        return lax.conv_general_dilated(
            inp, w, (1, 1), padding,
            dimension_numbers=("NCHW", "OIHW", "NCHW"),
            precision=lax.Precision.HIGHEST)

    def bn(inp, params, eps=1e-5):
        gamma, beta, mean, var = params
        s = gamma / jnp.sqrt(var + eps)
        b = beta - mean * s
        return inp * s[None, :, None, None] + b[None, :, None, None]

    h = jax.nn.relu(bn(conv2d(x2, pt["w1_2d"], "VALID"), pt["bn1"]))
    h = jax.nn.relu(bn(conv2d(h, pt["w2_2d"], ((1, 1), (1, 1))), pt["bn2"]))
    h = bn(conv2d(h, pt["w3_2d"], "VALID"), pt["bn3"])
    r = bn(conv2d(x2, pt["wd_2d"], "VALID"), pt["bnd"])
    out = jax.nn.relu(h + r)
    C4 = out.shape[1]
    return jnp.transpose(out.reshape(N, T, C4, H, W), (0, 2, 1, 3, 4))


if __name__ == "__main__":
    # Bottleneck with downsample: in=256, planes=128, out=4*128=512; N=2, T=4, H=W=8.
    # P (=128) and C4 (=512) are lane multiples -> aligned im2col bands and lane-dense
    # stores.  TB=2 slabs per step -> M=128 rows per matmul, grid=(4,) so each v7x core
    # still gets >= 2 pipelined steps.
    N, Cin, T, H, W = 2, 256, 4, 8, 8
    P, C4 = 128, 512
    TB = 2

    key = jax.random.PRNGKey(0)
    k = jax.random.split(key, 9)

    # PyTorch-layout inflated conv weights (Cout, Cin, kt=1, kh, kw), no conv bias.
    w1 = (1.0 / (Cin ** 0.5)) * jax.random.normal(k[0], (P, Cin, 1, 1, 1), jnp.float32)
    w2 = (1.0 / ((9 * P) ** 0.5)) * jax.random.normal(k[1], (P, P, 1, 3, 3), jnp.float32)
    w3 = (1.0 / (P ** 0.5)) * jax.random.normal(k[2], (C4, P, 1, 1, 1), jnp.float32)
    wd = (1.0 / (Cin ** 0.5)) * jax.random.normal(k[3], (C4, Cin, 1, 1, 1), jnp.float32)
    bn1, bn2, bn3, bnd = (make_bn(k[4], P), make_bn(k[5], P),
                          make_bn(k[6], C4), make_bn(k[7], C4))

    kp = make_kernel_params(w1, w2, w3, wd, bn1, bn2, bn3, bnd)
    pt = dict(w1_2d=w1[:, :, 0], w2_2d=w2[:, :, 0], w3_2d=w3[:, :, 0],
              wd_2d=wd[:, :, 0], bn1=bn1, bn2=bn2, bn3=bn3, bnd=bnd)

    x = jax.random.normal(k[8], (N, Cin, T, H, W), jnp.float32)

    out = jax.block_until_ready(bottleneck3d_pallas(x, kp, slab_batch=TB))
    ref = jax.block_until_ready(ref_forward(x, pt))

    assert out.shape == (N, C4, T, H, W), out.shape
    outf = out.astype(jnp.float32)
    # bf16 MXU operands + bf16 output vs. the HIGHEST-precision f32 reference.
    if not jnp.allclose(outf, ref, atol=1e-1, rtol=5e-2):
        raise AssertionError(
            f"mismatch: max abs err {float(jnp.max(jnp.abs(outf - ref)))}")
    print("KERNEL_OK")
</pallas_src>

<mosaic_0001>
module attributes {stable_mosaic.version = 11 : i64} {
  func.func @bottleneck3d_kernel(%arg0: i32, %arg1: memref<128x256xbf16, #tpu.memory_space<vmem>>, %arg2: memref<256x640xbf16, #tpu.memory_space<vmem>>, %arg3: memref<1x128xf32, #tpu.memory_space<vmem>>, %arg4: memref<1x512xf32, #tpu.memory_space<vmem>>, %arg5: memref<3x384x128xbf16, #tpu.memory_space<vmem>>, %arg6: memref<1x128xf32, #tpu.memory_space<vmem>>, %arg7: memref<128x512xbf16, #tpu.memory_space<vmem>>, %arg8: memref<1x512xf32, #tpu.memory_space<vmem>>, %arg9: memref<128x512xbf16, #tpu.memory_space<vmem>>, %arg10: memref<2x10x8x384xbf16, #tpu.memory_space<vmem>>) attributes {dimension_semantics = [#tpu.dimension_semantics<parallel>], iteration_bounds = array<i64: 4>, scalar_prefetch = 0 : i64, scratch_operands = 1 : i64, tpu.core_type = #tpu.core_type<tc>, window_params = [{transform_indices = @transform_0, window_bounds = array<i64: 128, 256>}, {pipeline_mode = #tpu.pipeline_mode<synchronous>, transform_indices = @transform_1, window_bounds = array<i64: 256, 640>}, {pipeline_mode = #tpu.pipeline_mode<synchronous>, transform_indices = @transform_2, window_bounds = array<i64: 1, 128>}, {pipeline_mode = #tpu.pipeline_mode<synchronous>, transform_indices = @transform_3, window_bounds = array<i64: 1, 512>}, {pipeline_mode = #tpu.pipeline_mode<synchronous>, transform_indices = @transform_4, window_bounds = array<i64: 3, 384, 128>}, {pipeline_mode = #tpu.pipeline_mode<synchronous>, transform_indices = @transform_5, window_bounds = array<i64: 1, 128>}, {pipeline_mode = #tpu.pipeline_mode<synchronous>, transform_indices = @transform_6, window_bounds = array<i64: 128, 512>}, {pipeline_mode = #tpu.pipeline_mode<synchronous>, transform_indices = @transform_7, window_bounds = array<i64: 1, 512>}, {transform_indices = @transform_8, window_bounds = array<i64: 128, 512>}]} {
    %c0 = arith.constant 0 : index
    %c0_0 = arith.constant 0 : index
    %0 = vector.load %arg1[%c0, %c0_0] : memref<128x256xbf16, #tpu.memory_space<vmem>>, vector<128x256xbf16>
    %c0_1 = arith.constant 0 : index
    %c0_2 = arith.constant 0 : index
    %1 = vector.load %arg2[%c0_1, %c0_2] : memref<256x640xbf16, #tpu.memory_space<vmem>>, vector<256x640xbf16>
    %cst = arith.constant dense<0.000000e+00> : vector<128x640xf32>
    %2 = tpu.matmul %0, %1, %cst {dimension_numbers = #tpu.dot_dimension_numbers<[1], [0], [0], [1], [0, 0, 1, 1], [], []>} : vector<128x256xbf16>, vector<256x640xbf16>, vector<128x640xf32> -> vector<128x640xf32>
    %3 = vector.extract_strided_slice %2 {offsets = [0, 0], sizes = [128, 512], strides = [1, 1]} : vector<128x640xf32> to vector<128x512xf32>
    %c0_3 = arith.constant 0 : index
    %c0_4 = arith.constant 0 : index
    %4 = vector.load %arg4[%c0_3, %c0_4] : memref<1x512xf32, #tpu.memory_space<vmem>>, vector<1x512xf32>
    %5 = vector.broadcast %4 : vector<1x512xf32> to vector<128x512xf32>
    %6 = arith.addf %3, %5 : vector<128x512xf32>
    %7 = arith.truncf %6 : vector<128x512xf32> to vector<128x512xbf16>
    %8 = vector.extract_strided_slice %2 {offsets = [0, 512], sizes = [128, 128], strides = [1, 1]} : vector<128x640xf32> to vector<128x128xf32>
    %c0_5 = arith.constant 0 : index
    %c0_6 = arith.constant 0 : index
    %9 = vector.load %arg3[%c0_5, %c0_6] : memref<1x128xf32, #tpu.memory_space<vmem>>, vector<1x128xf32>
    %10 = vector.broadcast %9 : vector<1x128xf32> to vector<128x128xf32>
    %11 = arith.addf %8, %10 : vector<128x128xf32>
    %cst_7 = arith.constant 0.000000e+00 : f32
    %12 = vector.broadcast %cst_7 : f32 to vector<128x128xf32>
    %13 = arith.maximumf %11, %12 : vector<128x128xf32>
    %14 = arith.truncf %13 : vector<128x128xf32> to vector<128x128xbf16>
    %15 = vector.shape_cast %14 : vector<128x128xbf16> to vector<2x8x8x128xbf16>
    %cst_8 = arith.constant 0.000000e+00 : bf16
    %16 = vector.broadcast %cst_8 : bf16 to vector<2x8x1x128xbf16>
    %17 = vector.extract_strided_slice %15 {offsets = [0, 0, 0, 0], sizes = [2, 8, 7, 128], strides = [1, 1, 1, 1]} : vector<2x8x8x128xbf16> to vector<2x8x7x128xbf16>
    %18 = tpu.concatenate %16, %17 in 2 : vector<2x8x1x128xbf16>, vector<2x8x7x128xbf16> -> vector<2x8x8x128xbf16>
    %19 = vector.extract_strided_slice %15 {offsets = [0, 0, 1, 0], sizes = [2, 8, 7, 128], strides = [1, 1, 1, 1]} : vector<2x8x8x128xbf16> to vector<2x8x7x128xbf16>
    %20 = tpu.concatenate %19, %16 in 2 : vector<2x8x7x128xbf16>, vector<2x8x1x128xbf16> -> vector<2x8x8x128xbf16>
    %21 = tpu.concatenate %18, %15, %20 in 3 : vector<2x8x8x128xbf16>, vector<2x8x8x128xbf16>, vector<2x8x8x128xbf16> -> vector<2x8x8x384xbf16>
    %c0_9 = arith.constant 0 : index
    %c1 = arith.constant 1 : index
    %c0_10 = arith.constant 0 : index
    %c0_11 = arith.constant 0 : index
    %22 = vector.load %arg10[%c0_9, %c1, %c0_10, %c0_11] : memref<2x10x8x384xbf16, #tpu.memory_space<vmem>>, vector<2x8x8x384xbf16>
    tpu.vector_store %arg10[%c0_9, %c1, %c0_10, %c0_11], %21 {strides = array<i32>} : memref<2x10x8x384xbf16, #tpu.memory_space<vmem>>, vector<2x8x8x384xbf16>,
    %cst_12 = arith.constant 0.000000e+00 : bf16
    %23 = vector.broadcast %cst_12 : bf16 to vector<2x1x8x384xbf16>
    %c0_13 = arith.constant 0 : index
    %c0_14 = arith.constant 0 : index
    %c0_15 = arith.constant 0 : index
    %c0_16 = arith.constant 0 : index
    %24 = vector.load %arg10[%c0_13, %c0_14, %c0_15, %c0_16] : memref<2x10x8x384xbf16, #tpu.memory_space<vmem>>, vector<2x1x8x384xbf16>
    tpu.vector_store %arg10[%c0_13, %c0_14, %c0_15, %c0_16], %23 {strides = array<i32>} : memref<2x10x8x384xbf16, #tpu.memory_space<vmem>>, vector<2x1x8x384xbf16>,
    %c0_17 = arith.constant 0 : index
    %c9 = arith.constant 9 : index
    %c0_18 = arith.constant 0 : index
    %c0_19 = arith.constant 0 : index
    %25 = vector.load %arg10[%c0_17, %c9, %c0_18, %c0_19] : memref<2x10x8x384xbf16, #tpu.memory_space<vmem>>, vector<2x1x8x384xbf16>
    tpu.vector_store %arg10[%c0_17, %c9, %c0_18, %c0_19], %23 {strides = array<i32>} : memref<2x10x8x384xbf16, #tpu.memory_space<vmem>>, vector<2x1x8x384xbf16>,
    %c0_20 = arith.constant 0 : index
    %c0_21 = arith.constant 0 : index
    %c0_22 = arith.constant 0 : index
    %c0_23 = arith.constant 0 : index
    %26 = vector.load %arg10[%c0_20, %c0_21, %c0_22, %c0_23] : memref<2x10x8x384xbf16, #tpu.memory_space<vmem>>, vector<2x8x8x384xbf16>
    %27 = vector.shape_cast %26 : vector<2x8x8x384xbf16> to vector<128x384xbf16>
    %c0_24 = arith.constant 0 : index
    %c0_25 = arith.constant 0 : index
    %c0_26 = arith.constant 0 : index
    %28 = vector.load %arg5[%c0_24, %c0_25, %c0_26] : memref<3x384x128xbf16, #tpu.memory_space<vmem>>, vector<1x384x128xbf16>
    %29 = vector.shape_cast %28 : vector<1x384x128xbf16> to vector<384x128xbf16>
    %cst_27 = arith.constant dense<0.000000e+00> : vector<128x128xf32>
    %30 = tpu.matmul %27, %29, %cst_27 {dimension_numbers = #tpu.dot_dimension_numbers<[1], [0], [0], [1], [0, 0, 1, 1], [], []>} : vector<128x384xbf16>, vector<384x128xbf16>, vector<128x128xf32> -> vector<128x128xf32>
    %c0_28 = arith.constant 0 : index
    %c1_29 = arith.constant 1 : index
    %c0_30 = arith.constant 0 : index
    %c0_31 = arith.constant 0 : index
    %31 = vector.load %arg10[%c0_28, %c1_29, %c0_30, %c0_31] : memref<2x10x8x384xbf16, #tpu.memory_space<vmem>>, vector<2x8x8x384xbf16>
    %32 = vector.shape_cast %31 : vector<2x8x8x384xbf16> to vector<128x384xbf16>
    %c1_32 = arith.constant 1 : index
    %c0_33 = arith.constant 0 : index
    %c0_34 = arith.constant 0 : index
    %33 = vector.load %arg5[%c1_32, %c0_33, %c0_34] : memref<3x384x128xbf16, #tpu.memory_space<vmem>>, vector<1x384x128xbf16>
    %34 = vector.shape_cast %33 : vector<1x384x128xbf16> to vector<384x128xbf16>
    %cst_35 = arith.constant dense<0.000000e+00> : vector<128x128xf32>
    %35 = tpu.matmul %32, %34, %cst_35 {dimension_numbers = #tpu.dot_dimension_numbers<[1], [0], [0], [1], [0, 0, 1, 1], [], []>} : vector<128x384xbf16>, vector<384x128xbf16>, vector<128x128xf32> -> vector<128x128xf32>
    %36 = arith.addf %30, %35 : vector<128x128xf32>
    %c0_36 = arith.constant 0 : index
    %c2 = arith.constant 2 : index
    %c0_37 = arith.constant 0 : index
    %c0_38 = arith.constant 0 : index
    %37 = vector.load %arg10[%c0_36, %c2, %c0_37, %c0_38] : memref<2x10x8x384xbf16, #tpu.memory_space<vmem>>, vector<2x8x8x384xbf16>
    %38 = vector.shape_cast %37 : vector<2x8x8x384xbf16> to vector<128x384xbf16>
    %c2_39 = arith.constant 2 : index
    %c0_40 = arith.constant 0 : index
    %c0_41 = arith.constant 0 : index
    %39 = vector.load %arg5[%c2_39, %c0_40, %c0_41] : memref<3x384x128xbf16, #tpu.memory_space<vmem>>, vector<1x384x128xbf16>
    %40 = vector.shape_cast %39 : vector<1x384x128xbf16> to vector<384x128xbf16>
    %cst_42 = arith.constant dense<0.000000e+00> : vector<128x128xf32>
    %41 = tpu.matmul %38, %40, %cst_42 {dimension_numbers = #tpu.dot_dimension_numbers<[1], [0], [0], [1], [0, 0, 1, 1], [], []>} : vector<128x384xbf16>, vector<384x128xbf16>, vector<128x128xf32> -> vector<128x128xf32>
    %42 = arith.addf %36, %41 : vector<128x128xf32>
    %c0_43 = arith.constant 0 : index
    %c0_44 = arith.constant 0 : index
    %43 = vector.load %arg6[%c0_43, %c0_44] : memref<1x128xf32, #tpu.memory_space<vmem>>, vector<1x128xf32>
    %44 = vector.broadcast %43 : vector<1x128xf32> to vector<128x128xf32>
    %45 = arith.addf %42, %44 : vector<128x128xf32>
    %cst_45 = arith.constant 0.000000e+00 : f32
    %46 = vector.broadcast %cst_45 : f32 to vector<128x128xf32>
    %47 = arith.maximumf %45, %46 : vector<128x128xf32>
    %48 = arith.truncf %47 : vector<128x128xf32> to vector<128x128xbf16>
    %c0_46 = arith.constant 0 : index
    %c0_47 = arith.constant 0 : index
    %49 = vector.load %arg7[%c0_46, %c0_47] : memref<128x512xbf16, #tpu.memory_space<vmem>>, vector<128x512xbf16>
    %cst_48 = arith.constant dense<0.000000e+00> : vector<128x512xf32>
    %50 = tpu.matmul %48, %49, %cst_48 {dimension_numbers = #tpu.dot_dimension_numbers<[1], [0], [0], [1], [0, 0, 1, 1], [], []>} : vector<128x128xbf16>, vector<128x512xbf16>, vector<128x512xf32> -> vector<128x512xf32>
    %c0_49 = arith.constant 0 : index
    %c0_50 = arith.constant 0 : index
    %51 = vector.load %arg8[%c0_49, %c0_50] : memref<1x512xf32, #tpu.memory_space<vmem>>, vector<1x512xf32>
    %52 = vector.broadcast %51 : vector<1x512xf32> to vector<128x512xf32>
    %53 = arith.addf %50, %52 : vector<128x512xf32>
    %54 = arith.extf %7 : vector<128x512xbf16> to vector<128x512xf32>
    %55 = arith.addf %53, %54 : vector<128x512xf32>
    %cst_51 = arith.constant 0.000000e+00 : f32
    %56 = vector.broadcast %cst_51 : f32 to vector<128x512xf32>
    %57 = arith.maximumf %55, %56 : vector<128x512xf32>
    %58 = arith.truncf %57 : vector<128x512xf32> to vector<128x512xbf16>
    %c0_52 = arith.constant 0 : index
    %c0_53 = arith.constant 0 : index
    %59 = vector.load %arg9[%c0_52, %c0_53] : memref<128x512xbf16, #tpu.memory_space<vmem>>, vector<128x512xbf16>
    tpu.vector_store %arg9[%c0_52, %c0_53], %58 {strides = array<i32>} : memref<128x512xbf16, #tpu.memory_space<vmem>>, vector<128x512xbf16>,
    return
  }
  func.func @transform_0(%arg0: i32) -> (i32, i32) {
    %c0_i32 = arith.constant 0 : i32
    %c0_i32_0 = arith.constant 0 : i32
    return %arg0, %c0_i32 : i32, i32
  }
  func.func @transform_1(%arg0: i32) -> (i32, i32) {
    %c0_i32 = arith.constant 0 : i32
    %c0_i32_0 = arith.constant 0 : i32
    %c0_i32_1 = arith.constant 0 : i32
    return %c0_i32, %c0_i32_0 : i32, i32
  }
  func.func @transform_2(%arg0: i32) -> (i32, i32) {
    %c0_i32 = arith.constant 0 : i32
    %c0_i32_0 = arith.constant 0 : i32
    %c0_i32_1 = arith.constant 0 : i32
    return %c0_i32, %c0_i32_0 : i32, i32
  }
  func.func @transform_3(%arg0: i32) -> (i32, i32) {
    %c0_i32 = arith.constant 0 : i32
    %c0_i32_0 = arith.constant 0 : i32
    %c0_i32_1 = arith.constant 0 : i32
    return %c0_i32, %c0_i32_0 : i32, i32
  }
  func.func @transform_4(%arg0: i32) -> (i32, i32, i32) {
    %c0_i32 = arith.constant 0 : i32
    %c0_i32_0 = arith.constant 0 : i32
    %c0_i32_1 = arith.constant 0 : i32
    %c0_i32_2 = arith.constant 0 : i32
    return %c0_i32, %c0_i32_0, %c0_i32_1 : i32, i32, i32
  }
  func.func @transform_5(%arg0: i32) -> (i32, i32) {
    %c0_i32 = arith.constant 0 : i32
    %c0_i32_0 = arith.constant 0 : i32
    %c0_i32_1 = arith.constant 0 : i32
    return %c0_i32, %c0_i32_0 : i32, i32
  }
  func.func @transform_6(%arg0: i32) -> (i32, i32) {
    %c0_i32 = arith.constant 0 : i32
    %c0_i32_0 = arith.constant 0 : i32
    %c0_i32_1 = arith.constant 0 : i32
    return %c0_i32, %c0_i32_0 : i32, i32
  }
  func.func @transform_7(%arg0: i32) -> (i32, i32) {
    %c0_i32 = arith.constant 0 : i32
    %c0_i32_0 = arith.constant 0 : i32
    %c0_i32_1 = arith.constant 0 : i32
    return %c0_i32, %c0_i32_0 : i32, i32
  }
  func.func @transform_8(%arg0: i32) -> (i32, i32) {
    %c0_i32 = arith.constant 0 : i32
    %c0_i32_0 = arith.constant 0 : i32
    return %arg0, %c0_i32 : i32, i32
  }
}

</mosaic_0001>

<llo_original>
// kernel: tpu_custom_call.1
$region0: #{tpu_custom_call.1}
  #allocation0 [shape = 'u32[]', space=smem, size = 0x4, offset = 0x4, fixed_abs, tag = 'smem constant byte address 0x4 - core index']
  #allocation1 [shape = 'u32[144,128]{1,0:T(1,128)}', space=vmem, size = 0x12000, scoped, tag = 'internal scratch']
  #allocation2 [shape = 'bf16[2,10,8,384]{3,2,1,0:T(8,128)(2,1)}', space=vmem, size = 0x1e000, scoped, tag = 'scratch operand']
  %s0 = inlined_call_operand.hbm [shape: bf16[512,256], index: 0, kind: input, shape index: {}]
  %s1 = inlined_call_operand.hbm [shape: bf16[256,640], index: 1, kind: input, shape index: {}]
  %s2 = inlined_call_operand.vmem [shape: f32[1,128], index: 2, kind: input, shape index: {}]
  %s3 = inlined_call_operand.vmem [shape: f32[1,512], index: 3, kind: input, shape index: {}]
  %s4 = inlined_call_operand.hbm [shape: bf16[3,384,128], index: 4, kind: input, shape index: {}]
  %s5 = inlined_call_operand.hbm [shape: f32[1,128], index: 5, kind: input, shape index: {}]
  %s6 = inlined_call_operand.hbm [shape: bf16[128,512], index: 6, kind: input, shape index: {}]
  %s7 = inlined_call_operand.vmem [shape: f32[1,512], index: 7, kind: input, shape index: {}]
  %s8 = inlined_call_operand.hbm [shape: bf16[512,512], index: 8, kind: output, shape index: {}]
  %s9 = sld [smem:[#allocation0]]
  $region85: #{tpu_custom_call.1} parent=0
    _
  %s11 = ssub.s32 1, %s9
  %s12 = scalar_select 0, %s11, %s9
  $region1: #{tpu_custom_call.1} parent=0
    #allocation3 [shape = 'u8[131072]{0}', space=vmem, size = 0x20000, scoped, tag = 'input window, operand 0']
    #allocation4 [shape = 's32[2]{0}', space=sflag, size = 0x8, scoped, tag = 'scoped memory for tpu_custom_call.1']
    #allocation5 [shape = 's32[2]{0}', space=sflag, size = 0x8, scoped, tag = 'scoped memory for tpu_custom_call.1']
    #allocation6 [shape = 'u8[327680]{0}', space=vmem, size = 0x50000, scoped, tag = 'input window, operand 1, single buffered']
    #allocation7 [shape = 's32[1]{0}', space=sflag, size = 0x4, scoped, tag = 'scoped memory for tpu_custom_call.1']
    #allocation8 [shape = 'u8[294912]{0}', space=vmem, size = 0x48000, scoped, tag = 'input window, operand 4, single buffered']
    #allocation9 [shape = 'u8[512]{0}', space=vmem, size = 0x400, scoped, tag = 'input window, operand 5, single buffered']
    #allocation10 [shape = 's32[1]{0}', space=sflag, size = 0x4, scoped, tag = 'scoped memory for tpu_custom_call.1']
    #allocation11 [shape = 'u8[131072]{0}', space=vmem, size = 0x20000, scoped, tag = 'input window, operand 6, single buffered']
    #allocation12 [shape = 'u8[262144]{0}', space=vmem, size = 0x40000, scoped, tag = 'output window, operand 0']
    %13 = vsyncpa [#allocation4], 0
    %s14 = scalar_lea.sflag [#allocation4], 1
    %15 = vsyncpa %s14, 0
    %16 = vsyncpa [#allocation7], 0
    %17 = vsyncpa [#allocation10], 0
    %18 = vsyncpa [#allocation5], 0
    %s19 = scalar_lea.sflag [#allocation5], 1
    %20 = vsyncpa %s19, 0
    loop: start=0, step=1, limit=6
    $region2: #{tpu_custom_call.1} parent=1 // loop_pre_header
      _
    $region3: #{tpu_custom_call.1} parent=1 // loop_header
      %s22 = sphi 0, %s26
      %p23 = scmp.ge.s32.totalorder %s22, 6
      %s32 = sphi 0, %s34
      %s35 = sphi 0, %s32
      %s36 = sphi 0, %s35
      %s52 = sphi 0, %s36
      %s56 = sphi 0, %s56
      %s58 = sphi 0, %s56
      %s59 = sphi 0, %s58
      %s73 = sphi 0, %s59
      %s77 = sphi 0, %s77
      %s79 = sphi 0, %s77
      %s80 = sphi 0, %s79
      %s94 = sphi 0, %s80
      %s98 = sphi 0, %s98
      %s100 = sphi 0, %s98
      %s101 = sphi 0, %s100
      %s115 = sphi 0, %s101
      %s119 = sphi 0, %s119
      %s121 = sphi 0, %s119
      %s122 = sphi 0, %s121
      %s136 = sphi 0, %s122
      %s140 = sphi 0, %s140
      %s142 = sphi 0, %s140
      %s143 = sphi 0, %s142
      %s157 = sphi 0, %s143
      %s161 = sphi 0, %s161
      %s163 = sphi 0, %s161
      %s164 = sphi 0, %s163
      %s178 = sphi 0, %s164
      %s182 = sphi 0, %s182
      %s184 = sphi 0, %s182
      %s185 = sphi 0, %s184
      %s199 = sphi 0, %s185
      %s205 = sphi 0, %s207
      %s208 = sphi 0, %s205
      %s209 = sphi 0, %s208
      %s225 = sphi 0, %s209
    $region4: #{tpu_custom_call.1} parent=1 // loop_header_branch
      %25 = sbr.rel (%p23) target = $region8
    $region5: #{tpu_custom_call.1} parent=1 // loop_body
      %s27 = ssub.s32 %s22, 1
      %s28 = ssub.s32 %s22, 2
      %s29 = sadd.s32 %s22, 1
      %s30 = ssub.s32 %s22, %s29
      %p31 = scmp.eq.s32.totalorder %s30, 0
      %s33 = sadd.s32 %s32, 1
      %s34 = scalar_select %p31, %s32, %s33
      %p37 = pneg %p31
      %p38 = scmp.eq.s32.totalorder %s22, 3
      %p39 = por %p37, %p38
      %p40 = scmp.ne.s32.totalorder %s32, %s35
      %p41 = scmp.eq.s32.totalorder %s22, 0
      %p42 = por %p40, %p41
      %p43 = scmp.ne.s32.totalorder %s32, %s35
      %p44 = scmp.eq.s32.totalorder %s27, 3
      %p45 = por %p43, %p44
      %p46 = scmp.ne.s32.totalorder %s35, %s36
      %p47 = scmp.eq.s32.totalorder %s27, 0
      %p48 = por %p46, %p47
      %p49 = scmp.ne.s32.totalorder %s35, %s36
      %p50 = scmp.eq.s32.totalorder %s28, 3
      %p51 = por %p49, %p50
      %p53 = scmp.ne.s32.totalorder %s36, %s52
      %p54 = scmp.eq.s32.totalorder %s28, 0
      %p55 = por %p53, %p54
      %s57 = sadd.s32 %s56, 1
      %p60 = scmp.eq.s32.totalorder %s22, 3
      %p61 = scmp.ne.s32.totalorder %s56, %s58
      %p62 = scmp.eq.s32.totalorder %s22, 0
      %p63 = por %p61, %p62
      %p64 = scmp.ne.s32.totalorder %s56, %s58
      %p65 = scmp.eq.s32.totalorder %s27, 3
      %p66 = por %p64, %p65
      %p67 = scmp.ne.s32.totalorder %s58, %s59
      %p68 = scmp.eq.s32.totalorder %s27, 0
      %p69 = por %p67, %p68
      %p70 = scmp.ne.s32.totalorder %s58, %s59
      %p71 = scmp.eq.s32.totalorder %s28, 3
      %p72 = por %p70, %p71
      %p74 = scmp.ne.s32.totalorder %s59, %s73
      %p75 = scmp.eq.s32.totalorder %s28, 0
      %p76 = por %p74, %p75
      %s78 = sadd.s32 %s77, 1
      %p81 = scmp.eq.s32.totalorder %s22, 3
      %p82 = scmp.ne.s32.totalorder %s77, %s79
      %p83 = scmp.eq.s32.totalorder %s22, 0
      %p84 = por %p82, %p83
      %p85 = scmp.ne.s32.totalorder %s77, %s79
      %p86 = scmp.eq.s32.totalorder %s27, 3
      %p87 = por %p85, %p86
      %p88 = scmp.ne.s32.totalorder %s79, %s80
      %p89 = scmp.eq.s32.totalorder %s27, 0
      %p90 = por %p88, %p89
      %p91 = scmp.ne.s32.totalorder %s79, %s80
      %p92 = scmp.eq.s32.totalorder %s28, 3
      %p93 = por %p91, %p92
      %p95 = scmp.ne.s32.totalorder %s80, %s94
      %p96 = scmp.eq.s32.totalorder %s28, 0
      %p97 = por %p95, %p96
      %s99 = sadd.s32 %s98, 1
      %p102 = scmp.eq.s32.totalorder %s22, 3
      %p103 = scmp.ne.s32.totalorder %s98, %s100
      %p104 = scmp.eq.s32.totalorder %s22, 0
      %p105 = por %p103, %p104
      %p106 = scmp.ne.s32.totalorder %s98, %s100
      %p107 = scmp.eq.s32.totalorder %s27, 3
      %p108 = por %p106, %p107
      %p109 = scmp.ne.s32.totalorder %s100, %s101
      %p110 = scmp.eq.s32.totalorder %s27, 0
      %p111 = por %p109, %p110
      %p112 = scmp.ne.s32.totalorder %s100, %s101
      %p113 = scmp.eq.s32.totalorder %s28, 3
      %p114 = por %p112, %p113
      %p116 = scmp.ne.s32.totalorder %s101, %s115
      %p117 = scmp.eq.s32.totalorder %s28, 0
      %p118 = por %p116, %p117
      %s120 = sadd.s32 %s119, 1
      %p123 = scmp.eq.s32.totalorder %s22, 3
      %p124 = scmp.ne.s32.totalorder %s119, %s121
      %p125 = scmp.eq.s32.totalorder %s22, 0
      %p126 = por %p124, %p125
      %p127 = scmp.ne.s32.totalorder %s119, %s121
      %p128 = scmp.eq.s32.totalorder %s27, 3
      %p129 = por %p127, %p128
      %p130 = scmp.ne.s32.totalorder %s121, %s122
      %p131 = scmp.eq.s32.totalorder %s27, 0
      %p132 = por %p130, %p131
      %p133 = scmp.ne.s32.totalorder %s121, %s122
      %p134 = scmp.eq.s32.totalorder %s28, 3
      %p135 = por %p133, %p134
      %p137 = scmp.ne.s32.totalorder %s122, %s136
      %p138 = scmp.eq.s32.totalorder %s28, 0
      %p139 = por %p137, %p138
      %s141 = sadd.s32 %s140, 1
      %p144 = scmp.eq.s32.totalorder %s22, 3
      %p145 = scmp.ne.s32.totalorder %s140, %s142
      %p146 = scmp.eq.s32.totalorder %s22, 0
      %p147 = por %p145, %p146
      %p148 = scmp.ne.s32.totalorder %s140, %s142
      %p149 = scmp.eq.s32.totalorder %s27, 3
      %p150 = por %p148, %p149
      %p151 = scmp.ne.s32.totalorder %s142, %s143
      %p152 = scmp.eq.s32.totalorder %s27, 0
      %p153 = por %p151, %p152
      %p154 = scmp.ne.s32.totalorder %s142, %s143
      %p155 = scmp.eq.s32.totalorder %s28, 3
      %p156 = por %p154, %p155
      %p158 = scmp.ne.s32.totalorder %s143, %s157
      %p159 = scmp.eq.s32.totalorder %s28, 0
      %p160 = por %p158, %p159
      %s162 = sadd.s32 %s161, 1
      %p165 = scmp.eq.s32.totalorder %s22, 3
      %p166 = scmp.ne.s32.totalorder %s161, %s163
      %p167 = scmp.eq.s32.totalorder %s22, 0
      %p168 = por %p166, %p167
      %p169 = scmp.ne.s32.totalorder %s161, %s163
      %p170 = scmp.eq.s32.totalorder %s27, 3
      %p171 = por %p169, %p170
      %p172 = scmp.ne.s32.totalorder %s163, %s164
      %p173 = scmp.eq.s32.totalorder %s27, 0
      %p174 = por %p172, %p173
      %p175 = scmp.ne.s32.totalorder %s163, %s164
      %p176 = scmp.eq.s32.totalorder %s28, 3
      %p177 = por %p175, %p176
      %p179 = scmp.ne.s32.totalorder %s164, %s178
      %p180 = scmp.eq.s32.totalorder %s28, 0
      %p181 = por %p179, %p180
      %s183 = sadd.s32 %s182, 1
      %p186 = scmp.eq.s32.totalorder %s22, 3
      %p187 = scmp.ne.s32.totalorder %s182, %s184
      %p188 = scmp.eq.s32.totalorder %s22, 0
      %p189 = por %p187, %p188
      %p190 = scmp.ne.s32.totalorder %s182, %s184
      %p191 = scmp.eq.s32.totalorder %s27, 3
      %p192 = por %p190, %p191
      %p193 = scmp.ne.s32.totalorder %s184, %s185
      %p194 = scmp.eq.s32.totalorder %s27, 0
      %p195 = por %p193, %p194
      %p196 = scmp.ne.s32.totalorder %s184, %s185
      %p197 = scmp.eq.s32.totalorder %s28, 3
      %p198 = por %p196, %p197
      %p200 = scmp.ne.s32.totalorder %s185, %s199
      %p201 = scmp.eq.s32.totalorder %s28, 0
      %p202 = por %p200, %p201
      %s203 = ssub.s32 %s22, %s29
      %p204 = scmp.eq.s32.totalorder %s203, 0
      %s206 = sadd.s32 %s205, 1
      %s207 = scalar_select %p204, %s205, %s206
      %p210 = pneg %p204
      %p211 = scmp.eq.s32.totalorder %s22, 3
      %p212 = por %p210, %p211
      %p213 = scmp.ne.s32.totalorder %s205, %s208
      %p214 = scmp.eq.s32.totalorder %s22, 0
      %p215 = por %p213, %p214
      %p216 = scmp.ne.s32.totalorder %s205, %s208
      %p217 = scmp.eq.s32.totalorder %s27, 3
      %p218 = por %p216, %p217
      %p219 = scmp.ne.s32.totalorder %s208, %s209
      %p220 = scmp.eq.s32.totalorder %s27, 0
      %p221 = por %p219, %p220
      %p222 = scmp.ne.s32.totalorder %s208, %s209
      %p223 = scmp.eq.s32.totalorder %s28, 3
      %p224 = por %p222, %p223
      %p226 = scmp.ne.s32.totalorder %s209, %s225
      %p227 = scmp.eq.s32.totalorder %s28, 0
      %p228 = por %p226, %p227
      %p229 = scmp.le.s32.totalorder 1, %s22
      %p230 = scmp.lt.s32.totalorder %s22, 5
      %p231 = pnand %p229, %p230
      %p232 = pneg %p231
      // Predicated region
      $region9: #{tpu_custom_call.1} parent=5 // pred_check
        _
      $region10: #{tpu_custom_call.1} parent=5 // pred_check_branch
        %234 = sbr.rel (%p231) target = $region12
      $region11: #{tpu_custom_call.1} parent=5 // pred_region
        %s235 = ssub.s32 %s22, 1
        // Predicated region
        $region13: #{tpu_custom_call.1} parent=11 // pred_check
          %p236 = pneg %p69
        $region14: #{tpu_custom_call.1} parent=11 // pred_check_branch
          %238 = sbr.rel (%p236) target = $region16
        $region15: #{tpu_custom_call.1} parent=11 // pred_region
          %s240 = ssub.s32 10240, 10240
          %241 = vsyncadd [#allocation7], %s240
          %s242 = sshll.u32 [#allocation6], 4
          %s243 = int_to_ptr.vmem [resolvable:$true] %s242
          %248 = dma.hbm_to_vmem [thread:$0]  %s1, 10240, %s243, [#allocation7], 320, 320, 20
        $region16: #{tpu_custom_call.1} parent=11 // pred_fallthru
          _
        // Predicated region
        $region17: #{tpu_custom_call.1} parent=11 // pred_check
          %p249 = pneg %p90
        $region18: #{tpu_custom_call.1} parent=11 // pred_check_branch
          %251 = sbr.rel (%p249) target = $region20
        $region19: #{tpu_custom_call.1} parent=11 // pred_region
          _
        $region20: #{tpu_custom_call.1} parent=11 // pred_fallthru
          _
        // Predicated region
        $region21: #{tpu_custom_call.1} parent=11 // pred_check
          %p252 = pneg %p111
        $region22: #{tpu_custom_call.1} parent=11 // pred_check_branch
          %254 = sbr.rel (%p252) target = $region24
        $region23: #{tpu_custom_call.1} parent=11 // pred_region
          _
        $region24: #{tpu_custom_call.1} parent=11 // pred_fallthru
          _
        // Predicated region
        $region25: #{tpu_custom_call.1} parent=11 // pred_check
          %p255 = pneg %p132
        $region26: #{tpu_custom_call.1} parent=11 // pred_check_branch
          %257 = sbr.rel (%p255) target = $region28
        $region27: #{tpu_custom_call.1} parent=11 // pred_region
          %s259 = ssub.s32 9216, 9216
          %260 = vsyncadd [#allocation7], %s259
          %s261 = sshll.u32 [#allocation8], 4
          %s262 = int_to_ptr.vmem [resolvable:$true] %s261
          %267 = dma.hbm_to_vmem [thread:$0]  %s4, 9216, %s262, [#allocation7], 64, 64, 4
        $region28: #{tpu_custom_call.1} parent=11 // pred_fallthru
          _
        // Predicated region
        $region29: #{tpu_custom_call.1} parent=11 // pred_check
          %p268 = pneg %p153
        $region30: #{tpu_custom_call.1} parent=11 // pred_check_branch
          %270 = sbr.rel (%p268) target = $region32
        $region31: #{tpu_custom_call.1} parent=11 // pred_region
          %s272 = ssub.s32 16, 16
          %273 = vsyncadd [#allocation10], %s272
          %s275 = sshll.u32 [#allocation9], 4
          %s276 = int_to_ptr.vmem [resolvable:$true] %s275
          %278 = dma.hbm_to_vmem [thread:$0]  %s5, 16, %s276, [#allocation10]
        $region32: #{tpu_custom_call.1} parent=11 // pred_fallthru
          _
        // Predicated region
        $region33: #{tpu_custom_call.1} parent=11 // pred_check
          %p279 = pneg %p174
        $region34: #{tpu_custom_call.1} parent=11 // pred_check_branch
          %281 = sbr.rel (%p279) target = $region36
        $region35: #{tpu_custom_call.1} parent=11 // pred_region
          %s283 = ssub.s32 4096, 4096
          %284 = vsyncadd [#allocation10], %s283
          %s285 = sshll.u32 [#allocation11], 4
          %s286 = int_to_ptr.vmem [resolvable:$true] %s285
          %291 = dma.hbm_to_vmem [thread:$0]  %s6, 4096, %s286, [#allocation10], 256, 256, 16
        $region36: #{tpu_custom_call.1} parent=11 // pred_fallthru
          _
        // Predicated region
        $region37: #{tpu_custom_call.1} parent=11 // pred_check
          %p292 = pneg %p195
        $region38: #{tpu_custom_call.1} parent=11 // pred_check_branch
          %294 = sbr.rel (%p292) target = $region40
        $region39: #{tpu_custom_call.1} parent=11 // pred_region
          _
        $region40: #{tpu_custom_call.1} parent=11 // pred_fallthru
          _
      $region12: #{tpu_custom_call.1} parent=5 // pred_fallthru
        _
      %p295 = scmp.lt.s32.totalorder %s22, 4
      // Predicated region
      $region41: #{tpu_custom_call.1} parent=5 // pred_check
        %p296 = pneg %p295
      $region42: #{tpu_custom_call.1} parent=5 // pred_check_branch
        %298 = sbr.rel (%p296) target = $region44
      $region43: #{tpu_custom_call.1} parent=5 // pred_region
        // Predicated region
        $region45: #{tpu_custom_call.1} parent=43 // pred_check
          %p299 = pneg %p42
        $region46: #{tpu_custom_call.1} parent=43 // pred_check_branch
          %301 = sbr.rel (%p299) target = $region48
        $region47: #{tpu_custom_call.1} parent=43 // pred_region
          %s302 = sand.u32 %s32, 1
          %s303 = scalar_lea.sflag [#allocation4], %s302
          %s304 = sand.u32 %s32, 1
          %s305 = smul.addr %s304, 128
          %s306 = scalar_lea.vmem [#allocation3], %s305
          %s307 = smul.u32 16, %s22
          %s309 = ssub.s32 2048, 2048
          %310 = vsyncadd %s303, %s309
          %s311 = smul.addr %s307, 2
          %s312 = smul.addr %s311, 64
          %s313 = scalar_lea.hbm %s0, %s312
          %s314 = sshll.u32 %s306, 4
          %s315 = int_to_ptr.vmem [resolvable:$true] %s314
          %320 = dma.hbm_to_vmem [thread:$0]  %s313, 2048, %s315, %s303, 128, 128, 8
        $region48: #{tpu_custom_call.1} parent=43 // pred_fallthru
          _
      $region44: #{tpu_custom_call.1} parent=5 // pred_fallthru
        _
      %p321 = scmp.le.s32.totalorder 1, %s22
      %p322 = scmp.lt.s32.totalorder %s22, 5
      %p323 = pnand %p321, %p322
      %p324 = pneg %p323
      // Predicated region
      $region49: #{tpu_custom_call.1} parent=5 // pred_check
        _
      $region50: #{tpu_custom_call.1} parent=5 // pred_check_branch
        %326 = sbr.rel (%p323) target = $region52
      $region51: #{tpu_custom_call.1} parent=5 // pred_region
        %s327 = ssub.s32 %s22, 1
        %s328 = sand.u32 %s35, 1
        %s329 = scalar_lea.sflag [#allocation4], %s328
        %s330 = sand.u32 %s35, 1
        %s331 = smul.addr %s330, 128
        %s332 = scalar_lea.vmem [#allocation3], %s331
        // Predicated region
        $region53: #{tpu_custom_call.1} parent=51 // pred_check
          %p333 = pneg %p48
        $region54: #{tpu_custom_call.1} parent=51 // pred_check_branch
          %335 = sbr.rel (%p333) target = $region56
        $region55: #{tpu_custom_call.1} parent=51 // pred_region
          %336 = dma.done %s329, 2048
        $region56: #{tpu_custom_call.1} parent=51 // pred_fallthru
          _
        // Predicated region
        $region57: #{tpu_custom_call.1} parent=51 // pred_check
          %p337 = pneg %p69
        $region58: #{tpu_custom_call.1} parent=51 // pred_check_branch
          %339 = sbr.rel (%p337) target = $region60
        $region59: #{tpu_custom_call.1} parent=51 // pred_region
          %340 = dma.done [#allocation7], 10240
        $region60: #{tpu_custom_call.1} parent=51 // pred_fallthru
          _
        // Predicated region
        $region61: #{tpu_custom_call.1} parent=51 // pred_check
          %p341 = pneg %p132
        $region62: #{tpu_custom_call.1} parent=51 // pred_check_branch
          %343 = sbr.rel (%p341) target = $region64
        $region63: #{tpu_custom_call.1} parent=51 // pred_region
          %344 = dma.done [#allocation7], 9216
        $region64: #{tpu_custom_call.1} parent=51 // pred_fallthru
          _
        // Predicated region
        $region65: #{tpu_custom_call.1} parent=51 // pred_check
          %p345 = pneg %p153
        $region66: #{tpu_custom_call.1} parent=51 // pred_check_branch
          %347 = sbr.rel (%p345) target = $region68
        $region67: #{tpu_custom_call.1} parent=51 // pred_region
          %348 = dma.done [#allocation10], 16
        $region68: #{tpu_custom_call.1} parent=51 // pred_fallthru
          _
        // Predicated region
        $region69: #{tpu_custom_call.1} parent=51 // pred_check
          %p349 = pneg %p174
        $region70: #{tpu_custom_call.1} parent=51 // pred_check_branch
          %351 = sbr.rel (%p349) target = $region72
        $region71: #{tpu_custom_call.1} parent=51 // pred_region
          %352 = dma.done [#allocation10], 4096
        $region72: #{tpu_custom_call.1} parent=51 // pred_fallthru
          _
        %s353 = sand.u32 %s35, 1
        %s354 = scalar_lea.sflag [#allocation4], %s353
        %s355 = sand.u32 %s35, 1
        %s356 = smul.addr %s355, 128
        %s357 = scalar_lea.vmem [#allocation3], %s356
        %p358 = pneg %p48
        %p359 = pneg %p45
        %p360 = pneg %p69
        %p361 = pneg %p66
        %p362 = pneg %p90
        %p363 = pneg %p87
        %p364 = pneg %p111
        %p365 = pneg %p108
        %p366 = pneg %p132
        %p367 = pneg %p129
        %p368 = pneg %p153
        %p369 = pneg %p150
        %p370 = pneg %p174
        %p371 = pneg %p171
        %p372 = pneg %p195
        %p373 = pneg %p192
        %p374 = pneg %p221
        %p375 = pneg %p218
        %s376 = sand.u32 %s208, 1
        %s377 = scalar_lea.sflag [#allocation5], %s376
        %s378 = sand.u32 %s208, 1
        %s379 = smul.addr %s378, 256
        %s380 = scalar_lea.vmem [#allocation12], %s379
        %s381 = smul.u32 16, %s27
        %s382 = smul.u32 16, %s27
        %v384 = vld [vmem:[%s332] sm:$0xff]
        %v385 = vld [vmem:[%s332 + $0x8] sm:$0xff]
        %v386 = vld [vmem:[%s332 + $0x10] sm:$0xff]
        %v387 = vld [vmem:[%s332 + $0x18] sm:$0xff]
        %v388 = vld [vmem:[%s332 + $0x20] sm:$0xff]
        %v389 = vld [vmem:[%s332 + $0x28] sm:$0xff]
        %v390 = vld [vmem:[%s332 + $0x30] sm:$0xff]
        %v391 = vld [vmem:[%s332 + $0x38] sm:$0xff]
        %v392 = vld [vmem:[%s332 + $0x40] sm:$0xff]
        %v393 = vld [vmem:[%s332 + $0x48] sm:$0xff]
        %v394 = vld [vmem:[%s332 + $0x50] sm:$0xff]
        %v395 = vld [vmem:[%s332 + $0x58] sm:$0xff]
        %v396 = vld [vmem:[%s332 + $0x60] sm:$0xff]
        %v397 = vld [vmem:[%s332 + $0x68] sm:$0xff]
        %v398 = vld [vmem:[%s332 + $0x70] sm:$0xff]
        %v399 = vld [vmem:[%s332 + $0x78] sm:$0xff]
        %v400 = vld [vmem:[#allocation6] sm:$0xff]
        %v401 = vld [vmem:[#allocation6 + $0x8] sm:$0xff]
        %v402 = vld [vmem:[#allocation6 + $0x10] sm:$0xf]
        %v403 = vld [vmem:[#allocation6 + $0x14] sm:$0xff]
        %v404 = vld [vmem:[#allocation6 + $0x1c] sm:$0xff]
        %v405 = vld [vmem:[#allocation6 + $0x24] sm:$0xf]
        %v406 = vld [vmem:[#allocation6 + $0x28] sm:$0xff]
        %v407 = vld [vmem:[#allocation6 + $0x30] sm:$0xff]
        %v408 = vld [vmem:[#allocation6 + $0x38] sm:$0xf]
        %v409 = vld [vmem:[#allocation6 + $0x3c] sm:$0xff]
        %v410 = vld [vmem:[#allocation6 + $0x44] sm:$0xff]
        %v411 = vld [vmem:[#allocation6 + $0x4c] sm:$0xf]
        %v412 = vld [vmem:[#allocation6 + $0x50] sm:$0xff]
        %v413 = vld [vmem:[#allocation6 + $0x58] sm:$0xff]
        %v414 = vld [vmem:[#allocation6 + $0x60] sm:$0xf]
        %v415 = vld [vmem:[#allocation6 + $0x64] sm:$0xff]
        %v416 = vld [vmem:[#allocation6 + $0x6c] sm:$0xff]
        %v417 = vld [vmem:[#allocation6 + $0x74] sm:$0xf]
        %v418 = vld [vmem:[#allocation6 + $0x78] sm:$0xff]
        %v419 = vld [vmem:[#allocation6 + $0x80] sm:$0xff]
        %v420 = vld [vmem:[#allocation6 + $0x88] sm:$0xf]
        %v421 = vld [vmem:[#allocation6 + $0x8c] sm:$0xff]
        %v422 = vld [vmem:[#allocation6 + $0x94] sm:$0xff]
        %v423 = vld [vmem:[#allocation6 + $0x9c] sm:$0xf]
        %v424 = vld [vmem:[#allocation6 + $0xa0] sm:$0xff]
        %v425 = vld [vmem:[#allocation6 + $0xa8] sm:$0xff]
        %v426 = vld [vmem:[#allocation6 + $0xb0] sm:$0xf]
        %v427 = vld [vmem:[#allocation6 + $0xb4] sm:$0xff]
        %v428 = vld [vmem:[#allocation6 + $0xbc] sm:$0xff]
        %v429 = vld [vmem:[#allocation6 + $0xc4] sm:$0xf]
        %v430 = vld [vmem:[#allocation6 + $0xc8] sm:$0xff]
        %v431 = vld [vmem:[#allocation6 + $0xd0] sm:$0xff]
        %v432 = vld [vmem:[#allocation6 + $0xd8] sm:$0xf]
        %v433 = vld [vmem:[#allocation6 + $0xdc] sm:$0xff]
        %v434 = vld [vmem:[#allocation6 + $0xe4] sm:$0xff]
        %v435 = vld [vmem:[#allocation6 + $0xec] sm:$0xf]
        %v436 = vld [vmem:[#allocation6 + $0xf0] sm:$0xff]
        %v437 = vld [vmem:[#allocation6 + $0xf8] sm:$0xff]
        %v438 = vld [vmem:[#allocation6 + $0x100] sm:$0xf]
        %v439 = vld [vmem:[#allocation6 + $0x104] sm:$0xff]
        %v440 = vld [vmem:[#allocation6 + $0x10c] sm:$0xff]
        %v441 = vld [vmem:[#allocation6 + $0x114] sm:$0xf]
        %v442 = vld [vmem:[#allocation6 + $0x118] sm:$0xff]
        %v443 = vld [vmem:[#allocation6 + $0x120] sm:$0xff]
        %v444 = vld [vmem:[#allocation6 + $0x128] sm:$0xf]
        %v445 = vld [vmem:[#allocation6 + $0x12c] sm:$0xff]
        %v446 = vld [vmem:[#allocation6 + $0x134] sm:$0xff]
        %v447 = vld [vmem:[#allocation6 + $0x13c] sm:$0xf]
        %v448 = vld [vmem:[#allocation6 + $0x140] sm:$0xff]
        %v449 = vld [vmem:[#allocation6 + $0x148] sm:$0xff]
        %v450 = vld [vmem:[#allocation6 + $0x150] sm:$0xf]
        %v451 = vld [vmem:[#allocation6 + $0x154] sm:$0xff]
        %v452 = vld [vmem:[#allocation6 + $0x15c] sm:$0xff]
        %v453 = vld [vmem:[#allocation6 + $0x164] sm:$0xf]
        %v454 = vld [vmem:[#allocation6 + $0x168] sm:$0xff]
        %v455 = vld [vmem:[#allocation6 + $0x170] sm:$0xff]
        %v456 = vld [vmem:[#allocation6 + $0x178] sm:$0xf]
        %v457 = vld [vmem:[#allocation6 + $0x17c] sm:$0xff]
        %v458 = vld [vmem:[#allocation6 + $0x184] sm:$0xff]
        %v459 = vld [vmem:[#allocation6 + $0x18c] sm:$0xf]
        %v460 = vld [vmem:[#allocation6 + $0x190] sm:$0xff]
        %v461 = vld [vmem:[#allocation6 + $0x198] sm:$0xff]
        %v462 = vld [vmem:[#allocation6 + $0x1a0] sm:$0xf]
        %v463 = vld [vmem:[#allocation6 + $0x1a4] sm:$0xff]
        %v464 = vld [vmem:[#allocation6 + $0x1ac] sm:$0xff]
        %v465 = vld [vmem:[#allocation6 + $0x1b4] sm:$0xf]
        %v466 = vld [vmem:[#allocation6 + $0x1b8] sm:$0xff]
        %v467 = vld [vmem:[#allocation6 + $0x1c0] sm:$0xff]
        %v468 = vld [vmem:[#allocation6 + $0x1c8] sm:$0xf]
        %v469 = vld [vmem:[#allocation6 + $0x1cc] sm:$0xff]
        %v470 = vld [vmem:[#allocation6 + $0x1d4] sm:$0xff]
        %v471 = vld [vmem:[#allocation6 + $0x1dc] sm:$0xf]
        %v472 = vld [vmem:[#allocation6 + $0x1e0] sm:$0xff]
        %v473 = vld [vmem:[#allocation6 + $0x1e8] sm:$0xff]
        %v474 = vld [vmem:[#allocation6 + $0x1f0] sm:$0xf]
        %v475 = vld [vmem:[#allocation6 + $0x1f4] sm:$0xff]
        %v476 = vld [vmem:[#allocation6 + $0x1fc] sm:$0xff]
        %v477 = vld [vmem:[#allocation6 + $0x204] sm:$0xf]
        %v478 = vld [vmem:[#allocation6 + $0x208] sm:$0xff]
        %v479 = vld [vmem:[#allocation6 + $0x210] sm:$0xff]
        %v480 = vld [vmem:[#allocation6 + $0x218] sm:$0xf]
        %v481 = vld [vmem:[#allocation6 + $0x21c] sm:$0xff]
        %v482 = vld [vmem:[#allocation6 + $0x224] sm:$0xff]
        %v483 = vld [vmem:[#allocation6 + $0x22c] sm:$0xf]
        %v484 = vld [vmem:[#allocation6 + $0x230] sm:$0xff]
        %v485 = vld [vmem:[#allocation6 + $0x238] sm:$0xff]
        %v486 = vld [vmem:[#allocation6 + $0x240] sm:$0xf]
        %v487 = vld [vmem:[#allocation6 + $0x244] sm:$0xff]
        %v488 = vld [vmem:[#allocation6 + $0x24c] sm:$0xff]
        %v489 = vld [vmem:[#allocation6 + $0x254] sm:$0xf]
        %v490 = vld [vmem:[#allocation6 + $0x258] sm:$0xff]
        %v491 = vld [vmem:[#allocation6 + $0x260] sm:$0xff]
        %v492 = vld [vmem:[#allocation6 + $0x268] sm:$0xf]
        %v493 = vld [vmem:[#allocation6 + $0x26c] sm:$0xff]
        %v494 = vld [vmem:[#allocation6 + $0x274] sm:$0xff]
        %v495 = vld [vmem:[#allocation6 + $0x27c] sm:$0xf]
        %v512 = vunpack.c.l.b16 %v384
        %v513 = vunpack.c.h.b16 %v384
        %v514 = vunpack.c.l.b16 %v385
        %v515 = vunpack.c.h.b16 %v385
        %v516 = vunpack.c.l.b16 %v386
        %v517 = vunpack.c.h.b16 %v386
        %v518 = vunpack.c.l.b16 %v387
        %v519 = vunpack.c.h.b16 %v387
        %v520 = vunpack.c.l.b16 %v388
        %v521 = vunpack.c.h.b16 %v388
        %v522 = vunpack.c.l.b16 %v389
        %v523 = vunpack.c.h.b16 %v389
        %v524 = vunpack.c.l.b16 %v390
        %v525 = vunpack.c.h.b16 %v390
        %v526 = vunpack.c.l.b16 %v391
        %v527 = vunpack.c.h.b16 %v391
        %v528 = vunpack.c.l.b16 %v392
        %v529 = vunpack.c.h.b16 %v392
        %v530 = vunpack.c.l.b16 %v393
        %v531 = vunpack.c.h.b16 %v393
        %v532 = vunpack.c.l.b16 %v394
        %v533 = vunpack.c.h.b16 %v394
        %v534 = vunpack.c.l.b16 %v395
        %v535 = vunpack.c.h.b16 %v395
        %v536 = vunpack.c.l.b16 %v396
        %v537 = vunpack.c.h.b16 %v396
        %v538 = vunpack.c.l.b16 %v397
        %v539 = vunpack.c.h.b16 %v397
        %v540 = vunpack.c.l.b16 %v398
        %v541 = vunpack.c.h.b16 %v398
        %v542 = vunpack.c.l.b16 %v399
        %v543 = vunpack.c.h.b16 %v399
        %v544 = vpack.c.b16 %v514, %v512
        %v545 = vpack.c.b16 %v515, %v513
        %v546 = vpack.c.b16 %v518, %v516
        %v547 = vpack.c.b16 %v519, %v517
        %v548 = vpack.c.b16 %v522, %v520
        %v549 = vpack.c.b16 %v523, %v521
        %v550 = vpack.c.b16 %v526, %v524
        %v551 = vpack.c.b16 %v527, %v525
        %v552 = vpack.c.b16 %v530, %v528
        %v553 = vpack.c.b16 %v531, %v529
        %v554 = vpack.c.b16 %v534, %v532
        %v555 = vpack.c.b16 %v535, %v533
        %v556 = vpack.c.b16 %v538, %v536
        %v557 = vpack.c.b16 %v539, %v537
        %v558 = vpack.c.b16 %v542, %v540
        %v559 = vpack.c.b16 %v543, %v541
        %v672 = vunpack.c.l.b16 %v400
        %v673 = vunpack.c.h.b16 %v400
        %v674 = vunpack.c.l.b16 %v401
        %v675 = vunpack.c.h.b16 %v401
        %v676 = vunpack.c.l.b16 %v402
        %v677 = vunpack.c.l.b16 %v403
        %v678 = vunpack.c.h.b16 %v403
        %v679 = vunpack.c.l.b16 %v404
        %v680 = vunpack.c.h.b16 %v404
        %v681 = vunpack.c.l.b16 %v405
        %v682 = vunpack.c.l.b16 %v406
        %v683 = vunpack.c.h.b16 %v406
        %v684 = vunpack.c.l.b16 %v407
        %v685 = vunpack.c.h.b16 %v407
        %v686 = vunpack.c.l.b16 %v408
        %v687 = vunpack.c.l.b16 %v409
        %v688 = vunpack.c.h.b16 %v409
        %v689 = vunpack.c.l.b16 %v410
        %v690 = vunpack.c.h.b16 %v410
        %v691 = vunpack.c.l.b16 %v411
        %v692 = vunpack.c.l.b16 %v412
        %v693 = vunpack.c.h.b16 %v412
        %v694 = vunpack.c.l.b16 %v413
        %v695 = vunpack.c.h.b16 %v413
        %v696 = vunpack.c.l.b16 %v414
        %v697 = vunpack.c.l.b16 %v415
        %v698 = vunpack.c.h.b16 %v415
        %v699 = vunpack.c.l.b16 %v416
        %v700 = vunpack.c.h.b16 %v416
        %v701 = vunpack.c.l.b16 %v417
        %v702 = vunpack.c.l.b16 %v418
        %v703 = vunpack.c.h.b16 %v418
        %v704 = vunpack.c.l.b16 %v419
        %v705 = vunpack.c.h.b16 %v419
        %v706 = vunpack.c.l.b16 %v420
        %v707 = vunpack.c.l.b16 %v421
        %v708 = vunpack.c.h.b16 %v421
        %v709 = vunpack.c.l.b16 %v422
        %v710 = vunpack.c.h.b16 %v422
        %v711 = vunpack.c.l.b16 %v423
        %v712 = vunpack.c.l.b16 %v424
        %v713 = vunpack.c.h.b16 %v424
        %v714 = vunpack.c.l.b16 %v425
        %v715 = vunpack.c.h.b16 %v425
        %v716 = vunpack.c.l.b16 %v426
        %v717 = vunpack.c.l.b16 %v427
        %v718 = vunpack.c.h.b16 %v427
        %v719 = vunpack.c.l.b16 %v428
        %v720 = vunpack.c.h.b16 %v428
        %v721 = vunpack.c.l.b16 %v429
        %v722 = vunpack.c.l.b16 %v430
        %v723 = vunpack.c.h.b16 %v430
        %v724 = vunpack.c.l.b16 %v431
        %v725 = vunpack.c.h.b16 %v431
        %v726 = vunpack.c.l.b16 %v432
        %v727 = vunpack.c.l.b16 %v433
        %v728 = vunpack.c.h.b16 %v433
        %v729 = vunpack.c.l.b16 %v434
        %v730 = vunpack.c.h.b16 %v434
        %v731 = vunpack.c.l.b16 %v435
        %v732 = vunpack.c.l.b16 %v436
        %v733 = vunpack.c.h.b16 %v436
        %v734 = vunpack.c.l.b16 %v437
        %v735 = vunpack.c.h.b16 %v437
        %v736 = vunpack.c.l.b16 %v438
        %v737 = vunpack.c.l.b16 %v439
        %v738 = vunpack.c.h.b16 %v439
        %v739 = vunpack.c.l.b16 %v440
        %v740 = vunpack.c.h.b16 %v440
        %v741 = vunpack.c.l.b16 %v441
        %v742 = vunpack.c.l.b16 %v442
        %v743 = vunpack.c.h.b16 %v442
        %v744 = vunpack.c.l.b16 %v443
        %v745 = vunpack.c.h.b16 %v443
        %v746 = vunpack.c.l.b16 %v444
        %v747 = vunpack.c.l.b16 %v445
        %v748 = vunpack.c.h.b16 %v445
        %v749 = vunpack.c.l.b16 %v446
        %v750 = vunpack.c.h.b16 %v446
        %v751 = vunpack.c.l.b16 %v447
        %v752 = vunpack.c.l.b16 %v448
        %v753 = vunpack.c.h.b16 %v448
        %v754 = vunpack.c.l.b16 %v449
        %v755 = vunpack.c.h.b16 %v449
        %v756 = vunpack.c.l.b16 %v450
        %v757 = vunpack.c.l.b16 %v451
        %v758 = vunpack.c.h.b16 %v451
        %v759 = vunpack.c.l.b16 %v452
        %v760 = vunpack.c.h.b16 %v452
        %v761 = vunpack.c.l.b16 %v453
        %v762 = vunpack.c.l.b16 %v454
        %v763 = vunpack.c.h.b16 %v454
        %v764 = vunpack.c.l.b16 %v455
        %v765 = vunpack.c.h.b16 %v455
        %v766 = vunpack.c.l.b16 %v456
        %v767 = vunpack.c.l.b16 %v457
        %v768 = vunpack.c.h.b16 %v457
        %v769 = vunpack.c.l.b16 %v458
        %v770 = vunpack.c.h.b16 %v458
        %v771 = vunpack.c.l.b16 %v459
        %v772 = vunpack.c.l.b16 %v460
        %v773 = vunpack.c.h.b16 %v460
        %v774 = vunpack.c.l.b16 %v461
        %v775 = vunpack.c.h.b16 %v461
        %v776 = vunpack.c.l.b16 %v462
        %v777 = vunpack.c.l.b16 %v463
        %v778 = vunpack.c.h.b16 %v463
        %v779 = vunpack.c.l.b16 %v464
        %v780 = vunpack.c.h.b16 %v464
        %v781 = vunpack.c.l.b16 %v465
        %v782 = vunpack.c.l.b16 %v466
        %v783 = vunpack.c.h.b16 %v466
        %v784 = vunpack.c.l.b16 %v467
        %v785 = vunpack.c.h.b16 %v467
        %v786 = vunpack.c.l.b16 %v468
        %v787 = vunpack.c.l.b16 %v469
        %v788 = vunpack.c.h.b16 %v469
        %v789 = vunpack.c.l.b16 %v470
        %v790 = vunpack.c.h.b16 %v470
        %v791 = vunpack.c.l.b16 %v471
        %v792 = vunpack.c.l.b16 %v472
        %v793 = vunpack.c.h.b16 %v472
        %v794 = vunpack.c.l.b16 %v473
        %v795 = vunpack.c.h.b16 %v473
        %v796 = vunpack.c.l.b16 %v474
        %v797 = vunpack.c.l.b16 %v475
        %v798 = vunpack.c.h.b16 %v475
        %v799 = vunpack.c.l.b16 %v476
        %v800 = vunpack.c.h.b16 %v476
        %v801 = vunpack.c.l.b16 %v477
        %v802 = vunpack.c.l.b16 %v478
        %v803 = vunpack.c.h.b16 %v478
        %v804 = vunpack.c.l.b16 %v479
        %v805 = vunpack.c.h.b16 %v479
        %v806 = vunpack.c.l.b16 %v480
        %v807 = vunpack.c.l.b16 %v481
        %v808 = vunpack.c.h.b16 %v481
        %v809 = vunpack.c.l.b16 %v482
        %v810 = vunpack.c.h.b16 %v482
        %v811 = vunpack.c.l.b16 %v483
        %v812 = vunpack.c.l.b16 %v484
        %v813 = vunpack.c.h.b16 %v484
        %v814 = vunpack.c.l.b16 %v485
        %v815 = vunpack.c.h.b16 %v485
        %v816 = vunpack.c.l.b16 %v486
        %v817 = vunpack.c.l.b16 %v487
        %v818 = vunpack.c.h.b16 %v487
        %v819 = vunpack.c.l.b16 %v488
        %v820 = vunpack.c.h.b16 %v488
        %v821 = vunpack.c.l.b16 %v489
        %v822 = vunpack.c.l.b16 %v490
        %v823 = vunpack.c.h.b16 %v490
        %v824 = vunpack.c.l.b16 %v491
        %v825 = vunpack.c.h.b16 %v491
        %v826 = vunpack.c.l.b16 %v492
        %v827 = vunpack.c.l.b16 %v493
        %v828 = vunpack.c.h.b16 %v493
        %v829 = vunpack.c.l.b16 %v494
        %v830 = vunpack.c.h.b16 %v494
        %v831 = vunpack.c.l.b16 %v495
        %v832 = vpack.c.b16 %v677, %v672
        %v833 = vpack.c.b16 %v678, %v673
        %v834 = vpack.c.b16 %v679, %v674
        %v835 = vpack.c.b16 %v680, %v675
        %v836 = vpack.c.b16 %v681, %v676
        %v837 = vpack.c.b16 %v687, %v682
        %v838 = vpack.c.b16 %v688, %v683
        %v839 = vpack.c.b16 %v689, %v684
        %v840 = vpack.c.b16 %v690, %v685
        %v841 = vpack.c.b16 %v691, %v686
        %v842 = vpack.c.b16 %v697, %v692
        %v843 = vpack.c.b16 %v698, %v693
        %v844 = vpack.c.b16 %v699, %v694
        %v845 = vpack.c.b16 %v700, %v695
        %v846 = vpack.c.b16 %v701, %v696
        %v847 = vpack.c.b16 %v707, %v702
        %v848 = vpack.c.b16 %v708, %v703
        %v849 = vpack.c.b16 %v709, %v704
        %v850 = vpack.c.b16 %v710, %v705
        %v851 = vpack.c.b16 %v711, %v706
        %v852 = vpack.c.b16 %v717, %v712
        %v853 = vpack.c.b16 %v718, %v713
        %v854 = vpack.c.b16 %v719, %v714
        %v855 = vpack.c.b16 %v720, %v715
        %v856 = vpack.c.b16 %v721, %v716
        %v857 = vpack.c.b16 %v727, %v722
        %v858 = vpack.c.b16 %v728, %v723
        %v859 = vpack.c.b16 %v729, %v724
        %v860 = vpack.c.b16 %v730, %v725
        %v861 = vpack.c.b16 %v731, %v726
        %v862 = vpack.c.b16 %v737, %v732
        %v863 = vpack.c.b16 %v738, %v733
        %v864 = vpack.c.b16 %v739, %v734
        %v865 = vpack.c.b16 %v740, %v735
        %v866 = vpack.c.b16 %v741, %v736
        %v867 = vpack.c.b16 %v747, %v742
        %v868 = vpack.c.b16 %v748, %v743
        %v869 = vpack.c.b16 %v749, %v744
        %v870 = vpack.c.b16 %v750, %v745
        %v871 = vpack.c.b16 %v751, %v746
        %v872 = vpack.c.b16 %v757, %v752
        %v873 = vpack.c.b16 %v758, %v753
        %v874 = vpack.c.b16 %v759, %v754
        %v875 = vpack.c.b16 %v760, %v755
        %v876 = vpack.c.b16 %v761, %v756
        %v877 = vpack.c.b16 %v767, %v762
        %v878 = vpack.c.b16 %v768, %v763
        %v879 = vpack.c.b16 %v769, %v764
        %v880 = vpack.c.b16 %v770, %v765
        %v881 = vpack.c.b16 %v771, %v766
        %v882 = vpack.c.b16 %v777, %v772
        %v883 = vpack.c.b16 %v778, %v773
        %v884 = vpack.c.b16 %v779, %v774
        %v885 = vpack.c.b16 %v780, %v775
        %v886 = vpack.c.b16 %v781, %v776
        %v887 = vpack.c.b16 %v787, %v782
        %v888 = vpack.c.b16 %v788, %v783
        %v889 = vpack.c.b16 %v789, %v784
        %v890 = vpack.c.b16 %v790, %v785
        %v891 = vpack.c.b16 %v791, %v786
        %v892 = vpack.c.b16 %v797, %v792
        %v893 = vpack.c.b16 %v798, %v793
        %v894 = vpack.c.b16 %v799, %v794
        %v895 = vpack.c.b16 %v800, %v795
        %v896 = vpack.c.b16 %v801, %v796
        %v897 = vpack.c.b16 %v807, %v802
        %v898 = vpack.c.b16 %v808, %v803
        %v899 = vpack.c.b16 %v809, %v804
        %v900 = vpack.c.b16 %v810, %v805
        %v901 = vpack.c.b16 %v811, %v806
        %v902 = vpack.c.b16 %v817, %v812
        %v903 = vpack.c.b16 %v818, %v813
        %v904 = vpack.c.b16 %v819, %v814
        %v905 = vpack.c.b16 %v820, %v815
        %v906 = vpack.c.b16 %v821, %v816
        %v907 = vpack.c.b16 %v827, %v822
        %v908 = vpack.c.b16 %v828, %v823
        %v909 = vpack.c.b16 %v829, %v824
        %v910 = vpack.c.b16 %v830, %v825
        %v911 = vpack.c.b16 %v831, %v826
        %992 = vmatprep.subr.bf16.mxu0 %v868
        %993 = vmatpush1.bf16.msra.mxu0 %v867
        %994 = vmatprep.subr.bf16.mxu0 %v863
        %995 = vmatpush1.bf16.msra.mxu0 %v862
        %996 = vmatprep.subr.bf16.mxu0 %v858
        %997 = vmatpush1.bf16.msra.mxu0 %v857
        %998 = vmatprep.subr.bf16.mxu0 %v853
        %999 = vmatpush1.bf16.msra.mxu0 %v852
        %1000 = vmatprep.subr.bf16.mxu0 %v848
        %1001 = vmatpush1.bf16.msra.mxu0 %v847
        %1002 = vmatprep.subr.bf16.mxu0 %v843
        %1003 = vmatpush1.bf16.msra.mxu0 %v842
        %1004 = vmatprep.subr.bf16.mxu0 %v838
        %1005 = vmatpush1.bf16.msra.mxu0 %v837
        %1006 = vmatprep.subr.bf16.mxu0 %v833
        %1007 = vmatpush1.bf16.msra.mxu0 %v832
        %1008 = vmatprep.subr.bf16.mxu0 %v908
        %1009 = vmatpush2.bf16.msra.mxu0 %v907
        %1010 = vmatprep.subr.bf16.mxu0 %v903
        %1011 = vmatpush2.bf16.msra.mxu0 %v902
        %1012 = vmatprep.subr.bf16.mxu0 %v898
        %1013 = vmatpush2.bf16.msra.mxu0 %v897
        %1014 = vmatprep.subr.bf16.mxu0 %v893
        %1015 = vmatpush2.bf16.msra.mxu0 %v892
        %1016 = vmatprep.subr.bf16.mxu0 %v888
        %1017 = vmatpush2.bf16.msra.mxu0 %v887
        %1018 = vmatprep.subr.bf16.mxu0 %v883
        %1019 = vmatpush2.bf16.msra.mxu0 %v882
        %1020 = vmatprep.subr.bf16.mxu0 %v878
        %1021 = vmatpush2.bf16.msra.mxu0 %v877
        %1022 = vmatprep.subr.bf16.mxu0 %v873
        %1023 = vmatpush2.bf16.msra.mxu0 %v872
        %1024 = vmatprep.mubr.bf16.mxu0 %v545
        %1025 = vmatmul.mubr.bf16.gmra.mxu0 %v544
        %v1026 = vpop.f32.mrf.mxu0
        %v1027 = vadd.f32 0.0, %v1026
        %v1028 = vpop.f32.mrf.mxu0
        %v1029 = vadd.f32 0.0, %v1028
        %v1030 = vpop.f32.mrf.mxu0
        %v1031 = vadd.f32 0.0, %v1030
        %v1032 = vpop.f32.mrf.mxu0
        %v1033 = vadd.f32 0.0, %v1032
        %1034 = vmatprep.mubr.bf16.mxu0 %v547
        %1035 = vmatmul.mubr.bf16.gmra.mxu0 %v546
        %v1036 = vpop.f32.mrf.mxu0
        %v1037 = vadd.f32 0.0, %v1036
        %v1038 = vpop.f32.mrf.mxu0
        %v1039 = vadd.f32 0.0, %v1038
        %v1040 = vpop.f32.mrf.mxu0
        %v1041 = vadd.f32 0.0, %v1040
        %v1042 = vpop.f32.mrf.mxu0
        %v1043 = vadd.f32 0.0, %v1042
        %1044 = vmatprep.mubr.bf16.mxu0 %v549
        %1045 = vmatmul.mubr.bf16.gmra.mxu0 %v548
        %v1046 = vpop.f32.mrf.mxu0
        %v1047 = vadd.f32 0.0, %v1046
        %v1048 = vpop.f32.mrf.mxu0
        %v1049 = vadd.f32 0.0, %v1048
        %v1050 = vpop.f32.mrf.mxu0
        %v1051 = vadd.f32 0.0, %v1050
        %v1052 = vpop.f32.mrf.mxu0
        %v1053 = vadd.f32 0.0, %v1052
        %1054 = vmatprep.mubr.bf16.mxu0 %v551
        %1055 = vmatmul.mubr.bf16.gmra.mxu0 %v550
        %v1056 = vpop.f32.mrf.mxu0
        %v1057 = vadd.f32 0.0, %v1056
        %v1058 = vpop.f32.mrf.mxu0
        %v1059 = vadd.f32 0.0, %v1058
        %v1060 = vpop.f32.mrf.mxu0
        %v1061 = vadd.f32 0.0, %v1060
        %v1062 = vpop.f32.mrf.mxu0
        %v1063 = vadd.f32 0.0, %v1062
        %1064 = vmatprep.mubr.bf16.mxu0 %v553
        %1065 = vmatmul.mubr.bf16.gmra.mxu0 %v552
        %v1066 = vpop.f32.mrf.mxu0
        %v1067 = vadd.f32 0.0, %v1066
        %v1068 = vpop.f32.mrf.mxu0
        %v1069 = vadd.f32 0.0, %v1068
        %v1070 = vpop.f32.mrf.mxu0
        %v1071 = vadd.f32 0.0, %v1070
        %v1072 = vpop.f32.mrf.mxu0
        %v1073 = vadd.f32 0.0, %v1072
        %1074 = vmatprep.mubr.bf16.mxu0 %v555
        %1075 = vmatmul.mubr.bf16.gmra.mxu0 %v554
        %v1076 = vpop.f32.mrf.mxu0
        %v1077 = vadd.f32 0.0, %v1076
        %v1078 = vpop.f32.mrf.mxu0
        %v1079 = vadd.f32 0.0, %v1078
        %v1080 = vpop.f32.mrf.mxu0
        %v1081 = vadd.f32 0.0, %v1080
        %v1082 = vpop.f32.mrf.mxu0
        %v1083 = vadd.f32 0.0, %v1082
        %1084 = vmatprep.mubr.bf16.mxu0 %v557
        %1085 = vmatmul.mubr.bf16.gmra.mxu0 %v556
        %v1086 = vpop.f32.mrf.mxu0
        %v1087 = vadd.f32 0.0, %v1086
        %v1088 = vpop.f32.mrf.mxu0
        %v1089 = vadd.f32 0.0, %v1088
        %v1090 = vpop.f32.mrf.mxu0
        %v1091 = vadd.f32 0.0, %v1090
        %v1092 = vpop.f32.mrf.mxu0
        %v1093 = vadd.f32 0.0, %v1092
        %1094 = vmatprep.mubr.bf16.mxu0 %v559
        %1095 = vmatmul.mubr.bf16.gmra.mxu0 %v558
        %v1096 = vpop.f32.mrf.mxu0
        %v1097 = vadd.f32 0.0, %v1096
        %v1098 = vpop.f32.mrf.mxu0
        %v1099 = vadd.f32 0.0, %v1098
        %v1100 = vpop.f32.mrf.mxu0
        %v1101 = vadd.f32 0.0, %v1100
        %v1102 = vpop.f32.mrf.mxu0
        %v1103 = vadd.f32 0.0, %v1102
        %1104 = vdwg.mxu0
        %1105 = vmatprep.subr.bf16.mxu0 %v870
        %1106 = vmatpush1.bf16.msra.mxu0 %v869
        %1107 = vmatprep.subr.bf16.mxu0 %v865
        %1108 = vmatpush1.bf16.msra.mxu0 %v864
        %1109 = vmatprep.subr.bf16.mxu0 %v860
        %1110 = vmatpush1.bf16.msra.mxu0 %v859
        %1111 = vmatprep.subr.bf16.mxu0 %v855
        %1112 = vmatpush1.bf16.msra.mxu0 %v854
        %1113 = vmatprep.subr.bf16.mxu0 %v850
        %1114 = vmatpush1.bf16.msra.mxu0 %v849
        %1115 = vmatprep.subr.bf16.mxu0 %v845
        %1116 = vmatpush1.bf16.msra.mxu0 %v844
        %1117 = vmatprep.subr.bf16.mxu0 %v840
        %1118 = vmatpush1.bf16.msra.mxu0 %v839
        %1119 = vmatprep.subr.bf16.mxu0 %v835
        %1120 = vmatpush1.bf16.msra.mxu0 %v834
        %1121 = vmatprep.subr.bf16.mxu0 %v910
        %1122 = vmatpush2.bf16.msra.mxu0 %v909
        %1123 = vmatprep.subr.bf16.mxu0 %v905
        %1124 = vmatpush2.bf16.msra.mxu0 %v904
        %1125 = vmatprep.subr.bf16.mxu0 %v900
        %1126 = vmatpush2.bf16.msra.mxu0 %v899
        %1127 = vmatprep.subr.bf16.mxu0 %v895
        %1128 = vmatpush2.bf16.msra.mxu0 %v894
        %1129 = vmatprep.subr.bf16.mxu0 %v890
        %1130 = vmatpush2.bf16.msra.mxu0 %v889
        %1131 = vmatprep.subr.bf16.mxu0 %v885
        %1132 = vmatpush2.bf16.msra.mxu0 %v884
        %1133 = vmatprep.subr.bf16.mxu0 %v880
        %1134 = vmatpush2.bf16.msra.mxu0 %v879
        %1135 = vmatprep.subr.bf16.mxu0 %v875
        %1136 = vmatpush2.bf16.msra.mxu0 %v874
        %1137 = vmatprep.mubr.bf16.mxu0 %v545
        %1138 = vmatmul.mubr.bf16.gmra.mxu0 %v544
        %v1139 = vpop.f32.mrf.mxu0
        %v1140 = vadd.f32 0.0, %v1139
        %v1141 = vpop.f32.mrf.mxu0
        %v1142 = vadd.f32 0.0, %v1141
        %v1143 = vpop.f32.mrf.mxu0
        %v1144 = vadd.f32 0.0, %v1143
        %v1145 = vpop.f32.mrf.mxu0
        %v1146 = vadd.f32 0.0, %v1145
        %1147 = vmatprep.mubr.bf16.mxu0 %v547
        %1148 = vmatmul.mubr.bf16.gmra.mxu0 %v546
        %v1149 = vpop.f32.mrf.mxu0
        %v1150 = vadd.f32 0.0, %v1149
        %v1151 = vpop.f32.mrf.mxu0
        %v1152 = vadd.f32 0.0, %v1151
        %v1153 = vpop.f32.mrf.mxu0
        %v1154 = vadd.f32 0.0, %v1153
        %v1155 = vpop.f32.mrf.mxu0
        %v1156 = vadd.f32 0.0, %v1155
        %1157 = vmatprep.mubr.bf16.mxu0 %v549
        %1158 = vmatmul.mubr.bf16.gmra.mxu0 %v548
        %v1159 = vpop.f32.mrf.mxu0
        %v1160 = vadd.f32 0.0, %v1159
        %v1161 = vpop.f32.mrf.mxu0
        %v1162 = vadd.f32 0.0, %v1161
        %v1163 = vpop.f32.mrf.mxu0
        %v1164 = vadd.f32 0.0, %v1163
        %v1165 = vpop.f32.mrf.mxu0
        %v1166 = vadd.f32 0.0, %v1165
        %1167 = vmatprep.mubr.bf16.mxu0 %v551
        %1168 = vmatmul.mubr.bf16.gmra.mxu0 %v550
        %v1169 = vpop.f32.mrf.mxu0
        %v1170 = vadd.f32 0.0, %v1169
        %v1171 = vpop.f32.mrf.mxu0
        %v1172 = vadd.f32 0.0, %v1171
        %v1173 = vpop.f32.mrf.mxu0
        %v1174 = vadd.f32 0.0, %v1173
        %v1175 = vpop.f32.mrf.mxu0
        %v1176 = vadd.f32 0.0, %v1175
        %1177 = vmatprep.mubr.bf16.mxu0 %v553
        %1178 = vmatmul.mubr.bf16.gmra.mxu0 %v552
        %v1179 = vpop.f32.mrf.mxu0
        %v1180 = vadd.f32 0.0, %v1179
        %v1181 = vpop.f32.mrf.mxu0
        %v1182 = vadd.f32 0.0, %v1181
        %v1183 = vpop.f32.mrf.mxu0
        %v1184 = vadd.f32 0.0, %v1183
        %v1185 = vpop.f32.mrf.mxu0
        %v1186 = vadd.f32 0.0, %v1185
        %1187 = vmatprep.mubr.bf16.mxu0 %v555
        %1188 = vmatmul.mubr.bf16.gmra.mxu0 %v554
        %v1189 = vpop.f32.mrf.mxu0
        %v1190 = vadd.f32 0.0, %v1189
        %v1191 = vpop.f32.mrf.mxu0
        %v1192 = vadd.f32 0.0, %v1191
        %v1193 = vpop.f32.mrf.mxu0
        %v1194 = vadd.f32 0.0, %v1193
        %v1195 = vpop.f32.mrf.mxu0
        %v1196 = vadd.f32 0.0, %v1195
        %1197 = vmatprep.mubr.bf16.mxu0 %v557
        %1198 = vmatmul.mubr.bf16.gmra.mxu0 %v556
        %v1199 = vpop.f32.mrf.mxu0
        %v1200 = vadd.f32 0.0, %v1199
        %v1201 = vpop.f32.mrf.mxu0
        %v1202 = vadd.f32 0.0, %v1201
        %v1203 = vpop.f32.mrf.mxu0
        %v1204 = vadd.f32 0.0, %v1203
        %v1205 = vpop.f32.mrf.mxu0
        %v1206 = vadd.f32 0.0, %v1205
        %1207 = vmatprep.mubr.bf16.mxu0 %v559
        %1208 = vmatmul.mubr.bf16.gmra.mxu0 %v558
        %v1209 = vpop.f32.mrf.mxu0
        %v1210 = vadd.f32 0.0, %v1209
        %v1211 = vpop.f32.mrf.mxu0
        %v1212 = vadd.f32 0.0, %v1211
        %v1213 = vpop.f32.mrf.mxu0
        %v1214 = vadd.f32 0.0, %v1213
        %v1215 = vpop.f32.mrf.mxu0
        %v1216 = vadd.f32 0.0, %v1215
        %1217 = vdwg.mxu0
        %1218 = vmatprep.subr.bf16.mxu0 0
        %1219 = vmatpush1.bf16.msra.mxu0 %v871
        %1220 = vmatprep.subr.bf16.mxu0 0
        %1221 = vmatpush1.bf16.msra.mxu0 %v866
        %1222 = vmatprep.subr.bf16.mxu0 0
        %1223 = vmatpush1.bf16.msra.mxu0 %v861
        %1224 = vmatprep.subr.bf16.mxu0 0
        %1225 = vmatpush1.bf16.msra.mxu0 %v856
        %1226 = vmatprep.subr.bf16.mxu0 0
        %1227 = vmatpush1.bf16.msra.mxu0 %v851
        %1228 = vmatprep.subr.bf16.mxu0 0
        %1229 = vmatpush1.bf16.msra.mxu0 %v846
        %1230 = vmatprep.subr.bf16.mxu0 0
        %1231 = vmatpush1.bf16.msra.mxu0 %v841
        %1232 = vmatprep.subr.bf16.mxu0 0
        %1233 = vmatpush1.bf16.msra.mxu0 %v836
        %1234 = vmatprep.subr.bf16.mxu0 0
        %1235 = vmatpush2.bf16.msra.mxu0 %v911
        %1236 = vmatprep.subr.bf16.mxu0 0
        %1237 = vmatpush2.bf16.msra.mxu0 %v906
        %1238 = vmatprep.subr.bf16.mxu0 0
        %1239 = vmatpush2.bf16.msra.mxu0 %v901
        %1240 = vmatprep.subr.bf16.mxu0 0
        %1241 = vmatpush2.bf16.msra.mxu0 %v896
        %1242 = vmatprep.subr.bf16.mxu0 0
        %1243 = vmatpush2.bf16.msra.mxu0 %v891
        %1244 = vmatprep.subr.bf16.mxu0 0
        %1245 = vmatpush2.bf16.msra.mxu0 %v886
        %1246 = vmatprep.subr.bf16.mxu0 0
        %1247 = vmatpush2.bf16.msra.mxu0 %v881
        %1248 = vmatprep.subr.bf16.mxu0 0
        %1249 = vmatpush2.bf16.msra.mxu0 %v876
        %1250 = vmatprep.mubr.bf16.mxu0 %v545
        %1251 = vmatmul.mubr.bf16.gmra.mxu0 %v544
        %v1252 = vpop.f32.mrf.mxu0
        %v1253 = vadd.f32 0.0, %v1252
        %v1254 = vpop.f32.mrf.mxu0
        %v1255 = vpop.f32.mrf.mxu0
        %v1256 = vadd.f32 0.0, %v1255
        %v1257 = vpop.f32.mrf.mxu0
        %1258 = vmatprep.mubr.bf16.mxu0 %v547
        %1259 = vmatmul.mubr.bf16.gmra.mxu0 %v546
        %v1260 = vpop.f32.mrf.mxu0
        %v1261 = vadd.f32 0.0, %v1260
        %v1262 = vpop.f32.mrf.mxu0
        %v1263 = vpop.f32.mrf.mxu0
        %v1264 = vadd.f32 0.0, %v1263
        %v1265 = vpop.f32.mrf.mxu0
        %1266 = vmatprep.mubr.bf16.mxu0 %v549
        %1267 = vmatmul.mubr.bf16.gmra.mxu0 %v548
        %v1268 = vpop.f32.mrf.mxu0
        %v1269 = vadd.f32 0.0, %v1268
        %v1270 = vpop.f32.mrf.mxu0
        %v1271 = vpop.f32.mrf.mxu0
        %v1272 = vadd.f32 0.0, %v1271
        %v1273 = vpop.f32.mrf.mxu0
        %1274 = vmatprep.mubr.bf16.mxu0 %v551
        %1275 = vmatmul.mubr.bf16.gmra.mxu0 %v550
        %v1276 = vpop.f32.mrf.mxu0
        %v1277 = vadd.f32 0.0, %v1276
        %v1278 = vpop.f32.mrf.mxu0
        %v1279 = vpop.f32.mrf.mxu0
        %v1280 = vadd.f32 0.0, %v1279
        %v1281 = vpop.f32.mrf.mxu0
        %1282 = vmatprep.mubr.bf16.mxu0 %v553
        %1283 = vmatmul.mubr.bf16.gmra.mxu0 %v552
        %v1284 = vpop.f32.mrf.mxu0
        %v1285 = vadd.f32 0.0, %v1284
        %v1286 = vpop.f32.mrf.mxu0
        %v1287 = vpop.f32.mrf.mxu0
        %v1288 = vadd.f32 0.0, %v1287
        %v1289 = vpop.f32.mrf.mxu0
        %1290 = vmatprep.mubr.bf16.mxu0 %v555
        %1291 = vmatmul.mubr.bf16.gmra.mxu0 %v554
        %v1292 = vpop.f32.mrf.mxu0
        %v1293 = vadd.f32 0.0, %v1292
        %v1294 = vpop.f32.mrf.mxu0
        %v1295 = vpop.f32.mrf.mxu0
        %v1296 = vadd.f32 0.0, %v1295
        %v1297 = vpop.f32.mrf.mxu0
        %1298 = vmatprep.mubr.bf16.mxu0 %v557
        %1299 = vmatmul.mubr.bf16.gmra.mxu0 %v556
        %v1300 = vpop.f32.mrf.mxu0
        %v1301 = vadd.f32 0.0, %v1300
        %v1302 = vpop.f32.mrf.mxu0
        %v1303 = vpop.f32.mrf.mxu0
        %v1304 = vadd.f32 0.0, %v1303
        %v1305 = vpop.f32.mrf.mxu0
        %1306 = vmatprep.mubr.bf16.mxu0 %v559
        %1307 = vmatmul.mubr.bf16.gmra.mxu0 %v558
        %v1308 = vpop.f32.mrf.mxu0
        %v1309 = vadd.f32 0.0, %v1308
        %v1310 = vpop.f32.mrf.mxu0
        %v1311 = vpop.f32.mrf.mxu0
        %v1312 = vadd.f32 0.0, %v1311
        %v1313 = vpop.f32.mrf.mxu0
        %1314 = vdwg.mxu0
        %v1315 = vld [vmem:[%s3] sm:$0xf]
        %v1317 = vlaneseq
        %v1318 = vshrl.u32 %v1317, 7
        %v1319 = vsub.s32 0, %v1318
        %v1320 = vrot.slane %v1315, %v1319
        %v1321 = vlaneseq
        %v1322 = vshrl.u32 %v1321, 7
        %v1323 = vsub.s32 1, %v1322
        %v1324 = vrot.slane %v1315, %v1323
        %v1325 = vlaneseq
        %v1326 = vshrl.u32 %v1325, 7
        %v1327 = vsub.s32 2, %v1326
        %v1328 = vrot.slane %v1315, %v1327
        %v1329 = vlaneseq
        %v1330 = vshrl.u32 %v1329, 7
        %v1331 = vsub.s32 3, %v1330
        %v1332 = vrot.slane %v1315, %v1331
        %v1337 = vadd.f32 %v1027, %v1320
        %v1338 = vadd.f32 %v1029, %v1324
        %v1339 = vadd.f32 %v1140, %v1328
        %v1340 = vadd.f32 %v1142, %v1332
        %v1341 = vadd.f32 %v1031, %v1320
        %v1342 = vadd.f32 %v1033, %v1324
        %v1343 = vadd.f32 %v1144, %v1328
        %v1344 = vadd.f32 %v1146, %v1332
        %v1345 = vadd.f32 %v1037, %v1320
        %v1346 = vadd.f32 %v1039, %v1324
        %v1347 = vadd.f32 %v1150, %v1328
        %v1348 = vadd.f32 %v1152, %v1332
        %v1349 = vadd.f32 %v1041, %v1320
        %v1350 = vadd.f32 %v1043, %v1324
        %v1351 = vadd.f32 %v1154, %v1328
        %v1352 = vadd.f32 %v1156, %v1332
        %v1353 = vadd.f32 %v1047, %v1320
        %v1354 = vadd.f32 %v1049, %v1324
        %v1355 = vadd.f32 %v1160, %v1328
        %v1356 = vadd.f32 %v1162, %v1332
        %v1357 = vadd.f32 %v1051, %v1320
        %v1358 = vadd.f32 %v1053, %v1324
        %v1359 = vadd.f32 %v1164, %v1328
        %v1360 = vadd.f32 %v1166, %v1332
        %v1361 = vadd.f32 %v1057, %v1320
        %v1362 = vadd.f32 %v1059, %v1324
        %v1363 = vadd.f32 %v1170, %v1328
        %v1364 = vadd.f32 %v1172, %v1332
        %v1365 = vadd.f32 %v1061, %v1320
        %v1366 = vadd.f32 %v1063, %v1324
        %v1367 = vadd.f32 %v1174, %v1328
        %v1368 = vadd.f32 %v1176, %v1332
        %v1369 = vadd.f32 %v1067, %v1320
        %v1370 = vadd.f32 %v1069, %v1324
        %v1371 = vadd.f32 %v1180, %v1328
        %v1372 = vadd.f32 %v1182, %v1332
        %v1373 = vadd.f32 %v1071, %v1320
        %v1374 = vadd.f32 %v1073, %v1324
        %v1375 = vadd.f32 %v1184, %v1328
        %v1376 = vadd.f32 %v1186, %v1332
        %v1377 = vadd.f32 %v1077, %v1320
        %v1378 = vadd.f32 %v1079, %v1324
        %v1379 = vadd.f32 %v1190, %v1328
        %v1380 = vadd.f32 %v1192, %v1332
        %v1381 = vadd.f32 %v1081, %v1320
        %v1382 = vadd.f32 %v1083, %v1324
        %v1383 = vadd.f32 %v1194, %v1328
        %v1384 = vadd.f32 %v1196, %v1332
        %v1385 = vadd.f32 %v1087, %v1320
        %v1386 = vadd.f32 %v1089, %v1324
        %v1387 = vadd.f32 %v1200, %v1328
        %v1388 = vadd.f32 %v1202, %v1332
        %v1389 = vadd.f32 %v1091, %v1320
        %v1390 = vadd.f32 %v1093, %v1324
        %v1391 = vadd.f32 %v1204, %v1328
        %v1392 = vadd.f32 %v1206, %v1332
        %v1393 = vadd.f32 %v1097, %v1320
        %v1394 = vadd.f32 %v1099, %v1324
        %v1395 = vadd.f32 %v1210, %v1328
        %v1396 = vadd.f32 %v1212, %v1332
        %v1397 = vadd.f32 %v1101, %v1320
        %v1398 = vadd.f32 %v1103, %v1324
        %v1399 = vadd.f32 %v1214, %v1328
        %v1400 = vadd.f32 %v1216, %v1332
        %v1401 = vpack.c.bf16 %v1341, %v1337
        %v1402 = vpack.c.bf16 %v1342, %v1338
        %v1403 = vpack.c.bf16 %v1343, %v1339
        %v1404 = vpack.c.bf16 %v1344, %v1340
        %v1405 = vpack.c.bf16 %v1349, %v1345
        %v1406 = vpack.c.bf16 %v1350, %v1346
        %v1407 = vpack.c.bf16 %v1351, %v1347
        %v1408 = vpack.c.bf16 %v1352, %v1348
        %v1409 = vpack.c.bf16 %v1357, %v1353
        %v1410 = vpack.c.bf16 %v1358, %v1354
        %v1411 = vpack.c.bf16 %v1359, %v1355
        %v1412 = vpack.c.bf16 %v1360, %v1356
        %v1413 = vpack.c.bf16 %v1365, %v1361
        %v1414 = vpack.c.bf16 %v1366, %v1362
        %v1415 = vpack.c.bf16 %v1367, %v1363
        %v1416 = vpack.c.bf16 %v1368, %v1364
        %v1417 = vpack.c.bf16 %v1373, %v1369
        %v1418 = vpack.c.bf16 %v1374, %v1370
        %v1419 = vpack.c.bf16 %v1375, %v1371
        %v1420 = vpack.c.bf16 %v1376, %v1372
        %v1421 = vpack.c.bf16 %v1381, %v1377
        %v1422 = vpack.c.bf16 %v1382, %v1378
        %v1423 = vpack.c.bf16 %v1383, %v1379
        %v1424 = vpack.c.bf16 %v1384, %v1380
        %v1425 = vpack.c.bf16 %v1389, %v1385
        %v1426 = vpack.c.bf16 %v1390, %v1386
        %v1427 = vpack.c.bf16 %v1391, %v1387
        %v1428 = vpack.c.bf16 %v1392, %v1388
        %v1429 = vpack.c.bf16 %v1397, %v1393
        %v1430 = vpack.c.bf16 %v1398, %v1394
        %v1431 = vpack.c.bf16 %v1399, %v1395
        %v1432 = vpack.c.bf16 %v1400, %v1396
        %v1433 = vld [vmem:[%s2] sm:$0x1]
        %v1435 = vlaneseq
        %v1436 = vshrl.u32 %v1435, 7
        %v1437 = vsub.s32 0, %v1436
        %v1438 = vrot.slane %v1433, %v1437
        %v1440 = vadd.f32 %v1253, %v1438
        %v1441 = vadd.f32 %v1256, %v1438
        %v1442 = vadd.f32 %v1261, %v1438
        %v1443 = vadd.f32 %v1264, %v1438
        %v1444 = vadd.f32 %v1269, %v1438
        %v1445 = vadd.f32 %v1272, %v1438
        %v1446 = vadd.f32 %v1277, %v1438
        %v1447 = vadd.f32 %v1280, %v1438
        %v1448 = vadd.f32 %v1285, %v1438
        %v1449 = vadd.f32 %v1288, %v1438
        %v1450 = vadd.f32 %v1293, %v1438
        %v1451 = vadd.f32 %v1296, %v1438
        %v1452 = vadd.f32 %v1301, %v1438
        %v1453 = vadd.f32 %v1304, %v1438
        %v1454 = vadd.f32 %v1309, %v1438
        %v1455 = vadd.f32 %v1312, %v1438
        %v1456 = vmax.f32 %v1440, 0.0
        %v1457 = vmax.f32 %v1441, 0.0
        %v1458 = vmax.f32 %v1442, 0.0
        %v1459 = vmax.f32 %v1443, 0.0
        %v1460 = vmax.f32 %v1444, 0.0
        %v1461 = vmax.f32 %v1445, 0.0
        %v1462 = vmax.f32 %v1446, 0.0
        %v1463 = vmax.f32 %v1447, 0.0
        %v1464 = vmax.f32 %v1448, 0.0
        %v1465 = vmax.f32 %v1449, 0.0
        %v1466 = vmax.f32 %v1450, 0.0
        %v1467 = vmax.f32 %v1451, 0.0
        %v1468 = vmax.f32 %v1452, 0.0
        %v1469 = vmax.f32 %v1453, 0.0
        %v1470 = vmax.f32 %v1454, 0.0
        %v1471 = vmax.f32 %v1455, 0.0
        %v1472 = vpack.c.bf16 %v1457, %v1456
        %v1473 = vpack.c.bf16 %v1459, %v1458
        %v1474 = vpack.c.bf16 %v1461, %v1460
        %v1475 = vpack.c.bf16 %v1463, %v1462
        %v1476 = vpack.c.bf16 %v1465, %v1464
        %v1477 = vpack.c.bf16 %v1467, %v1466
        %v1478 = vpack.c.bf16 %v1469, %v1468
        %v1479 = vpack.c.bf16 %v1471, %v1470
        %v1488 = vunpack.c.l.b16 %v1472
        %v1489 = vunpack.c.h.b16 %v1472
        %v1490 = vunpack.c.l.b16 %v1473
        %v1491 = vunpack.c.h.b16 %v1473
        %v1492 = vunpack.c.l.b16 %v1474
        %v1493 = vunpack.c.h.b16 %v1474
        %v1494 = vunpack.c.l.b16 %v1475
        %v1495 = vunpack.c.h.b16 %v1475
        %v1496 = vunpack.c.l.b16 %v1476
        %v1497 = vunpack.c.h.b16 %v1476
        %v1498 = vunpack.c.l.b16 %v1477
        %v1499 = vunpack.c.h.b16 %v1477
        %v1500 = vunpack.c.l.b16 %v1478
        %v1501 = vunpack.c.h.b16 %v1478
        %v1502 = vunpack.c.l.b16 %v1479
        %v1503 = vunpack.c.h.b16 %v1479
        %v1504 = vpack.c.b16 %v1488, %v1488
        %v1505 = vpack.c.b16 %v1489, %v1489
        %v1506 = vpack.c.b16 %v1490, %v1490
        %v1507 = vpack.c.b16 %v1491, %v1491
        %v1508 = vpack.c.b16 %v1492, %v1492
        %v1509 = vpack.c.b16 %v1493, %v1493
        %v1510 = vpack.c.b16 %v1494, %v1494
        %v1511 = vpack.c.b16 %v1495, %v1495
        %v1512 = vpack.c.b16 %v1496, %v1496
        %v1513 = vpack.c.b16 %v1497, %v1497
        %v1514 = vpack.c.b16 %v1498, %v1498
        %v1515 = vpack.c.b16 %v1499, %v1499
        %v1516 = vpack.c.b16 %v1500, %v1500
        %v1517 = vpack.c.b16 %v1501, %v1501
        %v1518 = vpack.c.b16 %v1502, %v1502
        %v1519 = vpack.c.b16 %v1503, %v1503
        %v1521 = vshrl.u32 %v1504, 16
        %v1523 = vrot.slane %v1521, 7
        %v1524 = vshll.u32 %v1504, 16
        %v1526 = vor.u32 %v1523, %v1524
        %v1528 = vshrl.u32 %v1505, 16
        %v1530 = vrot.slane %v1528, 7
        %v1531 = vshll.u32 %v1505, 16
        %v1533 = vor.u32 %v1530, %v1531
        %v1535 = vshrl.u32 %v1506, 16
        %v1537 = vrot.slane %v1535, 7
        %v1538 = vshll.u32 %v1506, 16
        %v1540 = vor.u32 %v1537, %v1538
        %v1542 = vshrl.u32 %v1507, 16
        %v1544 = vrot.slane %v1542, 7
        %v1545 = vshll.u32 %v1507, 16
        %v1547 = vor.u32 %v1544, %v1545
        %v1549 = vshrl.u32 %v1508, 16
        %v1551 = vrot.slane %v1549, 7
        %v1552 = vshll.u32 %v1508, 16
        %v1554 = vor.u32 %v1551, %v1552
        %v1556 = vshrl.u32 %v1509, 16
        %v1558 = vrot.slane %v1556, 7
        %v1559 = vshll.u32 %v1509, 16
        %v1561 = vor.u32 %v1558, %v1559
        %v1563 = vshrl.u32 %v1510, 16
        %v1565 = vrot.slane %v1563, 7
        %v1566 = vshll.u32 %v1510, 16
        %v1568 = vor.u32 %v1565, %v1566
        %v1570 = vshrl.u32 %v1511, 16
        %v1572 = vrot.slane %v1570, 7
        %v1573 = vshll.u32 %v1511, 16
        %v1575 = vor.u32 %v1572, %v1573
        %v1577 = vshrl.u32 %v1512, 16
        %v1579 = vrot.slane %v1577, 7
        %v1580 = vshll.u32 %v1512, 16
        %v1582 = vor.u32 %v1579, %v1580
        %v1584 = vshrl.u32 %v1513, 16
        %v1586 = vrot.slane %v1584, 7
        %v1587 = vshll.u32 %v1513, 16
        %v1589 = vor.u32 %v1586, %v1587
        %v1591 = vshrl.u32 %v1514, 16
        %v1593 = vrot.slane %v1591, 7
        %v1594 = vshll.u32 %v1514, 16
        %v1596 = vor.u32 %v1593, %v1594
        %v1598 = vshrl.u32 %v1515, 16
        %v1600 = vrot.slane %v1598, 7
        %v1601 = vshll.u32 %v1515, 16
        %v1603 = vor.u32 %v1600, %v1601
        %v1605 = vshrl.u32 %v1516, 16
        %v1607 = vrot.slane %v1605, 7
        %v1608 = vshll.u32 %v1516, 16
        %v1610 = vor.u32 %v1607, %v1608
        %v1612 = vshrl.u32 %v1517, 16
        %v1614 = vrot.slane %v1612, 7
        %v1615 = vshll.u32 %v1517, 16
        %v1617 = vor.u32 %v1614, %v1615
        %v1619 = vshrl.u32 %v1518, 16
        %v1621 = vrot.slane %v1619, 7
        %v1622 = vshll.u32 %v1518, 16
        %v1624 = vor.u32 %v1621, %v1622
        %v1626 = vshrl.u32 %v1519, 16
        %v1628 = vrot.slane %v1626, 7
        %v1629 = vshll.u32 %v1519, 16
        %v1631 = vor.u32 %v1628, %v1629
        %vm1648 = vcmask 1040384
        %vm1649 = vsmask.f32 256
        %vm1650 = vmand %vm1648, %vm1649
        %v1651 = vsel %vm1650, 0, %v1526
        %v1652 = vsel %vm1650, 0, %v1533
        %v1653 = vsel %vm1650, 0, %v1540
        %v1654 = vsel %vm1650, 0, %v1547
        %v1655 = vsel %vm1650, 0, %v1554
        %v1656 = vsel %vm1650, 0, %v1561
        %v1657 = vsel %vm1650, 0, %v1568
        %v1658 = vsel %vm1650, 0, %v1575
        %v1659 = vsel %vm1650, 0, %v1582
        %v1660 = vsel %vm1650, 0, %v1589
        %v1661 = vsel %vm1650, 0, %v1596
        %v1662 = vsel %vm1650, 0, %v1603
        %v1663 = vsel %vm1650, 0, %v1610
        %v1664 = vsel %vm1650, 0, %v1617
        %v1665 = vsel %vm1650, 0, %v1624
        %v1666 = vsel %vm1650, 0, %v1631
        %v1667 = vrot.slane %v1524, 1
        %v1668 = vor.u32 %v1521, %v1667
        %v1669 = vrot.slane %v1531, 1
        %v1670 = vor.u32 %v1528, %v1669
        %v1671 = vrot.slane %v1538, 1
        %v1672 = vor.u32 %v1535, %v1671
        %v1673 = vrot.slane %v1545, 1
        %v1674 = vor.u32 %v1542, %v1673
        %v1675 = vrot.slane %v1552, 1
        %v1676 = vor.u32 %v1549, %v1675
        %v1677 = vrot.slane %v1559, 1
        %v1678 = vor.u32 %v1556, %v1677
        %v1679 = vrot.slane %v1566, 1
        %v1680 = vor.u32 %v1563, %v1679
        %v1681 = vrot.slane %v1573, 1
        %v1682 = vor.u32 %v1570, %v1681
        %v1683 = vrot.slane %v1580, 1
        %v1684 = vor.u32 %v1577, %v1683
        %v1685 = vrot.slane %v1587, 1
        %v1686 = vor.u32 %v1584, %v1685
        %v1687 = vrot.slane %v1594, 1
        %v1688 = vor.u32 %v1591, %v1687
        %v1689 = vrot.slane %v1601, 1
        %v1690 = vor.u32 %v1598, %v1689
        %v1691 = vrot.slane %v1608, 1
        %v1692 = vor.u32 %v1605, %v1691
        %v1693 = vrot.slane %v1615, 1
        %v1694 = vor.u32 %v1612, %v1693
        %v1695 = vrot.slane %v1622, 1
        %v1696 = vor.u32 %v1619, %v1695
        %v1697 = vrot.slane %v1629, 1
        %v1698 = vor.u32 %v1626, %v1697
        %vm1715 = vcmask 1043456
        %vm1716 = vsmask.f32 3328
        %vm1717 = vmand %vm1715, %vm1716
        %v1718 = vsel %vm1717, %v1668, 0
        %v1719 = vsel %vm1717, %v1670, 0
        %v1720 = vsel %vm1717, %v1672, 0
        %v1721 = vsel %vm1717, %v1674, 0
        %v1722 = vsel %vm1717, %v1676, 0
        %v1723 = vsel %vm1717, %v1678, 0
        %v1724 = vsel %vm1717, %v1680, 0
        %v1725 = vsel %vm1717, %v1682, 0
        %v1726 = vsel %vm1717, %v1684, 0
        %v1727 = vsel %vm1717, %v1686, 0
        %v1728 = vsel %vm1717, %v1688, 0
        %v1729 = vsel %vm1717, %v1690, 0
        %v1730 = vsel %vm1717, %v1692, 0
        %v1731 = vsel %vm1717, %v1694, 0
        %v1732 = vsel %vm1717, %v1696, 0
        %v1733 = vsel %vm1717, %v1698, 0
        %v1766 = vunpack.c.l.b16 %v1651
        %v1767 = vunpack.c.l.b16 %v1718
        %v1768 = vunpack.c.l.b16 %v1652
        %v1769 = vunpack.c.l.b16 %v1719
        %v1770 = vunpack.c.l.b16 %v1653
        %v1771 = vunpack.c.l.b16 %v1720
        %v1772 = vunpack.c.l.b16 %v1654
        %v1773 = vunpack.c.l.b16 %v1721
        %v1774 = vunpack.c.l.b16 %v1655
        %v1775 = vunpack.c.l.b16 %v1722
        %v1776 = vunpack.c.l.b16 %v1656
        %v1777 = vunpack.c.l.b16 %v1723
        %v1778 = vunpack.c.l.b16 %v1657
        %v1779 = vunpack.c.l.b16 %v1724
        %v1780 = vunpack.c.l.b16 %v1658
        %v1781 = vunpack.c.l.b16 %v1725
        %v1782 = vunpack.c.l.b16 %v1659
        %v1783 = vunpack.c.l.b16 %v1726
        %v1784 = vunpack.c.l.b16 %v1660
        %v1785 = vunpack.c.l.b16 %v1727
        %v1786 = vunpack.c.l.b16 %v1661
        %v1787 = vunpack.c.l.b16 %v1728
        %v1788 = vunpack.c.l.b16 %v1662
        %v1789 = vunpack.c.l.b16 %v1729
        %v1790 = vunpack.c.l.b16 %v1663
        %v1791 = vunpack.c.l.b16 %v1730
        %v1792 = vunpack.c.l.b16 %v1664
        %v1793 = vunpack.c.l.b16 %v1731
        %v1794 = vunpack.c.l.b16 %v1665
        %v1795 = vunpack.c.l.b16 %v1732
        %v1796 = vunpack.c.l.b16 %v1666
        %v1797 = vunpack.c.l.b16 %v1733
        %v1798 = vpack.c.b16 %v1488, %v1766
        %v1799 = vpack.c.b16 %v1767, %v1767
        %v1800 = vpack.c.b16 %v1489, %v1768
        %v1801 = vpack.c.b16 %v1769, %v1769
        %v1802 = vpack.c.b16 %v1490, %v1770
        %v1803 = vpack.c.b16 %v1771, %v1771
        %v1804 = vpack.c.b16 %v1491, %v1772
        %v1805 = vpack.c.b16 %v1773, %v1773
        %v1806 = vpack.c.b16 %v1492, %v1774
        %v1807 = vpack.c.b16 %v1775, %v1775
        %v1808 = vpack.c.b16 %v1493, %v1776
        %v1809 = vpack.c.b16 %v1777, %v1777
        %v1810 = vpack.c.b16 %v1494, %v1778
        %v1811 = vpack.c.b16 %v1779, %v1779
        %v1812 = vpack.c.b16 %v1495, %v1780
        %v1813 = vpack.c.b16 %v1781, %v1781
        %v1814 = vpack.c.b16 %v1496, %v1782
        %v1815 = vpack.c.b16 %v1783, %v1783
        %v1816 = vpack.c.b16 %v1497, %v1784
        %v1817 = vpack.c.b16 %v1785, %v1785
        %v1818 = vpack.c.b16 %v1498, %v1786
        %v1819 = vpack.c.b16 %v1787, %v1787
        %v1820 = vpack.c.b16 %v1499, %v1788
        %v1821 = vpack.c.b16 %v1789, %v1789
        %v1822 = vpack.c.b16 %v1500, %v1790
        %v1823 = vpack.c.b16 %v1791, %v1791
        %v1824 = vpack.c.b16 %v1501, %v1792
        %v1825 = vpack.c.b16 %v1793, %v1793
        %v1826 = vpack.c.b16 %v1502, %v1794
        %v1827 = vpack.c.b16 %v1795, %v1795
        %v1828 = vpack.c.b16 %v1503, %v1796
        %v1829 = vpack.c.b16 %v1797, %v1797
        %s1862 = scalar_lea.vmem [#allocation2], 12
        %1863 = vst [vmem:[%s1862] sm:$0xff] %v1798
        %1864 = vst [vmem:[%s1862 + $0x8] sm:$0xf] %v1799
        %1865 = vst [vmem:[%s1862 + $0xc] sm:$0xff] %v1800
        %1866 = vst [vmem:[%s1862 + $0x14] sm:$0xf] %v1801
        %1867 = vst [vmem:[%s1862 + $0x18] sm:$0xff] %v1802
        %1868 = vst [vmem:[%s1862 + $0x20] sm:$0xf] %v1803
        %1869 = vst [vmem:[%s1862 + $0x24] sm:$0xff] %v1804
        %1870 = vst [vmem:[%s1862 + $0x2c] sm:$0xf] %v1805
        %1871 = vst [vmem:[%s1862 + $0x30] sm:$0xff] %v1806
        %1872 = vst [vmem:[%s1862 + $0x38] sm:$0xf] %v1807
        %1873 = vst [vmem:[%s1862 + $0x3c] sm:$0xff] %v1808
        %1874 = vst [vmem:[%s1862 + $0x44] sm:$0xf] %v1809
        %1875 = vst [vmem:[%s1862 + $0x48] sm:$0xff] %v1810
        %1876 = vst [vmem:[%s1862 + $0x50] sm:$0xf] %v1811
        %1877 = vst [vmem:[%s1862 + $0x54] sm:$0xff] %v1812
        %1878 = vst [vmem:[%s1862 + $0x5c] sm:$0xf] %v1813
        %1879 = vst [vmem:[%s1862 + $0x78] sm:$0xff] %v1814
        %1880 = vst [vmem:[%s1862 + $0x80] sm:$0xf] %v1815
        %1881 = vst [vmem:[%s1862 + $0x84] sm:$0xff] %v1816
        %1882 = vst [vmem:[%s1862 + $0x8c] sm:$0xf] %v1817
        %1883 = vst [vmem:[%s1862 + $0x90] sm:$0xff] %v1818
        %1884 = vst [vmem:[%s1862 + $0x98] sm:$0xf] %v1819
        %1885 = vst [vmem:[%s1862 + $0x9c] sm:$0xff] %v1820
        %1886 = vst [vmem:[%s1862 + $0xa4] sm:$0xf] %v1821
        %1887 = vst [vmem:[%s1862 + $0xa8] sm:$0xff] %v1822
        %1888 = vst [vmem:[%s1862 + $0xb0] sm:$0xf] %v1823
        %1889 = vst [vmem:[%s1862 + $0xb4] sm:$0xff] %v1824
        %1890 = vst [vmem:[%s1862 + $0xbc] sm:$0xf] %v1825
        %1891 = vst [vmem:[%s1862 + $0xc0] sm:$0xff] %v1826
        %1892 = vst [vmem:[%s1862 + $0xc8] sm:$0xf] %v1827
        %1893 = vst [vmem:[%s1862 + $0xcc] sm:$0xff] %v1828
        %1894 = vst [vmem:[%s1862 + $0xd4] sm:$0xf] %v1829
        %1895 = vst [vmem:[#allocation2] sm:$0xff] 0
        %1896 = vst [vmem:[#allocation2 + $0x8] sm:$0xf] 0
        %1897 = vst [vmem:[#allocation2 + $0x78] sm:$0xff] 0
        %1898 = vst [vmem:[#allocation2 + $0x80] sm:$0xf] 0
        %s1899 = scalar_lea.vmem [#allocation2], 108
        %1900 = vst [vmem:[%s1899] sm:$0xff] 0
        %1901 = vst [vmem:[%s1899 + $0x8] sm:$0xf] 0
        %1902 = vst [vmem:[%s1899 + $0x78] sm:$0xff] 0
        %1903 = vst [vmem:[%s1899 + $0x80] sm:$0xf] 0
        %v1904 = vld [vmem:[#allocation2] sm:$0xff]
        %v1905 = vld [vmem:[#allocation2 + $0x8] sm:$0xf]
        %v1906 = vld [vmem:[#allocation2 + $0xc] sm:$0xff]
        %v1907 = vld [vmem:[#allocation2 + $0x14] sm:$0xf]
        %v1908 = vld [vmem:[#allocation2 + $0x18] sm:$0xff]
        %v1909 = vld [vmem:[#allocation2 + $0x20] sm:$0xf]
        %v1910 = vld [vmem:[#allocation2 + $0x24] sm:$0xff]
        %v1911 = vld [vmem:[#allocation2 + $0x2c] sm:$0xf]
        %v1912 = vld [vmem:[#allocation2 + $0x30] sm:$0xff]
        %v1913 = vld [vmem:[#allocation2 + $0x38] sm:$0xf]
        %v1914 = vld [vmem:[#allocation2 + $0x3c] sm:$0xff]
        %v1915 = vld [vmem:[#allocation2 + $0x44] sm:$0xf]
        %v1916 = vld [vmem:[#allocation2 + $0x48] sm:$0xff]
        %v1917 = vld [vmem:[#allocation2 + $0x50] sm:$0xf]
        %v1918 = vld [vmem:[#allocation2 + $0x54] sm:$0xff]
        %v1919 = vld [vmem:[#allocation2 + $0x5c] sm:$0xf]
        %v1920 = vld [vmem:[#allocation2 + $0x78] sm:$0xff]
        %v1921 = vld [vmem:[#allocation2 + $0x80] sm:$0xf]
        %v1922 = vld [vmem:[#allocation2 + $0x84] sm:$0xff]
        %v1923 = vld [vmem:[#allocation2 + $0x8c] sm:$0xf]
        %v1924 = vld [vmem:[#allocation2 + $0x90] sm:$0xff]
        %v1925 = vld [vmem:[#allocation2 + $0x98] sm:$0xf]
        %v1926 = vld [vmem:[#allocation2 + $0x9c] sm:$0xff]
        %v1927 = vld [vmem:[#allocation2 + $0xa4] sm:$0xf]
        %v1928 = vld [vmem:[#allocation2 + $0xa8] sm:$0xff]
        %v1929 = vld [vmem:[#allocation2 + $0xb0] sm:$0xf]
        %v1930 = vld [vmem:[#allocation2 + $0xb4] sm:$0xff]
        %v1931 = vld [vmem:[#allocation2 + $0xbc] sm:$0xf]
        %v1932 = vld [vmem:[#allocation2 + $0xc0] sm:$0xff]
        %v1933 = vld [vmem:[#allocation2 + $0xc8] sm:$0xf]
        %v1934 = vld [vmem:[#allocation2 + $0xcc] sm:$0xff]
        %v1935 = vld [vmem:[#allocation2 + $0xd4] sm:$0xf]
        %v1936 = vld [vmem:[#allocation8] sm:$0xf]
        %v1937 = vld [vmem:[#allocation8 + $0x4] sm:$0xf]
        %v1938 = vld [vmem:[#allocation8 + $0x8] sm:$0xf]
        %v1939 = vld [vmem:[#allocation8 + $0xc] sm:$0xf]
        %v1940 = vld [vmem:[#allocation8 + $0x10] sm:$0xf]
        %v1941 = vld [vmem:[#allocation8 + $0x14] sm:$0xf]
        %v1942 = vld [vmem:[#allocation8 + $0x18] sm:$0xf]
        %v1943 = vld [vmem:[#allocation8 + $0x1c] sm:$0xf]
        %v1944 = vld [vmem:[#allocation8 + $0x20] sm:$0xf]
        %v1945 = vld [vmem:[#allocation8 + $0x24] sm:$0xf]
        %v1946 = vld [vmem:[#allocation8 + $0x28] sm:$0xf]
        %v1947 = vld [vmem:[#allocation8 + $0x2c] sm:$0xf]
        %v1948 = vld [vmem:[#allocation8 + $0x30] sm:$0xf]
        %v1949 = vld [vmem:[#allocation8 + $0x34] sm:$0xf]
        %v1950 = vld [vmem:[#allocation8 + $0x38] sm:$0xf]
        %v1951 = vld [vmem:[#allocation8 + $0x3c] sm:$0xf]
        %v1952 = vld [vmem:[#allocation8 + $0x40] sm:$0xf]
        %v1953 = vld [vmem:[#allocation8 + $0x44] sm:$0xf]
        %v1954 = vld [vmem:[#allocation8 + $0x48] sm:$0xf]
        %v1955 = vld [vmem:[#allocation8 + $0x4c] sm:$0xf]
        %v1956 = vld [vmem:[#allocation8 + $0x50] sm:$0xf]
        %v1957 = vld [vmem:[#allocation8 + $0x54] sm:$0xf]
        %v1958 = vld [vmem:[#allocation8 + $0x58] sm:$0xf]
        %v1959 = vld [vmem:[#allocation8 + $0x5c] sm:$0xf]
        %v1960 = vld [vmem:[#allocation8 + $0x60] sm:$0xf]
        %v1961 = vld [vmem:[#allocation8 + $0x64] sm:$0xf]
        %v1962 = vld [vmem:[#allocation8 + $0x68] sm:$0xf]
        %v1963 = vld [vmem:[#allocation8 + $0x6c] sm:$0xf]
        %v1964 = vld [vmem:[#allocation8 + $0x70] sm:$0xf]
        %v1965 = vld [vmem:[#allocation8 + $0x74] sm:$0xf]
        %v1966 = vld [vmem:[#allocation8 + $0x78] sm:$0xf]
        %v1967 = vld [vmem:[#allocation8 + $0x7c] sm:$0xf]
        %v1968 = vld [vmem:[#allocation8 + $0x80] sm:$0xf]
        %v1969 = vld [vmem:[#allocation8 + $0x84] sm:$0xf]
        %v1970 = vld [vmem:[#allocation8 + $0x88] sm:$0xf]
        %v1971 = vld [vmem:[#allocation8 + $0x8c] sm:$0xf]
        %v1972 = vld [vmem:[#allocation8 + $0x90] sm:$0xf]
        %v1973 = vld [vmem:[#allocation8 + $0x94] sm:$0xf]
        %v1974 = vld [vmem:[#allocation8 + $0x98] sm:$0xf]
        %v1975 = vld [vmem:[#allocation8 + $0x9c] sm:$0xf]
        %v1976 = vld [vmem:[#allocation8 + $0xa0] sm:$0xf]
        %v1977 = vld [vmem:[#allocation8 + $0xa4] sm:$0xf]
        %v1978 = vld [vmem:[#allocation8 + $0xa8] sm:$0xf]
        %v1979 = vld [vmem:[#allocation8 + $0xac] sm:$0xf]
        %v1980 = vld [vmem:[#allocation8 + $0xb0] sm:$0xf]
        %v1981 = vld [vmem:[#allocation8 + $0xb4] sm:$0xf]
        %v1982 = vld [vmem:[#allocation8 + $0xb8] sm:$0xf]
        %v1983 = vld [vmem:[#allocation8 + $0xbc] sm:$0xf]
        %v1984 = vld [vmem:[%s1862] sm:$0xff]
        %v1985 = vld [vmem:[%s1862 + $0x8] sm:$0xf]
        %v1986 = vld [vmem:[%s1862 + $0xc] sm:$0xff]
        %v1987 = vld [vmem:[%s1862 + $0x14] sm:$0xf]
        %v1988 = vld [vmem:[%s1862 + $0x18] sm:$0xff]
        %v1989 = vld [vmem:[%s1862 + $0x20] sm:$0xf]
        %v1990 = vld [vmem:[%s1862 + $0x24] sm:$0xff]
        %v1991 = vld [vmem:[%s1862 + $0x2c] sm:$0xf]
        %v1992 = vld [vmem:[%s1862 + $0x30] sm:$0xff]
        %v1993 = vld [vmem:[%s1862 + $0x38] sm:$0xf]
        %v1994 = vld [vmem:[%s1862 + $0x3c] sm:$0xff]
        %v1995 = vld [vmem:[%s1862 + $0x44] sm:$0xf]
        %v1996 = vld [vmem:[%s1862 + $0x48] sm:$0xff]
        %v1997 = vld [vmem:[%s1862 + $0x50] sm:$0xf]
        %v1998 = vld [vmem:[%s1862 + $0x54] sm:$0xff]
        %v1999 = vld [vmem:[%s1862 + $0x5c] sm:$0xf]
        %v2000 = vld [vmem:[%s1862 + $0x78] sm:$0xff]
        %v2001 = vld [vmem:[%s1862 + $0x80] sm:$0xf]
        %v2002 = vld [vmem:[%s1862 + $0x84] sm:$0xff]
        %v2003 = vld [vmem:[%s1862 + $0x8c] sm:$0xf]
        %v2004 = vld [vmem:[%s1862 + $0x90] sm:$0xff]
        %v2005 = vld [vmem:[%s1862 + $0x98] sm:$0xf]
        %v2006 = vld [vmem:[%s1862 + $0x9c] sm:$0xff]
        %v2007 = vld [vmem:[%s1862 + $0xa4] sm:$0xf]
        %v2008 = vld [vmem:[%s1862 + $0xa8] sm:$0xff]
        %v2009 = vld [vmem:[%s1862 + $0xb0] sm:$0xf]
        %v2010 = vld [vmem:[%s1862 + $0xb4] sm:$0xff]
        %v2011 = vld [vmem:[%s1862 + $0xbc] sm:$0xf]
        %v2012 = vld [vmem:[%s1862 + $0xc0] sm:$0xff]
        %v2013 = vld [vmem:[%s1862 + $0xc8] sm:$0xf]
        %v2014 = vld [vmem:[%s1862 + $0xcc] sm:$0xff]
        %v2015 = vld [vmem:[%s1862 + $0xd4] sm:$0xf]
        %s2016 = scalar_lea.vmem [#allocation8], 192
        %v2017 = vld [vmem:[%s2016] sm:$0xf]
        %v2018 = vld [vmem:[%s2016 + $0x4] sm:$0xf]
        %v2019 = vld [vmem:[%s2016 + $0x8] sm:$0xf]
        %v2020 = vld [vmem:[%s2016 + $0xc] sm:$0xf]
        %v2021 = vld [vmem:[%s2016 + $0x10] sm:$0xf]
        %v2022 = vld [vmem:[%s2016 + $0x14] sm:$0xf]
        %v2023 = vld [vmem:[%s2016 + $0x18] sm:$0xf]
        %v2024 = vld [vmem:[%s2016 + $0x1c] sm:$0xf]
        %v2025 = vld [vmem:[%s2016 + $0x20] sm:$0xf]
        %v2026 = vld [vmem:[%s2016 + $0x24] sm:$0xf]
        %v2027 = vld [vmem:[%s2016 + $0x28] sm:$0xf]
        %v2028 = vld [vmem:[%s2016 + $0x2c] sm:$0xf]
        %v2029 = vld [vmem:[%s2016 + $0x30] sm:$0xf]
        %v2030 = vld [vmem:[%s2016 + $0x34] sm:$0xf]
        %v2031 = vld [vmem:[%s2016 + $0x38] sm:$0xf]
        %v2032 = vld [vmem:[%s2016 + $0x3c] sm:$0xf]
        %v2033 = vld [vmem:[%s2016 + $0x40] sm:$0xf]
        %v2034 = vld [vmem:[%s2016 + $0x44] sm:$0xf]
        %v2035 = vld [vmem:[%s2016 + $0x48] sm:$0xf]
        %v2036 = vld [vmem:[%s2016 + $0x4c] sm:$0xf]
        %v2037 = vld [vmem:[%s2016 + $0x50] sm:$0xf]
        %v2038 = vld [vmem:[%s2016 + $0x54] sm:$0xf]
        %v2039 = vld [vmem:[%s2016 + $0x58] sm:$0xf]
        %v2040 = vld [vmem:[%s2016 + $0x5c] sm:$0xf]
        %v2041 = vld [vmem:[%s2016 + $0x60] sm:$0xf]
        %v2042 = vld [vmem:[%s2016 + $0x64] sm:$0xf]
        %v2043 = vld [vmem:[%s2016 + $0x68] sm:$0xf]
        %v2044 = vld [vmem:[%s2016 + $0x6c] sm:$0xf]
        %v2045 = vld [vmem:[%s2016 + $0x70] sm:$0xf]
        %v2046 = vld [vmem:[%s2016 + $0x74] sm:$0xf]
        %v2047 = vld [vmem:[%s2016 + $0x78] sm:$0xf]
        %v2048 = vld [vmem:[%s2016 + $0x7c] sm:$0xf]
        %v2049 = vld [vmem:[%s2016 + $0x80] sm:$0xf]
        %v2050 = vld [vmem:[%s2016 + $0x84] sm:$0xf]
        %v2051 = vld [vmem:[%s2016 + $0x88] sm:$0xf]
        %v2052 = vld [vmem:[%s2016 + $0x8c] sm:$0xf]
        %v2053 = vld [vmem:[%s2016 + $0x90] sm:$0xf]
        %v2054 = vld [vmem:[%s2016 + $0x94] sm:$0xf]
        %v2055 = vld [vmem:[%s2016 + $0x98] sm:$0xf]
        %v2056 = vld [vmem:[%s2016 + $0x9c] sm:$0xf]
        %v2057 = vld [vmem:[%s2016 + $0xa0] sm:$0xf]
        %v2058 = vld [vmem:[%s2016 + $0xa4] sm:$0xf]
        %v2059 = vld [vmem:[%s2016 + $0xa8] sm:$0xf]
        %v2060 = vld [vmem:[%s2016 + $0xac] sm:$0xf]
        %v2061 = vld [vmem:[%s2016 + $0xb0] sm:$0xf]
        %v2062 = vld [vmem:[%s2016 + $0xb4] sm:$0xf]
        %v2063 = vld [vmem:[%s2016 + $0xb8] sm:$0xf]
        %v2064 = vld [vmem:[%s2016 + $0xbc] sm:$0xf]
        %v2097 = vunpack.c.l.b16 %v1984
        %v2098 = vunpack.c.h.b16 %v1984
        %v2099 = vunpack.c.l.b16 %v1985
        %v2100 = vunpack.c.l.b16 %v1986
        %v2101 = vunpack.c.h.b16 %v1986
        %v2102 = vunpack.c.l.b16 %v1987
        %v2103 = vunpack.c.l.b16 %v1988
        %v2104 = vunpack.c.h.b16 %v1988
        %v2105 = vunpack.c.l.b16 %v1989
        %v2106 = vunpack.c.l.b16 %v1990
        %v2107 = vunpack.c.h.b16 %v1990
        %v2108 = vunpack.c.l.b16 %v1991
        %v2109 = vunpack.c.l.b16 %v1992
        %v2110 = vunpack.c.h.b16 %v1992
        %v2111 = vunpack.c.l.b16 %v1993
        %v2112 = vunpack.c.l.b16 %v1994
        %v2113 = vunpack.c.h.b16 %v1994
        %v2114 = vunpack.c.l.b16 %v1995
        %v2115 = vunpack.c.l.b16 %v1996
        %v2116 = vunpack.c.h.b16 %v1996
        %v2117 = vunpack.c.l.b16 %v1997
        %v2118 = vunpack.c.l.b16 %v1998
        %v2119 = vunpack.c.h.b16 %v1998
        %v2120 = vunpack.c.l.b16 %v1999
        %v2121 = vunpack.c.l.b16 %v2000
        %v2122 = vunpack.c.h.b16 %v2000
        %v2123 = vunpack.c.l.b16 %v2001
        %v2124 = vunpack.c.l.b16 %v2002
        %v2125 = vunpack.c.h.b16 %v2002
        %v2126 = vunpack.c.l.b16 %v2003
        %v2127 = vunpack.c.l.b16 %v2004
        %v2128 = vunpack.c.h.b16 %v2004
        %v2129 = vunpack.c.l.b16 %v2005
        %v2130 = vunpack.c.l.b16 %v2006
        %v2131 = vunpack.c.h.b16 %v2006
        %v2132 = vunpack.c.l.b16 %v2007
        %v2133 = vunpack.c.l.b16 %v2008
        %v2134 = vunpack.c.h.b16 %v2008
        %v2135 = vunpack.c.l.b16 %v2009
        %v2136 = vunpack.c.l.b16 %v2010
        %v2137 = vunpack.c.h.b16 %v2010
        %v2138 = vunpack.c.l.b16 %v2011
        %v2139 = vunpack.c.l.b16 %v2012
        %v2140 = vunpack.c.h.b16 %v2012
        %v2141 = vunpack.c.l.b16 %v2013
        %v2142 = vunpack.c.l.b16 %v2014
        %v2143 = vunpack.c.h.b16 %v2014
        %v2144 = vunpack.c.l.b16 %v2015
        %v2145 = vpack.c.b16 %v2100, %v2097
        %v2146 = vpack.c.b16 %v2101, %v2098
        %v2147 = vpack.c.b16 %v2102, %v2099
        %v2148 = vpack.c.b16 %v2106, %v2103
        %v2149 = vpack.c.b16 %v2107, %v2104
        %v2150 = vpack.c.b16 %v2108, %v2105
        %v2151 = vpack.c.b16 %v2112, %v2109
        %v2152 = vpack.c.b16 %v2113, %v2110
        %v2153 = vpack.c.b16 %v2114, %v2111
        %v2154 = vpack.c.b16 %v2118, %v2115
        %v2155 = vpack.c.b16 %v2119, %v2116
        %v2156 = vpack.c.b16 %v2120, %v2117
        %v2157 = vpack.c.b16 %v2124, %v2121
        %v2158 = vpack.c.b16 %v2125, %v2122
        %v2159 = vpack.c.b16 %v2126, %v2123
        %v2160 = vpack.c.b16 %v2130, %v2127
        %v2161 = vpack.c.b16 %v2131, %v2128
        %v2162 = vpack.c.b16 %v2132, %v2129
        %v2163 = vpack.c.b16 %v2136, %v2133
        %v2164 = vpack.c.b16 %v2137, %v2134
        %v2165 = vpack.c.b16 %v2138, %v2135
        %v2166 = vpack.c.b16 %v2142, %v2139
        %v2167 = vpack.c.b16 %v2143, %v2140
        %v2168 = vpack.c.b16 %v2144, %v2141
        %v2241 = vunpack.c.l.b16 %v2017
        %v2242 = vunpack.c.l.b16 %v2018
        %v2243 = vunpack.c.l.b16 %v2019
        %v2244 = vunpack.c.l.b16 %v2020
        %v2245 = vunpack.c.l.b16 %v2021
        %v2246 = vunpack.c.l.b16 %v2022
        %v2247 = vunpack.c.l.b16 %v2023
        %v2248 = vunpack.c.l.b16 %v2024
        %v2249 = vunpack.c.l.b16 %v2025
        %v2250 = vunpack.c.l.b16 %v2026
        %v2251 = vunpack.c.l.b16 %v2027
        %v2252 = vunpack.c.l.b16 %v2028
        %v2253 = vunpack.c.l.b16 %v2029
        %v2254 = vunpack.c.l.b16 %v2030
        %v2255 = vunpack.c.l.b16 %v2031
        %v2256 = vunpack.c.l.b16 %v2032
        %v2257 = vunpack.c.l.b16 %v2033
        %v2258 = vunpack.c.l.b16 %v2034
        %v2259 = vunpack.c.l.b16 %v2035
        %v2260 = vunpack.c.l.b16 %v2036
        %v2261 = vunpack.c.l.b16 %v2037
        %v2262 = vunpack.c.l.b16 %v2038
        %v2263 = vunpack.c.l.b16 %v2039
        %v2264 = vunpack.c.l.b16 %v2040
        %v2265 = vunpack.c.l.b16 %v2041
        %v2266 = vunpack.c.l.b16 %v2042
        %v2267 = vunpack.c.l.b16 %v2043
        %v2268 = vunpack.c.l.b16 %v2044
        %v2269 = vunpack.c.l.b16 %v2045
        %v2270 = vunpack.c.l.b16 %v2046
        %v2271 = vunpack.c.l.b16 %v2047
        %v2272 = vunpack.c.l.b16 %v2048
        %v2273 = vunpack.c.l.b16 %v2049
        %v2274 = vunpack.c.l.b16 %v2050
        %v2275 = vunpack.c.l.b16 %v2051
        %v2276 = vunpack.c.l.b16 %v2052
        %v2277 = vunpack.c.l.b16 %v2053
        %v2278 = vunpack.c.l.b16 %v2054
        %v2279 = vunpack.c.l.b16 %v2055
        %v2280 = vunpack.c.l.b16 %v2056
        %v2281 = vunpack.c.l.b16 %v2057
        %v2282 = vunpack.c.l.b16 %v2058
        %v2283 = vunpack.c.l.b16 %v2059
        %v2284 = vunpack.c.l.b16 %v2060
        %v2285 = vunpack.c.l.b16 %v2061
        %v2286 = vunpack.c.l.b16 %v2062
        %v2287 = vunpack.c.l.b16 %v2063
        %v2288 = vunpack.c.l.b16 %v2064
        %v2289 = vpack.c.b16 %v2242, %v2241
        %v2290 = vpack.c.b16 %v2244, %v2243
        %v2291 = vpack.c.b16 %v2246, %v2245
        %v2292 = vpack.c.b16 %v2248, %v2247
        %v2293 = vpack.c.b16 %v2250, %v2249
        %v2294 = vpack.c.b16 %v2252, %v2251
        %v2295 = vpack.c.b16 %v2254, %v2253
        %v2296 = vpack.c.b16 %v2256, %v2255
        %v2297 = vpack.c.b16 %v2258, %v2257
        %v2298 = vpack.c.b16 %v2260, %v2259
        %v2299 = vpack.c.b16 %v2262, %v2261
        %v2300 = vpack.c.b16 %v2264, %v2263
        %v2301 = vpack.c.b16 %v2266, %v2265
        %v2302 = vpack.c.b16 %v2268, %v2267
        %v2303 = vpack.c.b16 %v2270, %v2269
        %v2304 = vpack.c.b16 %v2272, %v2271
        %v2305 = vpack.c.b16 %v2274, %v2273
        %v2306 = vpack.c.b16 %v2276, %v2275
        %v2307 = vpack.c.b16 %v2278, %v2277
        %v2308 = vpack.c.b16 %v2280, %v2279
        %v2309 = vpack.c.b16 %v2282, %v2281
        %v2310 = vpack.c.b16 %v2284, %v2283
        %v2311 = vpack.c.b16 %v2286, %v2285
        %v2312 = vpack.c.b16 %v2288, %v2287
        %2337 = vmatprep.subr.bf16.mxu0 0
        %2338 = vmatpush1.bf16.msra.mxu0 %v2296
        %2339 = vmatprep.subr.bf16.mxu0 0
        %2340 = vmatpush1.bf16.msra.mxu0 %v2295
        %2341 = vmatprep.subr.bf16.mxu0 0
        %2342 = vmatpush1.bf16.msra.mxu0 %v2294
        %2343 = vmatprep.subr.bf16.mxu0 0
        %2344 = vmatpush1.bf16.msra.mxu0 %v2293
        %2345 = vmatprep.subr.bf16.mxu0 0
        %2346 = vmatpush1.bf16.msra.mxu0 %v2292
        %2347 = vmatprep.subr.bf16.mxu0 0
        %2348 = vmatpush1.bf16.msra.mxu0 %v2291
        %2349 = vmatprep.subr.bf16.mxu0 0
        %2350 = vmatpush1.bf16.msra.mxu0 %v2290
        %2351 = vmatprep.subr.bf16.mxu0 0
        %2352 = vmatpush1.bf16.msra.mxu0 %v2289
        %2353 = vmatprep.subr.bf16.mxu0 0
        %2354 = vmatpush2.bf16.msra.mxu0 %v2304
        %2355 = vmatprep.subr.bf16.mxu0 0
        %2356 = vmatpush2.bf16.msra.mxu0 %v2303
        %2357 = vmatprep.subr.bf16.mxu0 0
        %2358 = vmatpush2.bf16.msra.mxu0 %v2302
        %2359 = vmatprep.subr.bf16.mxu0 0
        %2360 = vmatpush2.bf16.msra.mxu0 %v2301
        %2361 = vmatprep.subr.bf16.mxu0 0
        %2362 = vmatpush2.bf16.msra.mxu0 %v2300
        %2363 = vmatprep.subr.bf16.mxu0 0
        %2364 = vmatpush2.bf16.msra.mxu0 %v2299
        %2365 = vmatprep.subr.bf16.mxu0 0
        %2366 = vmatpush2.bf16.msra.mxu0 %v2298
        %2367 = vmatprep.subr.bf16.mxu0 0
        %2368 = vmatpush2.bf16.msra.mxu0 %v2297
        %2369 = vmatprep.mubr.bf16.mxu0 %v2146
        %2370 = vmatmul.mubr.bf16.gmra.mxu0 %v2145
        %v2371 = vpop.f32.mrf.mxu0
        %v2372 = vadd.f32 0.0, %v2371
        %v2373 = vpop.f32.mrf.mxu0
        %v2374 = vpop.f32.mrf.mxu0
        %v2375 = vadd.f32 0.0, %v2374
        %v2376 = vpop.f32.mrf.mxu0
        %2377 = vmatprep.mubr.bf16.mxu0 %v2149
        %2378 = vmatmul.mubr.bf16.gmra.mxu0 %v2148
        %v2379 = vpop.f32.mrf.mxu0
        %v2380 = vadd.f32 0.0, %v2379
        %v2381 = vpop.f32.mrf.mxu0
        %v2382 = vpop.f32.mrf.mxu0
        %v2383 = vadd.f32 0.0, %v2382
        %v2384 = vpop.f32.mrf.mxu0
        %2385 = vmatprep.mubr.bf16.mxu0 %v2152
        %2386 = vmatmul.mubr.bf16.gmra.mxu0 %v2151
        %v2387 = vpop.f32.mrf.mxu0
        %v2388 = vadd.f32 0.0, %v2387
        %v2389 = vpop.f32.mrf.mxu0
        %v2390 = vpop.f32.mrf.mxu0
        %v2391 = vadd.f32 0.0, %v2390
        %v2392 = vpop.f32.mrf.mxu0
        %2393 = vmatprep.mubr.bf16.mxu0 %v2155
        %2394 = vmatmul.mubr.bf16.gmra.mxu0 %v2154
        %v2395 = vpop.f32.mrf.mxu0
        %v2396 = vadd.f32 0.0, %v2395
        %v2397 = vpop.f32.mrf.mxu0
        %v2398 = vpop.f32.mrf.mxu0
        %v2399 = vadd.f32 0.0, %v2398
        %v2400 = vpop.f32.mrf.mxu0
        %2401 = vmatprep.mubr.bf16.mxu0 %v2158
        %2402 = vmatmul.mubr.bf16.gmra.mxu0 %v2157
        %v2403 = vpop.f32.mrf.mxu0
        %v2404 = vadd.f32 0.0, %v2403
        %v2405 = vpop.f32.mrf.mxu0
        %v2406 = vpop.f32.mrf.mxu0
        %v2407 = vadd.f32 0.0, %v2406
        %v2408 = vpop.f32.mrf.mxu0
        %2409 = vmatprep.mubr.bf16.mxu0 %v2161
        %2410 = vmatmul.mubr.bf16.gmra.mxu0 %v2160
        %v2411 = vpop.f32.mrf.mxu0
        %v2412 = vadd.f32 0.0, %v2411
        %v2413 = vpop.f32.mrf.mxu0
        %v2414 = vpop.f32.mrf.mxu0
        %v2415 = vadd.f32 0.0, %v2414
        %v2416 = vpop.f32.mrf.mxu0
        %2417 = vmatprep.mubr.bf16.mxu0 %v2164
        %2418 = vmatmul.mubr.bf16.gmra.mxu0 %v2163
        %v2419 = vpop.f32.mrf.mxu0
        %v2420 = vadd.f32 0.0, %v2419
        %v2421 = vpop.f32.mrf.mxu0
        %v2422 = vpop.f32.mrf.mxu0
        %v2423 = vadd.f32 0.0, %v2422
        %v2424 = vpop.f32.mrf.mxu0
        %2425 = vmatprep.mubr.bf16.mxu0 %v2167
        %2426 = vmatmul.mubr.bf16.gmra.mxu0 %v2166
        %v2427 = vpop.f32.mrf.mxu0
        %v2428 = vadd.f32 0.0, %v2427
        %v2429 = vpop.f32.mrf.mxu0
        %v2430 = vpop.f32.mrf.mxu0
        %v2431 = vadd.f32 0.0, %v2430
        %v2432 = vpop.f32.mrf.mxu0
        %2433 = vdwg.mxu0
        %2434 = vmatprep.subr.bf16.mxu0 0
        %2435 = vmatpush1.bf16.msra.mxu0 %v2312
        %2436 = vmatprep.subr.bf16.mxu0 0
        %2437 = vmatpush1.bf16.msra.mxu0 %v2311
        %2438 = vmatprep.subr.bf16.mxu0 0
        %2439 = vmatpush1.bf16.msra.mxu0 %v2310
        %2440 = vmatprep.subr.bf16.mxu0 0
        %2441 = vmatpush1.bf16.msra.mxu0 %v2309
        %2442 = vmatprep.subr.bf16.mxu0 0
        %2443 = vmatpush1.bf16.msra.mxu0 %v2308
        %2444 = vmatprep.subr.bf16.mxu0 0
        %2445 = vmatpush1.bf16.msra.mxu0 %v2307
        %2446 = vmatprep.subr.bf16.mxu0 0
        %2447 = vmatpush1.bf16.msra.mxu0 %v2306
        %2448 = vmatprep.subr.bf16.mxu0 0
        %2449 = vmatpush1.bf16.msra.mxu0 %v2305
        %2450 = vmatprep.subr.bf16.mxu0 0
        %2451 = vmatpush2.bf16.msra.mxu0 0
        %2452 = vmatprep.subr.bf16.mxu0 0
        %2453 = vmatpush2.bf16.msra.mxu0 0
        %2454 = vmatprep.subr.bf16.mxu0 0
        %2455 = vmatpush2.bf16.msra.mxu0 0
        %2456 = vmatprep.subr.bf16.mxu0 0
        %2457 = vmatpush2.bf16.msra.mxu0 0
        %2458 = vmatprep.subr.bf16.mxu0 0
        %2459 = vmatpush2.bf16.msra.mxu0 0
        %2460 = vmatprep.subr.bf16.mxu0 0
        %2461 = vmatpush2.bf16.msra.mxu0 0
        %2462 = vmatprep.subr.bf16.mxu0 0
        %2463 = vmatpush2.bf16.msra.mxu0 0
        %2464 = vmatprep.subr.bf16.mxu0 0
        %2465 = vmatpush2.bf16.msra.mxu0 0
        %2466 = vmatprep.mubr.bf16.mxu0 0
        %2467 = vmatmul.mubr.bf16.gmra.mxu0 %v2147
        %v2468 = vpop.f32.mrf.mxu0
        %v2469 = vadd.f32 %v2372, %v2468
        %v2470 = vpop.f32.mrf.mxu0
        %v2471 = vpop.f32.mrf.mxu0
        %v2472 = vadd.f32 %v2375, %v2471
        %v2473 = vpop.f32.mrf.mxu0
        %2474 = vmatprep.mubr.bf16.mxu0 0
        %2475 = vmatmul.mubr.bf16.gmra.mxu0 %v2150
        %v2476 = vpop.f32.mrf.mxu0
        %v2477 = vadd.f32 %v2380, %v2476
        %v2478 = vpop.f32.mrf.mxu0
        %v2479 = vpop.f32.mrf.mxu0
        %v2480 = vadd.f32 %v2383, %v2479
        %v2481 = vpop.f32.mrf.mxu0
        %2482 = vmatprep.mubr.bf16.mxu0 0
        %2483 = vmatmul.mubr.bf16.gmra.mxu0 %v2153
        %v2484 = vpop.f32.mrf.mxu0
        %v2485 = vadd.f32 %v2388, %v2484
        %v2486 = vpop.f32.mrf.mxu0
        %v2487 = vpop.f32.mrf.mxu0
        %v2488 = vadd.f32 %v2391, %v2487
        %v2489 = vpop.f32.mrf.mxu0
        %2490 = vmatprep.mubr.bf16.mxu0 0
        %2491 = vmatmul.mubr.bf16.gmra.mxu0 %v2156
        %v2492 = vpop.f32.mrf.mxu0
        %v2493 = vadd.f32 %v2396, %v2492
        %v2494 = vpop.f32.mrf.mxu0
        %v2495 = vpop.f32.mrf.mxu0
        %v2496 = vadd.f32 %v2399, %v2495
        %v2497 = vpop.f32.mrf.mxu0
        %2498 = vmatprep.mubr.bf16.mxu0 0
        %2499 = vmatmul.mubr.bf16.gmra.mxu0 %v2159
        %v2500 = vpop.f32.mrf.mxu0
        %v2501 = vadd.f32 %v2404, %v2500
        %v2502 = vpop.f32.mrf.mxu0
        %v2503 = vpop.f32.mrf.mxu0
        %v2504 = vadd.f32 %v2407, %v2503
        %v2505 = vpop.f32.mrf.mxu0
        %2506 = vmatprep.mubr.bf16.mxu0 0
        %2507 = vmatmul.mubr.bf16.gmra.mxu0 %v2162
        %v2508 = vpop.f32.mrf.mxu0
        %v2509 = vadd.f32 %v2412, %v2508
        %v2510 = vpop.f32.mrf.mxu0
        %v2511 = vpop.f32.mrf.mxu0
        %v2512 = vadd.f32 %v2415, %v2511
        %v2513 = vpop.f32.mrf.mxu0
        %2514 = vmatprep.mubr.bf16.mxu0 0
        %2515 = vmatmul.mubr.bf16.gmra.mxu0 %v2165
        %v2516 = vpop.f32.mrf.mxu0
        %v2517 = vadd.f32 %v2420, %v2516
        %v2518 = vpop.f32.mrf.mxu0
        %v2519 = vpop.f32.mrf.mxu0
        %v2520 = vadd.f32 %v2423, %v2519
        %v2521 = vpop.f32.mrf.mxu0
        %2522 = vmatprep.mubr.bf16.mxu0 0
        %2523 = vmatmul.mubr.bf16.gmra.mxu0 %v2168
        %v2524 = vpop.f32.mrf.mxu0
        %v2525 = vadd.f32 %v2428, %v2524
        %v2526 = vpop.f32.mrf.mxu0
        %v2527 = vpop.f32.mrf.mxu0
        %v2528 = vadd.f32 %v2431, %v2527
        %v2529 = vpop.f32.mrf.mxu0
        %2530 = vdwg.mxu0
        %v2563 = vunpack.c.l.b16 %v1904
        %v2564 = vunpack.c.h.b16 %v1904
        %v2565 = vunpack.c.l.b16 %v1905
        %v2566 = vunpack.c.l.b16 %v1906
        %v2567 = vunpack.c.h.b16 %v1906
        %v2568 = vunpack.c.l.b16 %v1907
        %v2569 = vunpack.c.l.b16 %v1908
        %v2570 = vunpack.c.h.b16 %v1908
        %v2571 = vunpack.c.l.b16 %v1909
        %v2572 = vunpack.c.l.b16 %v1910
        %v2573 = vunpack.c.h.b16 %v1910
        %v2574 = vunpack.c.l.b16 %v1911
        %v2575 = vunpack.c.l.b16 %v1912
        %v2576 = vunpack.c.h.b16 %v1912
        %v2577 = vunpack.c.l.b16 %v1913
        %v2578 = vunpack.c.l.b16 %v1914
        %v2579 = vunpack.c.h.b16 %v1914
        %v2580 = vunpack.c.l.b16 %v1915
        %v2581 = vunpack.c.l.b16 %v1916
        %v2582 = vunpack.c.h.b16 %v1916
        %v2583 = vunpack.c.l.b16 %v1917
        %v2584 = vunpack.c.l.b16 %v1918
        %v2585 = vunpack.c.h.b16 %v1918
        %v2586 = vunpack.c.l.b16 %v1919
        %v2587 = vunpack.c.l.b16 %v1920
        %v2588 = vunpack.c.h.b16 %v1920
        %v2589 = vunpack.c.l.b16 %v1921
        %v2590 = vunpack.c.l.b16 %v1922
        %v2591 = vunpack.c.h.b16 %v1922
        %v2592 = vunpack.c.l.b16 %v1923
        %v2593 = vunpack.c.l.b16 %v1924
        %v2594 = vunpack.c.h.b16 %v1924
        %v2595 = vunpack.c.l.b16 %v1925
        %v2596 = vunpack.c.l.b16 %v1926
        %v2597 = vunpack.c.h.b16 %v1926
        %v2598 = vunpack.c.l.b16 %v1927
        %v2599 = vunpack.c.l.b16 %v1928
        %v2600 = vunpack.c.h.b16 %v1928
        %v2601 = vunpack.c.l.b16 %v1929
        %v2602 = vunpack.c.l.b16 %v1930
        %v2603 = vunpack.c.h.b16 %v1930
        %v2604 = vunpack.c.l.b16 %v1931
        %v2605 = vunpack.c.l.b16 %v1932
        %v2606 = vunpack.c.h.b16 %v1932
        %v2607 = vunpack.c.l.b16 %v1933
        %v2608 = vunpack.c.l.b16 %v1934
        %v2609 = vunpack.c.h.b16 %v1934
        %v2610 = vunpack.c.l.b16 %v1935
        %v2611 = vpack.c.b16 %v2566, %v2563
        %v2612 = vpack.c.b16 %v2567, %v2564
        %v2613 = vpack.c.b16 %v2568, %v2565
        %v2614 = vpack.c.b16 %v2572, %v2569
        %v2615 = vpack.c.b16 %v2573, %v2570
        %v2616 = vpack.c.b16 %v2574, %v2571
        %v2617 = vpack.c.b16 %v2578, %v2575
        %v2618 = vpack.c.b16 %v2579, %v2576
        %v2619 = vpack.c.b16 %v2580, %v2577
        %v2620 = vpack.c.b16 %v2584, %v2581
        %v2621 = vpack.c.b16 %v2585, %v2582
        %v2622 = vpack.c.b16 %v2586, %v2583
        %v2623 = vpack.c.b16 %v2590, %v2587
        %v2624 = vpack.c.b16 %v2591, %v2588
        %v2625 = vpack.c.b16 %v2592, %v2589
        %v2626 = vpack.c.b16 %v2596, %v2593
        %v2627 = vpack.c.b16 %v2597, %v2594
        %v2628 = vpack.c.b16 %v2598, %v2595
        %v2629 = vpack.c.b16 %v2602, %v2599
        %v2630 = vpack.c.b16 %v2603, %v2600
        %v2631 = vpack.c.b16 %v2604, %v2601
        %v2632 = vpack.c.b16 %v2608, %v2605
        %v2633 = vpack.c.b16 %v2609, %v2606
        %v2634 = vpack.c.b16 %v2610, %v2607
        %v2707 = vunpack.c.l.b16 %v1936
        %v2708 = vunpack.c.l.b16 %v1937
        %v2709 = vunpack.c.l.b16 %v1938
        %v2710 = vunpack.c.l.b16 %v1939
        %v2711 = vunpack.c.l.b16 %v1940
        %v2712 = vunpack.c.l.b16 %v1941
        %v2713 = vunpack.c.l.b16 %v1942
        %v2714 = vunpack.c.l.b16 %v1943
        %v2715 = vunpack.c.l.b16 %v1944
        %v2716 = vunpack.c.l.b16 %v1945
        %v2717 = vunpack.c.l.b16 %v1946
        %v2718 = vunpack.c.l.b16 %v1947
        %v2719 = vunpack.c.l.b16 %v1948
        %v2720 = vunpack.c.l.b16 %v1949
        %v2721 = vunpack.c.l.b16 %v1950
        %v2722 = vunpack.c.l.b16 %v1951
        %v2723 = vunpack.c.l.b16 %v1952
        %v2724 = vunpack.c.l.b16 %v1953
        %v2725 = vunpack.c.l.b16 %v1954
        %v2726 = vunpack.c.l.b16 %v1955
        %v2727 = vunpack.c.l.b16 %v1956
        %v2728 = vunpack.c.l.b16 %v1957
        %v2729 = vunpack.c.l.b16 %v1958
        %v2730 = vunpack.c.l.b16 %v1959
        %v2731 = vunpack.c.l.b16 %v1960
        %v2732 = vunpack.c.l.b16 %v1961
        %v2733 = vunpack.c.l.b16 %v1962
        %v2734 = vunpack.c.l.b16 %v1963
        %v2735 = vunpack.c.l.b16 %v1964
        %v2736 = vunpack.c.l.b16 %v1965
        %v2737 = vunpack.c.l.b16 %v1966
        %v2738 = vunpack.c.l.b16 %v1967
        %v2739 = vunpack.c.l.b16 %v1968
        %v2740 = vunpack.c.l.b16 %v1969
        %v2741 = vunpack.c.l.b16 %v1970
        %v2742 = vunpack.c.l.b16 %v1971
        %v2743 = vunpack.c.l.b16 %v1972
        %v2744 = vunpack.c.l.b16 %v1973
        %v2745 = vunpack.c.l.b16 %v1974
        %v2746 = vunpack.c.l.b16 %v1975
        %v2747 = vunpack.c.l.b16 %v1976
        %v2748 = vunpack.c.l.b16 %v1977
        %v2749 = vunpack.c.l.b16 %v1978
        %v2750 = vunpack.c.l.b16 %v1979
        %v2751 = vunpack.c.l.b16 %v1980
        %v2752 = vunpack.c.l.b16 %v1981
        %v2753 = vunpack.c.l.b16 %v1982
        %v2754 = vunpack.c.l.b16 %v1983
        %v2755 = vpack.c.b16 %v2708, %v2707
        %v2756 = vpack.c.b16 %v2710, %v2709
        %v2757 = vpack.c.b16 %v2712, %v2711
        %v2758 = vpack.c.b16 %v2714, %v2713
        %v2759 = vpack.c.b16 %v2716, %v2715
        %v2760 = vpack.c.b16 %v2718, %v2717
        %v2761 = vpack.c.b16 %v2720, %v2719
        %v2762 = vpack.c.b16 %v2722, %v2721
        %v2763 = vpack.c.b16 %v2724, %v2723
        %v2764 = vpack.c.b16 %v2726, %v2725
        %v2765 = vpack.c.b16 %v2728, %v2727
        %v2766 = vpack.c.b16 %v2730, %v2729
        %v2767 = vpack.c.b16 %v2732, %v2731
        %v2768 = vpack.c.b16 %v2734, %v2733
        %v2769 = vpack.c.b16 %v2736, %v2735
        %v2770 = vpack.c.b16 %v2738, %v2737
        %v2771 = vpack.c.b16 %v2740, %v2739
        %v2772 = vpack.c.b16 %v2742, %v2741
        %v2773 = vpack.c.b16 %v2744, %v2743
        %v2774 = vpack.c.b16 %v2746, %v2745
        %v2775 = vpack.c.b16 %v2748, %v2747
        %v2776 = vpack.c.b16 %v2750, %v2749
        %v2777 = vpack.c.b16 %v2752, %v2751
        %v2778 = vpack.c.b16 %v2754, %v2753
        %2803 = vmatprep.subr.bf16.mxu0 0
        %2804 = vmatpush1.bf16.msra.mxu0 %v2762
        %2805 = vmatprep.subr.bf16.mxu0 0
        %2806 = vmatpush1.bf16.msra.mxu0 %v2761
        %2807 = vmatprep.subr.bf16.mxu0 0
        %2808 = vmatpush1.bf16.msra.mxu0 %v2760
        %2809 = vmatprep.subr.bf16.mxu0 0
        %2810 = vmatpush1.bf16.msra.mxu0 %v2759
        %2811 = vmatprep.subr.bf16.mxu0 0
        %2812 = vmatpush1.bf16.msra.mxu0 %v2758
        %2813 = vmatprep.subr.bf16.mxu0 0
        %2814 = vmatpush1.bf16.msra.mxu0 %v2757
        %2815 = vmatprep.subr.bf16.mxu0 0
        %2816 = vmatpush1.bf16.msra.mxu0 %v2756
        %2817 = vmatprep.subr.bf16.mxu0 0
        %2818 = vmatpush1.bf16.msra.mxu0 %v2755
        %2819 = vmatprep.subr.bf16.mxu0 0
        %2820 = vmatpush2.bf16.msra.mxu0 %v2770
        %2821 = vmatprep.subr.bf16.mxu0 0
        %2822 = vmatpush2.bf16.msra.mxu0 %v2769
        %2823 = vmatprep.subr.bf16.mxu0 0
        %2824 = vmatpush2.bf16.msra.mxu0 %v2768
        %2825 = vmatprep.subr.bf16.mxu0 0
        %2826 = vmatpush2.bf16.msra.mxu0 %v2767
        %2827 = vmatprep.subr.bf16.mxu0 0
        %2828 = vmatpush2.bf16.msra.mxu0 %v2766
        %2829 = vmatprep.subr.bf16.mxu0 0
        %2830 = vmatpush2.bf16.msra.mxu0 %v2765
        %2831 = vmatprep.subr.bf16.mxu0 0
        %2832 = vmatpush2.bf16.msra.mxu0 %v2764
        %2833 = vmatprep.subr.bf16.mxu0 0
        %2834 = vmatpush2.bf16.msra.mxu0 %v2763
        %2835 = vmatprep.mubr.bf16.mxu0 %v2612
        %2836 = vmatmul.mubr.bf16.gmra.mxu0 %v2611
        %v2837 = vpop.f32.mrf.mxu0
        %v2838 = vadd.f32 %v2469, %v2837
        %v2839 = vpop.f32.mrf.mxu0
        %v2840 = vpop.f32.mrf.mxu0
        %v2841 = vadd.f32 %v2472, %v2840
        %v2842 = vpop.f32.mrf.mxu0
        %2843 = vmatprep.mubr.bf16.mxu0 %v2615
        %2844 = vmatmul.mubr.bf16.gmra.mxu0 %v2614
        %v2845 = vpop.f32.mrf.mxu0
        %v2846 = vadd.f32 %v2477, %v2845
        %v2847 = vpop.f32.mrf.mxu0
        %v2848 = vpop.f32.mrf.mxu0
        %v2849 = vadd.f32 %v2480, %v2848
        %v2850 = vpop.f32.mrf.mxu0
        %2851 = vmatprep.mubr.bf16.mxu0 %v2618
        %2852 = vmatmul.mubr.bf16.gmra.mxu0 %v2617
        %v2853 = vpop.f32.mrf.mxu0
        %v2854 = vadd.f32 %v2485, %v2853
        %v2855 = vpop.f32.mrf.mxu0
        %v2856 = vpop.f32.mrf.mxu0
        %v2857 = vadd.f32 %v2488, %v2856
        %v2858 = vpop.f32.mrf.mxu0
        %2859 = vmatprep.mubr.bf16.mxu0 %v2621
        %2860 = vmatmul.mubr.bf16.gmra.mxu0 %v2620
        %v2861 = vpop.f32.mrf.mxu0
        %v2862 = vadd.f32 %v2493, %v2861
        %v2863 = vpop.f32.mrf.mxu0
        %v2864 = vpop.f32.mrf.mxu0
        %v2865 = vadd.f32 %v2496, %v2864
        %v2866 = vpop.f32.mrf.mxu0
        %2867 = vmatprep.mubr.bf16.mxu0 %v2624
        %2868 = vmatmul.mubr.bf16.gmra.mxu0 %v2623
        %v2869 = vpop.f32.mrf.mxu0
        %v2870 = vadd.f32 %v2501, %v2869
        %v2871 = vpop.f32.mrf.mxu0
        %v2872 = vpop.f32.mrf.mxu0
        %v2873 = vadd.f32 %v2504, %v2872
        %v2874 = vpop.f32.mrf.mxu0
        %2875 = vmatprep.mubr.bf16.mxu0 %v2627
        %2876 = vmatmul.mubr.bf16.gmra.mxu0 %v2626
        %v2877 = vpop.f32.mrf.mxu0
        %v2878 = vadd.f32 %v2509, %v2877
        %v2879 = vpop.f32.mrf.mxu0
        %v2880 = vpop.f32.mrf.mxu0
        %v2881 = vadd.f32 %v2512, %v2880
        %v2882 = vpop.f32.mrf.mxu0
        %2883 = vmatprep.mubr.bf16.mxu0 %v2630
        %2884 = vmatmul.mubr.bf16.gmra.mxu0 %v2629
        %v2885 = vpop.f32.mrf.mxu0
        %v2886 = vadd.f32 %v2517, %v2885
        %v2887 = vpop.f32.mrf.mxu0
        %v2888 = vpop.f32.mrf.mxu0
        %v2889 = vadd.f32 %v2520, %v2888
        %v2890 = vpop.f32.mrf.mxu0
        %2891 = vmatprep.mubr.bf16.mxu0 %v2633
        %2892 = vmatmul.mubr.bf16.gmra.mxu0 %v2632
        %v2893 = vpop.f32.mrf.mxu0
        %v2894 = vadd.f32 %v2525, %v2893
        %v2895 = vpop.f32.mrf.mxu0
        %v2896 = vpop.f32.mrf.mxu0
        %v2897 = vadd.f32 %v2528, %v2896
        %v2898 = vpop.f32.mrf.mxu0
        %2899 = vdwg.mxu0
        %2900 = vmatprep.subr.bf16.mxu0 0
        %2901 = vmatpush1.bf16.msra.mxu0 %v2778
        %2902 = vmatprep.subr.bf16.mxu0 0
        %2903 = vmatpush1.bf16.msra.mxu0 %v2777
        %2904 = vmatprep.subr.bf16.mxu0 0
        %2905 = vmatpush1.bf16.msra.mxu0 %v2776
        %2906 = vmatprep.subr.bf16.mxu0 0
        %2907 = vmatpush1.bf16.msra.mxu0 %v2775
        %2908 = vmatprep.subr.bf16.mxu0 0
        %2909 = vmatpush1.bf16.msra.mxu0 %v2774
        %2910 = vmatprep.subr.bf16.mxu0 0
        %2911 = vmatpush1.bf16.msra.mxu0 %v2773
        %2912 = vmatprep.subr.bf16.mxu0 0
        %2913 = vmatpush1.bf16.msra.mxu0 %v2772
        %2914 = vmatprep.subr.bf16.mxu0 0
        %2915 = vmatpush1.bf16.msra.mxu0 %v2771
        %2916 = vmatprep.subr.bf16.mxu0 0
        %2917 = vmatpush2.bf16.msra.mxu0 0
        %2918 = vmatprep.subr.bf16.mxu0 0
        %2919 = vmatpush2.bf16.msra.mxu0 0
        %2920 = vmatprep.subr.bf16.mxu0 0
        %2921 = vmatpush2.bf16.msra.mxu0 0
        %2922 = vmatprep.subr.bf16.mxu0 0
        %2923 = vmatpush2.bf16.msra.mxu0 0
        %2924 = vmatprep.subr.bf16.mxu0 0
        %2925 = vmatpush2.bf16.msra.mxu0 0
        %2926 = vmatprep.subr.bf16.mxu0 0
        %2927 = vmatpush2.bf16.msra.mxu0 0
        %2928 = vmatprep.subr.bf16.mxu0 0
        %2929 = vmatpush2.bf16.msra.mxu0 0
        %2930 = vmatprep.subr.bf16.mxu0 0
        %2931 = vmatpush2.bf16.msra.mxu0 0
        %2932 = vmatprep.mubr.bf16.mxu0 0
        %2933 = vmatmul.mubr.bf16.gmra.mxu0 %v2613
        %v2934 = vpop.f32.mrf.mxu0
        %v2935 = vadd.f32 %v2838, %v2934
        %v2936 = vpop.f32.mrf.mxu0
        %v2937 = vpop.f32.mrf.mxu0
        %v2938 = vadd.f32 %v2841, %v2937
        %v2939 = vpop.f32.mrf.mxu0
        %2940 = vmatprep.mubr.bf16.mxu0 0
        %2941 = vmatmul.mubr.bf16.gmra.mxu0 %v2616
        %v2942 = vpop.f32.mrf.mxu0
        %v2943 = vadd.f32 %v2846, %v2942
        %v2944 = vpop.f32.mrf.mxu0
        %v2945 = vpop.f32.mrf.mxu0
        %v2946 = vadd.f32 %v2849, %v2945
        %v2947 = vpop.f32.mrf.mxu0
        %2948 = vmatprep.mubr.bf16.mxu0 0
        %2949 = vmatmul.mubr.bf16.gmra.mxu0 %v2619
        %v2950 = vpop.f32.mrf.mxu0
        %v2951 = vadd.f32 %v2854, %v2950
        %v2952 = vpop.f32.mrf.mxu0
        %v2953 = vpop.f32.mrf.mxu0
        %v2954 = vadd.f32 %v2857, %v2953
        %v2955 = vpop.f32.mrf.mxu0
        %2956 = vmatprep.mubr.bf16.mxu0 0
        %2957 = vmatmul.mubr.bf16.gmra.mxu0 %v2622
        %v2958 = vpop.f32.mrf.mxu0
        %v2959 = vadd.f32 %v2862, %v2958
        %v2960 = vpop.f32.mrf.mxu0
        %v2961 = vpop.f32.mrf.mxu0
        %v2962 = vadd.f32 %v2865, %v2961
        %v2963 = vpop.f32.mrf.mxu0
        %2964 = vmatprep.mubr.bf16.mxu0 0
        %2965 = vmatmul.mubr.bf16.gmra.mxu0 %v2625
        %v2966 = vpop.f32.mrf.mxu0
        %v2967 = vadd.f32 %v2870, %v2966
        %v2968 = vpop.f32.mrf.mxu0
        %v2969 = vpop.f32.mrf.mxu0
        %v2970 = vadd.f32 %v2873, %v2969
        %v2971 = vpop.f32.mrf.mxu0
        %2972 = vmatprep.mubr.bf16.mxu0 0
        %2973 = vmatmul.mubr.bf16.gmra.mxu0 %v2628
        %v2974 = vpop.f32.mrf.mxu0
        %v2975 = vadd.f32 %v2878, %v2974
        %v2976 = vpop.f32.mrf.mxu0
        %v2977 = vpop.f32.mrf.mxu0
        %v2978 = vadd.f32 %v2881, %v2977
        %v2979 = vpop.f32.mrf.mxu0
        %2980 = vmatprep.mubr.bf16.mxu0 0
        %2981 = vmatmul.mubr.bf16.gmra.mxu0 %v2631
        %v2982 = vpop.f32.mrf.mxu0
        %v2983 = vadd.f32 %v2886, %v2982
        %v2984 = vpop.f32.mrf.mxu0
        %v2985 = vpop.f32.mrf.mxu0
        %v2986 = vadd.f32 %v2889, %v2985
        %v2987 = vpop.f32.mrf.mxu0
        %2988 = vmatprep.mubr.bf16.mxu0 0
        %2989 = vmatmul.mubr.bf16.gmra.mxu0 %v2634
        %v2990 = vpop.f32.mrf.mxu0
        %v2991 = vadd.f32 %v2894, %v2990
        %v2992 = vpop.f32.mrf.mxu0
        %v2993 = vpop.f32.mrf.mxu0
        %v2994 = vadd.f32 %v2897, %v2993
        %v2995 = vpop.f32.mrf.mxu0
        %2996 = vdwg.mxu0
        %s2997 = scalar_lea.vmem [#allocation2], 24
        %v2998 = vld [vmem:[%s2997] sm:$0xff]
        %v2999 = vld [vmem:[%s2997 + $0x8] sm:$0xf]
        %v3000 = vld [vmem:[%s2997 + $0xc] sm:$0xff]
        %v3001 = vld [vmem:[%s2997 + $0x14] sm:$0xf]
        %v3002 = vld [vmem:[%s2997 + $0x18] sm:$0xff]
        %v3003 = vld [vmem:[%s2997 + $0x20] sm:$0xf]
        %v3004 = vld [vmem:[%s2997 + $0x24] sm:$0xff]
        %v3005 = vld [vmem:[%s2997 + $0x2c] sm:$0xf]
        %v3006 = vld [vmem:[%s2997 + $0x30] sm:$0xff]
        %v3007 = vld [vmem:[%s2997 + $0x38] sm:$0xf]
        %v3008 = vld [vmem:[%s2997 + $0x3c] sm:$0xff]
        %v3009 = vld [vmem:[%s2997 + $0x44] sm:$0xf]
        %v3010 = vld [vmem:[%s2997 + $0x48] sm:$0xff]
        %v3011 = vld [vmem:[%s2997 + $0x50] sm:$0xf]
        %v3012 = vld [vmem:[%s2997 + $0x54] sm:$0xff]
        %v3013 = vld [vmem:[%s2997 + $0x5c] sm:$0xf]
        %v3014 = vld [vmem:[%s2997 + $0x78] sm:$0xff]
        %v3015 = vld [vmem:[%s2997 + $0x80] sm:$0xf]
        %v3016 = vld [vmem:[%s2997 + $0x84] sm:$0xff]
        %v3017 = vld [vmem:[%s2997 + $0x8c] sm:$0xf]
        %v3018 = vld [vmem:[%s2997 + $0x90] sm:$0xff]
        %v3019 = vld [vmem:[%s2997 + $0x98] sm:$0xf]
        %v3020 = vld [vmem:[%s2997 + $0x9c] sm:$0xff]
        %v3021 = vld [vmem:[%s2997 + $0xa4] sm:$0xf]
        %v3022 = vld [vmem:[%s2997 + $0xa8] sm:$0xff]
        %v3023 = vld [vmem:[%s2997 + $0xb0] sm:$0xf]
        %v3024 = vld [vmem:[%s2997 + $0xb4] sm:$0xff]
        %v3025 = vld [vmem:[%s2997 + $0xbc] sm:$0xf]
        %v3026 = vld [vmem:[%s2997 + $0xc0] sm:$0xff]
        %v3027 = vld [vmem:[%s2997 + $0xc8] sm:$0xf]
        %v3028 = vld [vmem:[%s2997 + $0xcc] sm:$0xff]
        %v3029 = vld [vmem:[%s2997 + $0xd4] sm:$0xf]
        %s3030 = scalar_lea.vmem [#allocation8], 384
        %v3031 = vld [vmem:[%s3030] sm:$0xf]
        %v3032 = vld [vmem:[%s3030 + $0x4] sm:$0xf]
        %v3033 = vld [vmem:[%s3030 + $0x8] sm:$0xf]
        %v3034 = vld [vmem:[%s3030 + $0xc] sm:$0xf]
        %v3035 = vld [vmem:[%s3030 + $0x10] sm:$0xf]
        %v3036 = vld [vmem:[%s3030 + $0x14] sm:$0xf]
        %v3037 = vld [vmem:[%s3030 + $0x18] sm:$0xf]
        %v3038 = vld [vmem:[%s3030 + $0x1c] sm:$0xf]
        %v3039 = vld [vmem:[%s3030 + $0x20] sm:$0xf]
        %v3040 = vld [vmem:[%s3030 + $0x24] sm:$0xf]
        %v3041 = vld [vmem:[%s3030 + $0x28] sm:$0xf]
        %v3042 = vld [vmem:[%s3030 + $0x2c] sm:$0xf]
        %v3043 = vld [vmem:[%s3030 + $0x30] sm:$0xf]
        %v3044 = vld [vmem:[%s3030 + $0x34] sm:$0xf]
        %v3045 = vld [vmem:[%s3030 + $0x38] sm:$0xf]
        %v3046 = vld [vmem:[%s3030 + $0x3c] sm:$0xf]
        %v3047 = vld [vmem:[%s3030 + $0x40] sm:$0xf]
        %v3048 = vld [vmem:[%s3030 + $0x44] sm:$0xf]
        %v3049 = vld [vmem:[%s3030 + $0x48] sm:$0xf]
        %v3050 = vld [vmem:[%s3030 + $0x4c] sm:$0xf]
        %v3051 = vld [vmem:[%s3030 + $0x50] sm:$0xf]
        %v3052 = vld [vmem:[%s3030 + $0x54] sm:$0xf]
        %v3053 = vld [vmem:[%s3030 + $0x58] sm:$0xf]
        %v3054 = vld [vmem:[%s3030 + $0x5c] sm:$0xf]
        %v3055 = vld [vmem:[%s3030 + $0x60] sm:$0xf]
        %v3056 = vld [vmem:[%s3030 + $0x64] sm:$0xf]
        %v3057 = vld [vmem:[%s3030 + $0x68] sm:$0xf]
        %v3058 = vld [vmem:[%s3030 + $0x6c] sm:$0xf]
        %v3059 = vld [vmem:[%s3030 + $0x70] sm:$0xf]
        %v3060 = vld [vmem:[%s3030 + $0x74] sm:$0xf]
        %v3061 = vld [vmem:[%s3030 + $0x78] sm:$0xf]
        %v3062 = vld [vmem:[%s3030 + $0x7c] sm:$0xf]
        %v3063 = vld [vmem:[%s3030 + $0x80] sm:$0xf]
        %v3064 = vld [vmem:[%s3030 + $0x84] sm:$0xf]
        %v3065 = vld [vmem:[%s3030 + $0x88] sm:$0xf]
        %v3066 = vld [vmem:[%s3030 + $0x8c] sm:$0xf]
        %v3067 = vld [vmem:[%s3030 + $0x90] sm:$0xf]
        %v3068 = vld [vmem:[%s3030 + $0x94] sm:$0xf]
        %v3069 = vld [vmem:[%s3030 + $0x98] sm:$0xf]
        %v3070 = vld [vmem:[%s3030 + $0x9c] sm:$0xf]
        %v3071 = vld [vmem:[%s3030 + $0xa0] sm:$0xf]
        %v3072 = vld [vmem:[%s3030 + $0xa4] sm:$0xf]
        %v3073 = vld [vmem:[%s3030 + $0xa8] sm:$0xf]
        %v3074 = vld [vmem:[%s3030 + $0xac] sm:$0xf]
        %v3075 = vld [vmem:[%s3030 + $0xb0] sm:$0xf]
        %v3076 = vld [vmem:[%s3030 + $0xb4] sm:$0xf]
        %v3077 = vld [vmem:[%s3030 + $0xb8] sm:$0xf]
        %v3078 = vld [vmem:[%s3030 + $0xbc] sm:$0xf]
        %v3111 = vunpack.c.l.b16 %v2998
        %v3112 = vunpack.c.h.b16 %v2998
        %v3113 = vunpack.c.l.b16 %v2999
        %v3114 = vunpack.c.l.b16 %v3000
        %v3115 = vunpack.c.h.b16 %v3000
        %v3116 = vunpack.c.l.b16 %v3001
        %v3117 = vunpack.c.l.b16 %v3002
        %v3118 = vunpack.c.h.b16 %v3002
        %v3119 = vunpack.c.l.b16 %v3003
        %v3120 = vunpack.c.l.b16 %v3004
        %v3121 = vunpack.c.h.b16 %v3004
        %v3122 = vunpack.c.l.b16 %v3005
        %v3123 = vunpack.c.l.b16 %v3006
        %v3124 = vunpack.c.h.b16 %v3006
        %v3125 = vunpack.c.l.b16 %v3007
        %v3126 = vunpack.c.l.b16 %v3008
        %v3127 = vunpack.c.h.b16 %v3008
        %v3128 = vunpack.c.l.b16 %v3009
        %v3129 = vunpack.c.l.b16 %v3010
        %v3130 = vunpack.c.h.b16 %v3010
        %v3131 = vunpack.c.l.b16 %v3011
        %v3132 = vunpack.c.l.b16 %v3012
        %v3133 = vunpack.c.h.b16 %v3012
        %v3134 = vunpack.c.l.b16 %v3013
        %v3135 = vunpack.c.l.b16 %v3014
        %v3136 = vunpack.c.h.b16 %v3014
        %v3137 = vunpack.c.l.b16 %v3015
        %v3138 = vunpack.c.l.b16 %v3016
        %v3139 = vunpack.c.h.b16 %v3016
        %v3140 = vunpack.c.l.b16 %v3017
        %v3141 = vunpack.c.l.b16 %v3018
        %v3142 = vunpack.c.h.b16 %v3018
        %v3143 = vunpack.c.l.b16 %v3019
        %v3144 = vunpack.c.l.b16 %v3020
        %v3145 = vunpack.c.h.b16 %v3020
        %v3146 = vunpack.c.l.b16 %v3021
        %v3147 = vunpack.c.l.b16 %v3022
        %v3148 = vunpack.c.h.b16 %v3022
        %v3149 = vunpack.c.l.b16 %v3023
        %v3150 = vunpack.c.l.b16 %v3024
        %v3151 = vunpack.c.h.b16 %v3024
        %v3152 = vunpack.c.l.b16 %v3025
        %v3153 = vunpack.c.l.b16 %v3026
        %v3154 = vunpack.c.h.b16 %v3026
        %v3155 = vunpack.c.l.b16 %v3027
        %v3156 = vunpack.c.l.b16 %v3028
        %v3157 = vunpack.c.h.b16 %v3028
        %v3158 = vunpack.c.l.b16 %v3029
        %v3159 = vpack.c.b16 %v3114, %v3111
        %v3160 = vpack.c.b16 %v3115, %v3112
        %v3161 = vpack.c.b16 %v3116, %v3113
        %v3162 = vpack.c.b16 %v3120, %v3117
        %v3163 = vpack.c.b16 %v3121, %v3118
        %v3164 = vpack.c.b16 %v3122, %v3119
        %v3165 = vpack.c.b16 %v3126, %v3123
        %v3166 = vpack.c.b16 %v3127, %v3124
        %v3167 = vpack.c.b16 %v3128, %v3125
        %v3168 = vpack.c.b16 %v3132, %v3129
        %v3169 = vpack.c.b16 %v3133, %v3130
        %v3170 = vpack.c.b16 %v3134, %v3131
        %v3171 = vpack.c.b16 %v3138, %v3135
        %v3172 = vpack.c.b16 %v3139, %v3136
        %v3173 = vpack.c.b16 %v3140, %v3137
        %v3174 = vpack.c.b16 %v3144, %v3141
        %v3175 = vpack.c.b16 %v3145, %v3142
        %v3176 = vpack.c.b16 %v3146, %v3143
        %v3177 = vpack.c.b16 %v3150, %v3147
        %v3178 = vpack.c.b16 %v3151, %v3148
        %v3179 = vpack.c.b16 %v3152, %v3149
        %v3180 = vpack.c.b16 %v3156, %v3153
        %v3181 = vpack.c.b16 %v3157, %v3154
        %v3182 = vpack.c.b16 %v3158, %v3155
        %v3255 = vunpack.c.l.b16 %v3031
        %v3256 = vunpack.c.l.b16 %v3032
        %v3257 = vunpack.c.l.b16 %v3033
        %v3258 = vunpack.c.l.b16 %v3034
        %v3259 = vunpack.c.l.b16 %v3035
        %v3260 = vunpack.c.l.b16 %v3036
        %v3261 = vunpack.c.l.b16 %v3037
        %v3262 = vunpack.c.l.b16 %v3038
        %v3263 = vunpack.c.l.b16 %v3039
        %v3264 = vunpack.c.l.b16 %v3040
        %v3265 = vunpack.c.l.b16 %v3041
        %v3266 = vunpack.c.l.b16 %v3042
        %v3267 = vunpack.c.l.b16 %v3043
        %v3268 = vunpack.c.l.b16 %v3044
        %v3269 = vunpack.c.l.b16 %v3045
        %v3270 = vunpack.c.l.b16 %v3046
        %v3271 = vunpack.c.l.b16 %v3047
        %v3272 = vunpack.c.l.b16 %v3048
        %v3273 = vunpack.c.l.b16 %v3049
        %v3274 = vunpack.c.l.b16 %v3050
        %v3275 = vunpack.c.l.b16 %v3051
        %v3276 = vunpack.c.l.b16 %v3052
        %v3277 = vunpack.c.l.b16 %v3053
        %v3278 = vunpack.c.l.b16 %v3054
        %v3279 = vunpack.c.l.b16 %v3055
        %v3280 = vunpack.c.l.b16 %v3056
        %v3281 = vunpack.c.l.b16 %v3057
        %v3282 = vunpack.c.l.b16 %v3058
        %v3283 = vunpack.c.l.b16 %v3059
        %v3284 = vunpack.c.l.b16 %v3060
        %v3285 = vunpack.c.l.b16 %v3061
        %v3286 = vunpack.c.l.b16 %v3062
        %v3287 = vunpack.c.l.b16 %v3063
        %v3288 = vunpack.c.l.b16 %v3064
        %v3289 = vunpack.c.l.b16 %v3065
        %v3290 = vunpack.c.l.b16 %v3066
        %v3291 = vunpack.c.l.b16 %v3067
        %v3292 = vunpack.c.l.b16 %v3068
        %v3293 = vunpack.c.l.b16 %v3069
        %v3294 = vunpack.c.l.b16 %v3070
        %v3295 = vunpack.c.l.b16 %v3071
        %v3296 = vunpack.c.l.b16 %v3072
        %v3297 = vunpack.c.l.b16 %v3073
        %v3298 = vunpack.c.l.b16 %v3074
        %v3299 = vunpack.c.l.b16 %v3075
        %v3300 = vunpack.c.l.b16 %v3076
        %v3301 = vunpack.c.l.b16 %v3077
        %v3302 = vunpack.c.l.b16 %v3078
        %v3303 = vpack.c.b16 %v3256, %v3255
        %v3304 = vpack.c.b16 %v3258, %v3257
        %v3305 = vpack.c.b16 %v3260, %v3259
        %v3306 = vpack.c.b16 %v3262, %v3261
        %v3307 = vpack.c.b16 %v3264, %v3263
        %v3308 = vpack.c.b16 %v3266, %v3265
        %v3309 = vpack.c.b16 %v3268, %v3267
        %v3310 = vpack.c.b16 %v3270, %v3269
        %v3311 = vpack.c.b16 %v3272, %v3271
        %v3312 = vpack.c.b16 %v3274, %v3273
        %v3313 = vpack.c.b16 %v3276, %v3275
        %v3314 = vpack.c.b16 %v3278, %v3277
        %v3315 = vpack.c.b16 %v3280, %v3279
        %v3316 = vpack.c.b16 %v3282, %v3281
        %v3317 = vpack.c.b16 %v3284, %v3283
        %v3318 = vpack.c.b16 %v3286, %v3285
        %v3319 = vpack.c.b16 %v3288, %v3287
        %v3320 = vpack.c.b16 %v3290, %v3289
        %v3321 = vpack.c.b16 %v3292, %v3291
        %v3322 = vpack.c.b16 %v3294, %v3293
        %v3323 = vpack.c.b16 %v3296, %v3295
        %v3324 = vpack.c.b16 %v3298, %v3297
        %v3325 = vpack.c.b16 %v3300, %v3299
        %v3326 = vpack.c.b16 %v3302, %v3301
        %3351 = vmatprep.subr.bf16.mxu0 0
        %3352 = vmatpush1.bf16.msra.mxu0 %v3310
        %3353 = vmatprep.subr.bf16.mxu0 0
        %3354 = vmatpush1.bf16.msra.mxu0 %v3309
        %3355 = vmatprep.subr.bf16.mxu0 0
        %3356 = vmatpush1.bf16.msra.mxu0 %v3308
        %3357 = vmatprep.subr.bf16.mxu0 0
        %3358 = vmatpush1.bf16.msra.mxu0 %v3307
        %3359 = vmatprep.subr.bf16.mxu0 0
        %3360 = vmatpush1.bf16.msra.mxu0 %v3306
        %3361 = vmatprep.subr.bf16.mxu0 0
        %3362 = vmatpush1.bf16.msra.mxu0 %v3305
        %3363 = vmatprep.subr.bf16.mxu0 0
        %3364 = vmatpush1.bf16.msra.mxu0 %v3304
        %3365 = vmatprep.subr.bf16.mxu0 0
        %3366 = vmatpush1.bf16.msra.mxu0 %v3303
        %3367 = vmatprep.subr.bf16.mxu0 0
        %3368 = vmatpush2.bf16.msra.mxu0 %v3318
        %3369 = vmatprep.subr.bf16.mxu0 0
        %3370 = vmatpush2.bf16.msra.mxu0 %v3317
        %3371 = vmatprep.subr.bf16.mxu0 0
        %3372 = vmatpush2.bf16.msra.mxu0 %v3316
        %3373 = vmatprep.subr.bf16.mxu0 0
        %3374 = vmatpush2.bf16.msra.mxu0 %v3315
        %3375 = vmatprep.subr.bf16.mxu0 0
        %3376 = vmatpush2.bf16.msra.mxu0 %v3314
        %3377 = vmatprep.subr.bf16.mxu0 0
        %3378 = vmatpush2.bf16.msra.mxu0 %v3313
        %3379 = vmatprep.subr.bf16.mxu0 0
        %3380 = vmatpush2.bf16.msra.mxu0 %v3312
        %3381 = vmatprep.subr.bf16.mxu0 0
        %3382 = vmatpush2.bf16.msra.mxu0 %v3311
        %3383 = vmatprep.mubr.bf16.mxu0 %v3160
        %3384 = vmatmul.mubr.bf16.gmra.mxu0 %v3159
        %v3385 = vpop.f32.mrf.mxu0
        %v3386 = vadd.f32 0.0, %v3385
        %v3387 = vpop.f32.mrf.mxu0
        %v3388 = vpop.f32.mrf.mxu0
        %v3389 = vadd.f32 0.0, %v3388
        %v3390 = vpop.f32.mrf.mxu0
        %3391 = vmatprep.mubr.bf16.mxu0 %v3163
        %3392 = vmatmul.mubr.bf16.gmra.mxu0 %v3162
        %v3393 = vpop.f32.mrf.mxu0
        %v3394 = vadd.f32 0.0, %v3393
        %v3395 = vpop.f32.mrf.mxu0
        %v3396 = vpop.f32.mrf.mxu0
        %v3397 = vadd.f32 0.0, %v3396
        %v3398 = vpop.f32.mrf.mxu0
        %3399 = vmatprep.mubr.bf16.mxu0 %v3166
        %3400 = vmatmul.mubr.bf16.gmra.mxu0 %v3165
        %v3401 = vpop.f32.mrf.mxu0
        %v3402 = vadd.f32 0.0, %v3401
        %v3403 = vpop.f32.mrf.mxu0
        %v3404 = vpop.f32.mrf.mxu0
        %v3405 = vadd.f32 0.0, %v3404
        %v3406 = vpop.f32.mrf.mxu0
        %3407 = vmatprep.mubr.bf16.mxu0 %v3169
        %3408 = vmatmul.mubr.bf16.gmra.mxu0 %v3168
        %v3409 = vpop.f32.mrf.mxu0
        %v3410 = vadd.f32 0.0, %v3409
        %v3411 = vpop.f32.mrf.mxu0
        %v3412 = vpop.f32.mrf.mxu0
        %v3413 = vadd.f32 0.0, %v3412
        %v3414 = vpop.f32.mrf.mxu0
        %3415 = vmatprep.mubr.bf16.mxu0 %v3172
        %3416 = vmatmul.mubr.bf16.gmra.mxu0 %v3171
        %v3417 = vpop.f32.mrf.mxu0
        %v3418 = vadd.f32 0.0, %v3417
        %v3419 = vpop.f32.mrf.mxu0
        %v3420 = vpop.f32.mrf.mxu0
        %v3421 = vadd.f32 0.0, %v3420
        %v3422 = vpop.f32.mrf.mxu0
        %3423 = vmatprep.mubr.bf16.mxu0 %v3175
        %3424 = vmatmul.mubr.bf16.gmra.mxu0 %v3174
        %v3425 = vpop.f32.mrf.mxu0
        %v3426 = vadd.f32 0.0, %v3425
        %v3427 = vpop.f32.mrf.mxu0
        %v3428 = vpop.f32.mrf.mxu0
        %v3429 = vadd.f32 0.0, %v3428
        %v3430 = vpop.f32.mrf.mxu0
        %3431 = vmatprep.mubr.bf16.mxu0 %v3178
        %3432 = vmatmul.mubr.bf16.gmra.mxu0 %v3177
        %v3433 = vpop.f32.mrf.mxu0
        %v3434 = vadd.f32 0.0, %v3433
        %v3435 = vpop.f32.mrf.mxu0
        %v3436 = vpop.f32.mrf.mxu0
        %v3437 = vadd.f32 0.0, %v3436
        %v3438 = vpop.f32.mrf.mxu0
        %3439 = vmatprep.mubr.bf16.mxu0 %v3181
        %3440 = vmatmul.mubr.bf16.gmra.mxu0 %v3180
        %v3441 = vpop.f32.mrf.mxu0
        %v3442 = vadd.f32 0.0, %v3441
        %v3443 = vpop.f32.mrf.mxu0
        %v3444 = vpop.f32.mrf.mxu0
        %v3445 = vadd.f32 0.0, %v3444
        %v3446 = vpop.f32.mrf.mxu0
        %3447 = vdwg.mxu0
        %3448 = vmatprep.subr.bf16.mxu0 0
        %3449 = vmatpush1.bf16.msra.mxu0 %v3326
        %3450 = vmatprep.subr.bf16.mxu0 0
        %3451 = vmatpush1.bf16.msra.mxu0 %v3325
        %3452 = vmatprep.subr.bf16.mxu0 0
        %3453 = vmatpush1.bf16.msra.mxu0 %v3324
        %3454 = vmatprep.subr.bf16.mxu0 0
        %3455 = vmatpush1.bf16.msra.mxu0 %v3323
        %3456 = vmatprep.subr.bf16.mxu0 0
        %3457 = vmatpush1.bf16.msra.mxu0 %v3322
        %3458 = vmatprep.subr.bf16.mxu0 0
        %3459 = vmatpush1.bf16.msra.mxu0 %v3321
        %3460 = vmatprep.subr.bf16.mxu0 0
        %3461 = vmatpush1.bf16.msra.mxu0 %v3320
        %3462 = vmatprep.subr.bf16.mxu0 0
        %3463 = vmatpush1.bf16.msra.mxu0 %v3319
        %3464 = vmatprep.subr.bf16.mxu0 0
        %3465 = vmatpush2.bf16.msra.mxu0 0
        %3466 = vmatprep.subr.bf16.mxu0 0
        %3467 = vmatpush2.bf16.msra.mxu0 0
        %3468 = vmatprep.subr.bf16.mxu0 0
        %3469 = vmatpush2.bf16.msra.mxu0 0
        %3470 = vmatprep.subr.bf16.mxu0 0
        %3471 = vmatpush2.bf16.msra.mxu0 0
        %3472 = vmatprep.subr.bf16.mxu0 0
        %3473 = vmatpush2.bf16.msra.mxu0 0
        %3474 = vmatprep.subr.bf16.mxu0 0
        %3475 = vmatpush2.bf16.msra.mxu0 0
        %3476 = vmatprep.subr.bf16.mxu0 0
        %3477 = vmatpush2.bf16.msra.mxu0 0
        %3478 = vmatprep.subr.bf16.mxu0 0
        %3479 = vmatpush2.bf16.msra.mxu0 0
        %3480 = vmatprep.mubr.bf16.mxu0 0
        %3481 = vmatmul.mubr.bf16.gmra.mxu0 %v3161
        %v3482 = vpop.f32.mrf.mxu0
        %v3483 = vadd.f32 %v3386, %v3482
        %v3484 = vpop.f32.mrf.mxu0
        %v3485 = vpop.f32.mrf.mxu0
        %v3486 = vadd.f32 %v3389, %v3485
        %v3487 = vpop.f32.mrf.mxu0
        %3488 = vmatprep.mubr.bf16.mxu0 0
        %3489 = vmatmul.mubr.bf16.gmra.mxu0 %v3164
        %v3490 = vpop.f32.mrf.mxu0
        %v3491 = vadd.f32 %v3394, %v3490
        %v3492 = vpop.f32.mrf.mxu0
        %v3493 = vpop.f32.mrf.mxu0
        %v3494 = vadd.f32 %v3397, %v3493
        %v3495 = vpop.f32.mrf.mxu0
        %3496 = vmatprep.mubr.bf16.mxu0 0
        %3497 = vmatmul.mubr.bf16.gmra.mxu0 %v3167
        %v3498 = vpop.f32.mrf.mxu0
        %v3499 = vadd.f32 %v3402, %v3498
        %v3500 = vpop.f32.mrf.mxu0
        %v3501 = vpop.f32.mrf.mxu0
        %v3502 = vadd.f32 %v3405, %v3501
        %v3503 = vpop.f32.mrf.mxu0
        %3504 = vmatprep.mubr.bf16.mxu0 0
        %3505 = vmatmul.mubr.bf16.gmra.mxu0 %v3170
        %v3506 = vpop.f32.mrf.mxu0
        %v3507 = vadd.f32 %v3410, %v3506
        %v3508 = vpop.f32.mrf.mxu0
        %v3509 = vpop.f32.mrf.mxu0
        %v3510 = vadd.f32 %v3413, %v3509
        %v3511 = vpop.f32.mrf.mxu0
        %3512 = vmatprep.mubr.bf16.mxu0 0
        %3513 = vmatmul.mubr.bf16.gmra.mxu0 %v3173
        %v3514 = vpop.f32.mrf.mxu0
        %v3515 = vadd.f32 %v3418, %v3514
        %v3516 = vpop.f32.mrf.mxu0
        %v3517 = vpop.f32.mrf.mxu0
        %v3518 = vadd.f32 %v3421, %v3517
        %v3519 = vpop.f32.mrf.mxu0
        %3520 = vmatprep.mubr.bf16.mxu0 0
        %3521 = vmatmul.mubr.bf16.gmra.mxu0 %v3176
        %v3522 = vpop.f32.mrf.mxu0
        %v3523 = vadd.f32 %v3426, %v3522
        %v3524 = vpop.f32.mrf.mxu0
        %v3525 = vpop.f32.mrf.mxu0
        %v3526 = vadd.f32 %v3429, %v3525
        %v3527 = vpop.f32.mrf.mxu0
        %3528 = vmatprep.mubr.bf16.mxu0 0
        %3529 = vmatmul.mubr.bf16.gmra.mxu0 %v3179
        %v3530 = vpop.f32.mrf.mxu0
        %v3531 = vadd.f32 %v3434, %v3530
        %v3532 = vpop.f32.mrf.mxu0
        %v3533 = vpop.f32.mrf.mxu0
        %v3534 = vadd.f32 %v3437, %v3533
        %v3535 = vpop.f32.mrf.mxu0
        %3536 = vmatprep.mubr.bf16.mxu0 0
        %3537 = vmatmul.mubr.bf16.gmra.mxu0 %v3182
        %v3538 = vpop.f32.mrf.mxu0
        %v3539 = vadd.f32 %v3442, %v3538
        %v3540 = vpop.f32.mrf.mxu0
        %v3541 = vpop.f32.mrf.mxu0
        %v3542 = vadd.f32 %v3445, %v3541
        %v3543 = vpop.f32.mrf.mxu0
        %3544 = vdwg.mxu0
        %v3545 = vadd.f32 %v2935, %v3483
        %v3546 = vadd.f32 %v2938, %v3486
        %v3547 = vadd.f32 %v2943, %v3491
        %v3548 = vadd.f32 %v2946, %v3494
        %v3549 = vadd.f32 %v2951, %v3499
        %v3550 = vadd.f32 %v2954, %v3502
        %v3551 = vadd.f32 %v2959, %v3507
        %v3552 = vadd.f32 %v2962, %v3510
        %v3553 = vadd.f32 %v2967, %v3515
        %v3554 = vadd.f32 %v2970, %v3518
        %v3555 = vadd.f32 %v2975, %v3523
        %v3556 = vadd.f32 %v2978, %v3526
        %v3557 = vadd.f32 %v2983, %v3531
        %v3558 = vadd.f32 %v2986, %v3534
        %v3559 = vadd.f32 %v2991, %v3539
        %v3560 = vadd.f32 %v2994, %v3542
        %v3561 = vld [vmem:[#allocation9] sm:$0x1]
        %v3563 = vlaneseq
        %v3564 = vshrl.u32 %v3563, 7
        %v3565 = vsub.s32 0, %v3564
        %v3566 = vrot.slane %v3561, %v3565
        %v3568 = vadd.f32 %v3545, %v3566
        %v3569 = vadd.f32 %v3546, %v3566
        %v3570 = vadd.f32 %v3547, %v3566
        %v3571 = vadd.f32 %v3548, %v3566
        %v3572 = vadd.f32 %v3549, %v3566
        %v3573 = vadd.f32 %v3550, %v3566
        %v3574 = vadd.f32 %v3551, %v3566
        %v3575 = vadd.f32 %v3552, %v3566
        %v3576 = vadd.f32 %v3553, %v3566
        %v3577 = vadd.f32 %v3554, %v3566
        %v3578 = vadd.f32 %v3555, %v3566
        %v3579 = vadd.f32 %v3556, %v3566
        %v3580 = vadd.f32 %v3557, %v3566
        %v3581 = vadd.f32 %v3558, %v3566
        %v3582 = vadd.f32 %v3559, %v3566
        %v3583 = vadd.f32 %v3560, %v3566
        %v3584 = vmax.f32 %v3568, 0.0
        %v3585 = vmax.f32 %v3569, 0.0
        %v3586 = vmax.f32 %v3570, 0.0
        %v3587 = vmax.f32 %v3571, 0.0
        %v3588 = vmax.f32 %v3572, 0.0
        %v3589 = vmax.f32 %v3573, 0.0
        %v3590 = vmax.f32 %v3574, 0.0
        %v3591 = vmax.f32 %v3575, 0.0
        %v3592 = vmax.f32 %v3576, 0.0
        %v3593 = vmax.f32 %v3577, 0.0
        %v3594 = vmax.f32 %v3578, 0.0
        %v3595 = vmax.f32 %v3579, 0.0
        %v3596 = vmax.f32 %v3580, 0.0
        %v3597 = vmax.f32 %v3581, 0.0
        %v3598 = vmax.f32 %v3582, 0.0
        %v3599 = vmax.f32 %v3583, 0.0
        %v3600 = vpack.c.bf16 %v3585, %v3584
        %v3601 = vpack.c.bf16 %v3587, %v3586
        %v3602 = vpack.c.bf16 %v3589, %v3588
        %v3603 = vpack.c.bf16 %v3591, %v3590
        %v3604 = vpack.c.bf16 %v3593, %v3592
        %v3605 = vpack.c.bf16 %v3595, %v3594
        %v3606 = vpack.c.bf16 %v3597, %v3596
        %v3607 = vpack.c.bf16 %v3599, %v3598
        %v3608 = vld [vmem:[#allocation11] sm:$0xff]
        %v3609 = vld [vmem:[#allocation11 + $0x8] sm:$0xff]
        %v3610 = vld [vmem:[#allocation11 + $0x10] sm:$0xff]
        %v3611 = vld [vmem:[#allocation11 + $0x18] sm:$0xff]
        %v3612 = vld [vmem:[#allocation11 + $0x20] sm:$0xff]
        %v3613 = vld [vmem:[#allocation11 + $0x28] sm:$0xff]
        %v3614 = vld [vmem:[#allocation11 + $0x30] sm:$0xff]
        %v3615 = vld [vmem:[#allocation11 + $0x38] sm:$0xff]
        %v3616 = vld [vmem:[#allocation11 + $0x40] sm:$0xff]
        %v3617 = vld [vmem:[#allocation11 + $0x48] sm:$0xff]
        %v3618 = vld [vmem:[#allocation11 + $0x50] sm:$0xff]
        %v3619 = vld [vmem:[#allocation11 + $0x58] sm:$0xff]
        %v3620 = vld [vmem:[#allocation11 + $0x60] sm:$0xff]
        %v3621 = vld [vmem:[#allocation11 + $0x68] sm:$0xff]
        %v3622 = vld [vmem:[#allocation11 + $0x70] sm:$0xff]
        %v3623 = vld [vmem:[#allocation11 + $0x78] sm:$0xff]
        %v3624 = vld [vmem:[#allocation11 + $0x80] sm:$0xff]
        %v3625 = vld [vmem:[#allocation11 + $0x88] sm:$0xff]
        %v3626 = vld [vmem:[#allocation11 + $0x90] sm:$0xff]
        %v3627 = vld [vmem:[#allocation11 + $0x98] sm:$0xff]
        %v3628 = vld [vmem:[#allocation11 + $0xa0] sm:$0xff]
        %v3629 = vld [vmem:[#allocation11 + $0xa8] sm:$0xff]
        %v3630 = vld [vmem:[#allocation11 + $0xb0] sm:$0xff]
        %v3631 = vld [vmem:[#allocation11 + $0xb8] sm:$0xff]
        %v3632 = vld [vmem:[#allocation11 + $0xc0] sm:$0xff]
        %v3633 = vld [vmem:[#allocation11 + $0xc8] sm:$0xff]
        %v3634 = vld [vmem:[#allocation11 + $0xd0] sm:$0xff]
        %v3635 = vld [vmem:[#allocation11 + $0xd8] sm:$0xff]
        %v3636 = vld [vmem:[#allocation11 + $0xe0] sm:$0xff]
        %v3637 = vld [vmem:[#allocation11 + $0xe8] sm:$0xff]
        %v3638 = vld [vmem:[#allocation11 + $0xf0] sm:$0xff]
        %v3639 = vld [vmem:[#allocation11 + $0xf8] sm:$0xff]
        %v3640 = vld [vmem:[%s7] sm:$0xf]
        %v3642 = vlaneseq
        %v3643 = vshrl.u32 %v3642, 7
        %v3644 = vsub.s32 0, %v3643
        %v3645 = vrot.slane %v3640, %v3644
        %v3646 = vlaneseq
        %v3647 = vshrl.u32 %v3646, 7
        %v3648 = vsub.s32 1, %v3647
        %v3649 = vrot.slane %v3640, %v3648
        %v3650 = vlaneseq
        %v3651 = vshrl.u32 %v3650, 7
        %v3652 = vsub.s32 2, %v3651
        %v3653 = vrot.slane %v3640, %v3652
        %v3654 = vlaneseq
        %v3655 = vshrl.u32 %v3654, 7
        %v3656 = vsub.s32 3, %v3655
        %v3657 = vrot.slane %v3640, %v3656
        %v3694 = vunpack.c.l.b16 %v3608
        %v3695 = vunpack.c.h.b16 %v3608
        %v3696 = vunpack.c.l.b16 %v3609
        %v3697 = vunpack.c.h.b16 %v3609
        %v3698 = vunpack.c.l.b16 %v3610
        %v3699 = vunpack.c.h.b16 %v3610
        %v3700 = vunpack.c.l.b16 %v3611
        %v3701 = vunpack.c.h.b16 %v3611
        %v3702 = vunpack.c.l.b16 %v3612
        %v3703 = vunpack.c.h.b16 %v3612
        %v3704 = vunpack.c.l.b16 %v3613
        %v3705 = vunpack.c.h.b16 %v3613
        %v3706 = vunpack.c.l.b16 %v3614
        %v3707 = vunpack.c.h.b16 %v3614
        %v3708 = vunpack.c.l.b16 %v3615
        %v3709 = vunpack.c.h.b16 %v3615
        %v3710 = vunpack.c.l.b16 %v3616
        %v3711 = vunpack.c.h.b16 %v3616
        %v3712 = vunpack.c.l.b16 %v3617
        %v3713 = vunpack.c.h.b16 %v3617
        %v3714 = vunpack.c.l.b16 %v3618
        %v3715 = vunpack.c.h.b16 %v3618
        %v3716 = vunpack.c.l.b16 %v3619
        %v3717 = vunpack.c.h.b16 %v3619
        %v3718 = vunpack.c.l.b16 %v3620
        %v3719 = vunpack.c.h.b16 %v3620
        %v3720 = vunpack.c.l.b16 %v3621
        %v3721 = vunpack.c.h.b16 %v3621
        %v3722 = vunpack.c.l.b16 %v3622
        %v3723 = vunpack.c.h.b16 %v3622
        %v3724 = vunpack.c.l.b16 %v3623
        %v3725 = vunpack.c.h.b16 %v3623
        %v3726 = vunpack.c.l.b16 %v3624
        %v3727 = vunpack.c.h.b16 %v3624
        %v3728 = vunpack.c.l.b16 %v3625
        %v3729 = vunpack.c.h.b16 %v3625
        %v3730 = vunpack.c.l.b16 %v3626
        %v3731 = vunpack.c.h.b16 %v3626
        %v3732 = vunpack.c.l.b16 %v3627
        %v3733 = vunpack.c.h.b16 %v3627
        %v3734 = vunpack.c.l.b16 %v3628
        %v3735 = vunpack.c.h.b16 %v3628
        %v3736 = vunpack.c.l.b16 %v3629
        %v3737 = vunpack.c.h.b16 %v3629
        %v3738 = vunpack.c.l.b16 %v3630
        %v3739 = vunpack.c.h.b16 %v3630
        %v3740 = vunpack.c.l.b16 %v3631
        %v3741 = vunpack.c.h.b16 %v3631
        %v3742 = vunpack.c.l.b16 %v3632
        %v3743 = vunpack.c.h.b16 %v3632
        %v3744 = vunpack.c.l.b16 %v3633
        %v3745 = vunpack.c.h.b16 %v3633
        %v3746 = vunpack.c.l.b16 %v3634
        %v3747 = vunpack.c.h.b16 %v3634
        %v3748 = vunpack.c.l.b16 %v3635
        %v3749 = vunpack.c.h.b16 %v3635
        %v3750 = vunpack.c.l.b16 %v3636
        %v3751 = vunpack.c.h.b16 %v3636
        %v3752 = vunpack.c.l.b16 %v3637
        %v3753 = vunpack.c.h.b16 %v3637
        %v3754 = vunpack.c.l.b16 %v3638
        %v3755 = vunpack.c.h.b16 %v3638
        %v3756 = vunpack.c.l.b16 %v3639
        %v3757 = vunpack.c.h.b16 %v3639
        %v3758 = vpack.c.b16 %v3698, %v3694
        %v3759 = vpack.c.b16 %v3699, %v3695
        %v3760 = vpack.c.b16 %v3700, %v3696
        %v3761 = vpack.c.b16 %v3701, %v3697
        %v3762 = vpack.c.b16 %v3706, %v3702
        %v3763 = vpack.c.b16 %v3707, %v3703
        %v3764 = vpack.c.b16 %v3708, %v3704
        %v3765 = vpack.c.b16 %v3709, %v3705
        %v3766 = vpack.c.b16 %v3714, %v3710
        %v3767 = vpack.c.b16 %v3715, %v3711
        %v3768 = vpack.c.b16 %v3716, %v3712
        %v3769 = vpack.c.b16 %v3717, %v3713
        %v3770 = vpack.c.b16 %v3722, %v3718
        %v3771 = vpack.c.b16 %v3723, %v3719
        %v3772 = vpack.c.b16 %v3724, %v3720
        %v3773 = vpack.c.b16 %v3725, %v3721
        %v3774 = vpack.c.b16 %v3730, %v3726
        %v3775 = vpack.c.b16 %v3731, %v3727
        %v3776 = vpack.c.b16 %v3732, %v3728
        %v3777 = vpack.c.b16 %v3733, %v3729
        %v3778 = vpack.c.b16 %v3738, %v3734
        %v3779 = vpack.c.b16 %v3739, %v3735
        %v3780 = vpack.c.b16 %v3740, %v3736
        %v3781 = vpack.c.b16 %v3741, %v3737
        %v3782 = vpack.c.b16 %v3746, %v3742
        %v3783 = vpack.c.b16 %v3747, %v3743
        %v3784 = vpack.c.b16 %v3748, %v3744
        %v3785 = vpack.c.b16 %v3749, %v3745
        %v3786 = vpack.c.b16 %v3754, %v3750
        %v3787 = vpack.c.b16 %v3755, %v3751
        %v3788 = vpack.c.b16 %v3756, %v3752
        %v3789 = vpack.c.b16 %v3757, %v3753
        %3822 = vmatprep.subr.bf16.mxu0 %v3787
        %3823 = vmatpush1.bf16.msra.mxu0 %v3786
        %3824 = vmatprep.subr.bf16.mxu0 %v3783
        %3825 = vmatpush1.bf16.msra.mxu0 %v3782
        %3826 = vmatprep.subr.bf16.mxu0 %v3779
        %3827 = vmatpush1.bf16.msra.mxu0 %v3778
        %3828 = vmatprep.subr.bf16.mxu0 %v3775
        %3829 = vmatpush1.bf16.msra.mxu0 %v3774
        %3830 = vmatprep.subr.bf16.mxu0 %v3771
        %3831 = vmatpush1.bf16.msra.mxu0 %v3770
        %3832 = vmatprep.subr.bf16.mxu0 %v3767
        %3833 = vmatpush1.bf16.msra.mxu0 %v3766
        %3834 = vmatprep.subr.bf16.mxu0 %v3763
        %3835 = vmatpush1.bf16.msra.mxu0 %v3762
        %3836 = vmatprep.subr.bf16.mxu0 %v3759
        %3837 = vmatpush1.bf16.msra.mxu0 %v3758
        %3838 = vmatprep.subr.bf16.mxu0 0
        %3839 = vmatpush2.bf16.msra.mxu0 0
        %3840 = vmatprep.subr.bf16.mxu0 0
        %3841 = vmatpush2.bf16.msra.mxu0 0
        %3842 = vmatprep.subr.bf16.mxu0 0
        %3843 = vmatpush2.bf16.msra.mxu0 0
        %3844 = vmatprep.subr.bf16.mxu0 0
        %3845 = vmatpush2.bf16.msra.mxu0 0
        %3846 = vmatprep.subr.bf16.mxu0 0
        %3847 = vmatpush2.bf16.msra.mxu0 0
        %3848 = vmatprep.subr.bf16.mxu0 0
        %3849 = vmatpush2.bf16.msra.mxu0 0
        %3850 = vmatprep.subr.bf16.mxu0 0
        %3851 = vmatpush2.bf16.msra.mxu0 0
        %3852 = vmatprep.subr.bf16.mxu0 0
        %3853 = vmatpush2.bf16.msra.mxu0 0
        %3854 = vmatprep.mubr.bf16.mxu0 0
        %3855 = vmatmul.mubr.bf16.gmra.mxu0 %v3600
        %v3856 = vpop.f32.mrf.mxu0
        %v3857 = vadd.f32 %v3645, %v3856
        %v3858 = vpop.f32.mrf.mxu0
        %v3859 = vadd.f32 %v3649, %v3858
        %v3860 = vpop.f32.mrf.mxu0
        %v3861 = vadd.f32 %v3645, %v3860
        %v3862 = vpop.f32.mrf.mxu0
        %v3863 = vadd.f32 %v3649, %v3862
        %3864 = vmatprep.mubr.bf16.mxu0 0
        %3865 = vmatmul.mubr.bf16.gmra.mxu0 %v3601
        %v3866 = vpop.f32.mrf.mxu0
        %v3867 = vadd.f32 %v3645, %v3866
        %v3868 = vpop.f32.mrf.mxu0
        %v3869 = vadd.f32 %v3649, %v3868
        %v3870 = vpop.f32.mrf.mxu0
        %v3871 = vadd.f32 %v3645, %v3870
        %v3872 = vpop.f32.mrf.mxu0
        %v3873 = vadd.f32 %v3649, %v3872
        %3874 = vmatprep.mubr.bf16.mxu0 0
        %3875 = vmatmul.mubr.bf16.gmra.mxu0 %v3602
        %v3876 = vpop.f32.mrf.mxu0
        %v3877 = vadd.f32 %v3645, %v3876
        %v3878 = vpop.f32.mrf.mxu0
        %v3879 = vadd.f32 %v3649, %v3878
        %v3880 = vpop.f32.mrf.mxu0
        %v3881 = vadd.f32 %v3645, %v3880
        %v3882 = vpop.f32.mrf.mxu0
        %v3883 = vadd.f32 %v3649, %v3882
        %3884 = vmatprep.mubr.bf16.mxu0 0
        %3885 = vmatmul.mubr.bf16.gmra.mxu0 %v3603
        %v3886 = vpop.f32.mrf.mxu0
        %v3887 = vadd.f32 %v3645, %v3886
        %v3888 = vpop.f32.mrf.mxu0
        %v3889 = vadd.f32 %v3649, %v3888
        %v3890 = vpop.f32.mrf.mxu0
        %v3891 = vadd.f32 %v3645, %v3890
        %v3892 = vpop.f32.mrf.mxu0
        %v3893 = vadd.f32 %v3649, %v3892
        %3894 = vmatprep.mubr.bf16.mxu0 0
        %3895 = vmatmul.mubr.bf16.gmra.mxu0 %v3604
        %v3896 = vpop.f32.mrf.mxu0
        %v3897 = vadd.f32 %v3645, %v3896
        %v3898 = vpop.f32.mrf.mxu0
        %v3899 = vadd.f32 %v3649, %v3898
        %v3900 = vpop.f32.mrf.mxu0
        %v3901 = vadd.f32 %v3645, %v3900
        %v3902 = vpop.f32.mrf.mxu0
        %v3903 = vadd.f32 %v3649, %v3902
        %3904 = vmatprep.mubr.bf16.mxu0 0
        %3905 = vmatmul.mubr.bf16.gmra.mxu0 %v3605
        %v3906 = vpop.f32.mrf.mxu0
        %v3907 = vadd.f32 %v3645, %v3906
        %v3908 = vpop.f32.mrf.mxu0
        %v3909 = vadd.f32 %v3649, %v3908
        %v3910 = vpop.f32.mrf.mxu0
        %v3911 = vadd.f32 %v3645, %v3910
        %v3912 = vpop.f32.mrf.mxu0
        %v3913 = vadd.f32 %v3649, %v3912
        %3914 = vmatprep.mubr.bf16.mxu0 0
        %3915 = vmatmul.mubr.bf16.gmra.mxu0 %v3606
        %v3916 = vpop.f32.mrf.mxu0
        %v3917 = vadd.f32 %v3645, %v3916
        %v3918 = vpop.f32.mrf.mxu0
        %v3919 = vadd.f32 %v3649, %v3918
        %v3920 = vpop.f32.mrf.mxu0
        %v3921 = vadd.f32 %v3645, %v3920
        %v3922 = vpop.f32.mrf.mxu0
        %v3923 = vadd.f32 %v3649, %v3922
        %3924 = vmatprep.mubr.bf16.mxu0 0
        %3925 = vmatmul.mubr.bf16.gmra.mxu0 %v3607
        %v3926 = vpop.f32.mrf.mxu0
        %v3927 = vadd.f32 %v3645, %v3926
        %v3928 = vpop.f32.mrf.mxu0
        %v3929 = vadd.f32 %v3649, %v3928
        %v3930 = vpop.f32.mrf.mxu0
        %v3931 = vadd.f32 %v3645, %v3930
        %v3932 = vpop.f32.mrf.mxu0
        %v3933 = vadd.f32 %v3649, %v3932
        %3934 = vdwg.mxu0
        %3935 = vmatprep.subr.bf16.mxu0 %v3789
        %3936 = vmatpush1.bf16.msra.mxu0 %v3788
        %3937 = vmatprep.subr.bf16.mxu0 %v3785
        %3938 = vmatpush1.bf16.msra.mxu0 %v3784
        %3939 = vmatprep.subr.bf16.mxu0 %v3781
        %3940 = vmatpush1.bf16.msra.mxu0 %v3780
        %3941 = vmatprep.subr.bf16.mxu0 %v3777
        %3942 = vmatpush1.bf16.msra.mxu0 %v3776
        %3943 = vmatprep.subr.bf16.mxu0 %v3773
        %3944 = vmatpush1.bf16.msra.mxu0 %v3772
        %3945 = vmatprep.subr.bf16.mxu0 %v3769
        %3946 = vmatpush1.bf16.msra.mxu0 %v3768
        %3947 = vmatprep.subr.bf16.mxu0 %v3765
        %3948 = vmatpush1.bf16.msra.mxu0 %v3764
        %3949 = vmatprep.subr.bf16.mxu0 %v3761
        %3950 = vmatpush1.bf16.msra.mxu0 %v3760
        %3951 = vmatprep.subr.bf16.mxu0 0
        %3952 = vmatpush2.bf16.msra.mxu0 0
        %3953 = vmatprep.subr.bf16.mxu0 0
        %3954 = vmatpush2.bf16.msra.mxu0 0
        %3955 = vmatprep.subr.bf16.mxu0 0
        %3956 = vmatpush2.bf16.msra.mxu0 0
        %3957 = vmatprep.subr.bf16.mxu0 0
        %3958 = vmatpush2.bf16.msra.mxu0 0
        %3959 = vmatprep.subr.bf16.mxu0 0
        %3960 = vmatpush2.bf16.msra.mxu0 0
        %3961 = vmatprep.subr.bf16.mxu0 0
        %3962 = vmatpush2.bf16.msra.mxu0 0
        %3963 = vmatprep.subr.bf16.mxu0 0
        %3964 = vmatpush2.bf16.msra.mxu0 0
        %3965 = vmatprep.subr.bf16.mxu0 0
        %3966 = vmatpush2.bf16.msra.mxu0 0
        %3967 = vmatprep.mubr.bf16.mxu0 0
        %3968 = vmatmul.mubr.bf16.gmra.mxu0 %v3600
        %v3969 = vpop.f32.mrf.mxu0
        %v3970 = vadd.f32 %v3653, %v3969
        %v3971 = vpop.f32.mrf.mxu0
        %v3972 = vadd.f32 %v3657, %v3971
        %v3973 = vpop.f32.mrf.mxu0
        %v3974 = vadd.f32 %v3653, %v3973
        %v3975 = vpop.f32.mrf.mxu0
        %v3976 = vadd.f32 %v3657, %v3975
        %3977 = vmatprep.mubr.bf16.mxu0 0
        %3978 = vmatmul.mubr.bf16.gmra.mxu0 %v3601
        %v3979 = vpop.f32.mrf.mxu0
        %v3980 = vadd.f32 %v3653, %v3979
        %v3981 = vpop.f32.mrf.mxu0
        %v3982 = vadd.f32 %v3657, %v3981
        %v3983 = vpop.f32.mrf.mxu0
        %v3984 = vadd.f32 %v3653, %v3983
        %v3985 = vpop.f32.mrf.mxu0
        %v3986 = vadd.f32 %v3657, %v3985
        %3987 = vmatprep.mubr.bf16.mxu0 0
        %3988 = vmatmul.mubr.bf16.gmra.mxu0 %v3602
        %v3989 = vpop.f32.mrf.mxu0
        %v3990 = vadd.f32 %v3653, %v3989
        %v3991 = vpop.f32.mrf.mxu0
        %v3992 = vadd.f32 %v3657, %v3991
        %v3993 = vpop.f32.mrf.mxu0
        %v3994 = vadd.f32 %v3653, %v3993
        %v3995 = vpop.f32.mrf.mxu0
        %v3996 = vadd.f32 %v3657, %v3995
        %3997 = vmatprep.mubr.bf16.mxu0 0
        %3998 = vmatmul.mubr.bf16.gmra.mxu0 %v3603
        %v3999 = vpop.f32.mrf.mxu0
        %v4000 = vadd.f32 %v3653, %v3999
        %v4001 = vpop.f32.mrf.mxu0
        %v4002 = vadd.f32 %v3657, %v4001
        %v4003 = vpop.f32.mrf.mxu0
        %v4004 = vadd.f32 %v3653, %v4003
        %v4005 = vpop.f32.mrf.mxu0
        %v4006 = vadd.f32 %v3657, %v4005
        %4007 = vmatprep.mubr.bf16.mxu0 0
        %4008 = vmatmul.mubr.bf16.gmra.mxu0 %v3604
        %v4009 = vpop.f32.mrf.mxu0
        %v4010 = vadd.f32 %v3653, %v4009
        %v4011 = vpop.f32.mrf.mxu0
        %v4012 = vadd.f32 %v3657, %v4011
        %v4013 = vpop.f32.mrf.mxu0
        %v4014 = vadd.f32 %v3653, %v4013
        %v4015 = vpop.f32.mrf.mxu0
        %v4016 = vadd.f32 %v3657, %v4015
        %4017 = vmatprep.mubr.bf16.mxu0 0
        %4018 = vmatmul.mubr.bf16.gmra.mxu0 %v3605
        %v4019 = vpop.f32.mrf.mxu0
        %v4020 = vadd.f32 %v3653, %v4019
        %v4021 = vpop.f32.mrf.mxu0
        %v4022 = vadd.f32 %v3657, %v4021
        %v4023 = vpop.f32.mrf.mxu0
        %v4024 = vadd.f32 %v3653, %v4023
        %v4025 = vpop.f32.mrf.mxu0
        %v4026 = vadd.f32 %v3657, %v4025
        %4027 = vmatprep.mubr.bf16.mxu0 0
        %4028 = vmatmul.mubr.bf16.gmra.mxu0 %v3606
        %v4029 = vpop.f32.mrf.mxu0
        %v4030 = vadd.f32 %v3653, %v4029
        %v4031 = vpop.f32.mrf.mxu0
        %v4032 = vadd.f32 %v3657, %v4031
        %v4033 = vpop.f32.mrf.mxu0
        %v4034 = vadd.f32 %v3653, %v4033
        %v4035 = vpop.f32.mrf.mxu0
        %v4036 = vadd.f32 %v3657, %v4035
        %4037 = vmatprep.mubr.bf16.mxu0 0
        %4038 = vmatmul.mubr.bf16.gmra.mxu0 %v3607
        %v4039 = vpop.f32.mrf.mxu0
        %v4040 = vadd.f32 %v3653, %v4039
        %v4041 = vpop.f32.mrf.mxu0
        %v4042 = vadd.f32 %v3657, %v4041
        %v4043 = vpop.f32.mrf.mxu0
        %v4044 = vadd.f32 %v3653, %v4043
        %v4045 = vpop.f32.mrf.mxu0
        %v4046 = vadd.f32 %v3657, %v4045
        %4047 = vdwg.mxu0
        %v4048 = vunpack.c.l.bf16 %v1401
        %v4049 = vunpack.c.l.bf16 %v1402
        %v4050 = vunpack.c.l.bf16 %v1403
        %v4051 = vunpack.c.l.bf16 %v1404
        %v4052 = vunpack.c.h.bf16 %v1401
        %v4053 = vunpack.c.h.bf16 %v1402
        %v4054 = vunpack.c.h.bf16 %v1403
        %v4055 = vunpack.c.h.bf16 %v1404
        %v4056 = vunpack.c.l.bf16 %v1405
        %v4057 = vunpack.c.l.bf16 %v1406
        %v4058 = vunpack.c.l.bf16 %v1407
        %v4059 = vunpack.c.l.bf16 %v1408
        %v4060 = vunpack.c.h.bf16 %v1405
        %v4061 = vunpack.c.h.bf16 %v1406
        %v4062 = vunpack.c.h.bf16 %v1407
        %v4063 = vunpack.c.h.bf16 %v1408
        %v4064 = vunpack.c.l.bf16 %v1409
        %v4065 = vunpack.c.l.bf16 %v1410
        %v4066 = vunpack.c.l.bf16 %v1411
        %v4067 = vunpack.c.l.bf16 %v1412
        %v4068 = vunpack.c.h.bf16 %v1409
        %v4069 = vunpack.c.h.bf16 %v1410
        %v4070 = vunpack.c.h.bf16 %v1411
        %v4071 = vunpack.c.h.bf16 %v1412
        %v4072 = vunpack.c.l.bf16 %v1413
        %v4073 = vunpack.c.l.bf16 %v1414
        %v4074 = vunpack.c.l.bf16 %v1415
        %v4075 = vunpack.c.l.bf16 %v1416
        %v4076 = vunpack.c.h.bf16 %v1413
        %v4077 = vunpack.c.h.bf16 %v1414
        %v4078 = vunpack.c.h.bf16 %v1415
        %v4079 = vunpack.c.h.bf16 %v1416
        %v4080 = vunpack.c.l.bf16 %v1417
        %v4081 = vunpack.c.l.bf16 %v1418
        %v4082 = vunpack.c.l.bf16 %v1419
        %v4083 = vunpack.c.l.bf16 %v1420
        %v4084 = vunpack.c.h.bf16 %v1417
        %v4085 = vunpack.c.h.bf16 %v1418
        %v4086 = vunpack.c.h.bf16 %v1419
        %v4087 = vunpack.c.h.bf16 %v1420
        %v4088 = vunpack.c.l.bf16 %v1421
        %v4089 = vunpack.c.l.bf16 %v1422
        %v4090 = vunpack.c.l.bf16 %v1423
        %v4091 = vunpack.c.l.bf16 %v1424
        %v4092 = vunpack.c.h.bf16 %v1421
        %v4093 = vunpack.c.h.bf16 %v1422
        %v4094 = vunpack.c.h.bf16 %v1423
        %v4095 = vunpack.c.h.bf16 %v1424
        %v4096 = vunpack.c.l.bf16 %v1425
        %v4097 = vunpack.c.l.bf16 %v1426
        %v4098 = vunpack.c.l.bf16 %v1427
        %v4099 = vunpack.c.l.bf16 %v1428
        %v4100 = vunpack.c.h.bf16 %v1425
        %v4101 = vunpack.c.h.bf16 %v1426
        %v4102 = vunpack.c.h.bf16 %v1427
        %v4103 = vunpack.c.h.bf16 %v1428
        %v4104 = vunpack.c.l.bf16 %v1429
        %v4105 = vunpack.c.l.bf16 %v1430
        %v4106 = vunpack.c.l.bf16 %v1431
        %v4107 = vunpack.c.l.bf16 %v1432
        %v4108 = vunpack.c.h.bf16 %v1429
        %v4109 = vunpack.c.h.bf16 %v1430
        %v4110 = vunpack.c.h.bf16 %v1431
        %v4111 = vunpack.c.h.bf16 %v1432
        %v4112 = vadd.f32 %v3857, %v4048
        %v4113 = vadd.f32 %v3859, %v4049
        %v4114 = vadd.f32 %v3970, %v4050
        %v4115 = vadd.f32 %v3972, %v4051
        %v4116 = vadd.f32 %v3861, %v4052
        %v4117 = vadd.f32 %v3863, %v4053
        %v4118 = vadd.f32 %v3974, %v4054
        %v4119 = vadd.f32 %v3976, %v4055
        %v4120 = vadd.f32 %v3867, %v4056
        %v4121 = vadd.f32 %v3869, %v4057
        %v4122 = vadd.f32 %v3980, %v4058
        %v4123 = vadd.f32 %v3982, %v4059
        %v4124 = vadd.f32 %v3871, %v4060
        %v4125 = vadd.f32 %v3873, %v4061
        %v4126 = vadd.f32 %v3984, %v4062
        %v4127 = vadd.f32 %v3986, %v4063
        %v4128 = vadd.f32 %v3877, %v4064
        %v4129 = vadd.f32 %v3879, %v4065
        %v4130 = vadd.f32 %v3990, %v4066
        %v4131 = vadd.f32 %v3992, %v4067
        %v4132 = vadd.f32 %v3881, %v4068
        %v4133 = vadd.f32 %v3883, %v4069
        %v4134 = vadd.f32 %v3994, %v4070
        %v4135 = vadd.f32 %v3996, %v4071
        %v4136 = vadd.f32 %v3887, %v4072
        %v4137 = vadd.f32 %v3889, %v4073
        %v4138 = vadd.f32 %v4000, %v4074
        %v4139 = vadd.f32 %v4002, %v4075
        %v4140 = vadd.f32 %v3891, %v4076
        %v4141 = vadd.f32 %v3893, %v4077
        %v4142 = vadd.f32 %v4004, %v4078
        %v4143 = vadd.f32 %v4006, %v4079
        %v4144 = vadd.f32 %v3897, %v4080
        %v4145 = vadd.f32 %v3899, %v4081
        %v4146 = vadd.f32 %v4010, %v4082
        %v4147 = vadd.f32 %v4012, %v4083
        %v4148 = vadd.f32 %v3901, %v4084
        %v4149 = vadd.f32 %v3903, %v4085
        %v4150 = vadd.f32 %v4014, %v4086
        %v4151 = vadd.f32 %v4016, %v4087
        %v4152 = vadd.f32 %v3907, %v4088
        %v4153 = vadd.f32 %v3909, %v4089
        %v4154 = vadd.f32 %v4020, %v4090
        %v4155 = vadd.f32 %v4022, %v4091
        %v4156 = vadd.f32 %v3911, %v4092
        %v4157 = vadd.f32 %v3913, %v4093
        %v4158 = vadd.f32 %v4024, %v4094
        %v4159 = vadd.f32 %v4026, %v4095
        %v4160 = vadd.f32 %v3917, %v4096
        %v4161 = vadd.f32 %v3919, %v4097
        %v4162 = vadd.f32 %v4030, %v4098
        %v4163 = vadd.f32 %v4032, %v4099
        %v4164 = vadd.f32 %v3921, %v4100
        %v4165 = vadd.f32 %v3923, %v4101
        %v4166 = vadd.f32 %v4034, %v4102
        %v4167 = vadd.f32 %v4036, %v4103
        %v4168 = vadd.f32 %v3927, %v4104
        %v4169 = vadd.f32 %v3929, %v4105
        %v4170 = vadd.f32 %v4040, %v4106
        %v4171 = vadd.f32 %v4042, %v4107
        %v4172 = vadd.f32 %v3931, %v4108
        %v4173 = vadd.f32 %v3933, %v4109
        %v4174 = vadd.f32 %v4044, %v4110
        %v4175 = vadd.f32 %v4046, %v4111
        %v4176 = vmax.f32 %v4112, 0.0
        %v4177 = vmax.f32 %v4113, 0.0
        %v4178 = vmax.f32 %v4114, 0.0
        %v4179 = vmax.f32 %v4115, 0.0
        %v4180 = vmax.f32 %v4116, 0.0
        %v4181 = vmax.f32 %v4117, 0.0
        %v4182 = vmax.f32 %v4118, 0.0
        %v4183 = vmax.f32 %v4119, 0.0
        %v4184 = vmax.f32 %v4120, 0.0
        %v4185 = vmax.f32 %v4121, 0.0
        %v4186 = vmax.f32 %v4122, 0.0
        %v4187 = vmax.f32 %v4123, 0.0
        %v4188 = vmax.f32 %v4124, 0.0
        %v4189 = vmax.f32 %v4125, 0.0
        %v4190 = vmax.f32 %v4126, 0.0
        %v4191 = vmax.f32 %v4127, 0.0
        %v4192 = vmax.f32 %v4128, 0.0
        %v4193 = vmax.f32 %v4129, 0.0
        %v4194 = vmax.f32 %v4130, 0.0
        %v4195 = vmax.f32 %v4131, 0.0
        %v4196 = vmax.f32 %v4132, 0.0
        %v4197 = vmax.f32 %v4133, 0.0
        %v4198 = vmax.f32 %v4134, 0.0
        %v4199 = vmax.f32 %v4135, 0.0
        %v4200 = vmax.f32 %v4136, 0.0
        %v4201 = vmax.f32 %v4137, 0.0
        %v4202 = vmax.f32 %v4138, 0.0
        %v4203 = vmax.f32 %v4139, 0.0
        %v4204 = vmax.f32 %v4140, 0.0
        %v4205 = vmax.f32 %v4141, 0.0
        %v4206 = vmax.f32 %v4142, 0.0
        %v4207 = vmax.f32 %v4143, 0.0
        %v4208 = vmax.f32 %v4144, 0.0
        %v4209 = vmax.f32 %v4145, 0.0
        %v4210 = vmax.f32 %v4146, 0.0
        %v4211 = vmax.f32 %v4147, 0.0
        %v4212 = vmax.f32 %v4148, 0.0
        %v4213 = vmax.f32 %v4149, 0.0
        %v4214 = vmax.f32 %v4150, 0.0
        %v4215 = vmax.f32 %v4151, 0.0
        %v4216 = vmax.f32 %v4152, 0.0
        %v4217 = vmax.f32 %v4153, 0.0
        %v4218 = vmax.f32 %v4154, 0.0
        %v4219 = vmax.f32 %v4155, 0.0
        %v4220 = vmax.f32 %v4156, 0.0
        %v4221 = vmax.f32 %v4157, 0.0
        %v4222 = vmax.f32 %v4158, 0.0
        %v4223 = vmax.f32 %v4159, 0.0
        %v4224 = vmax.f32 %v4160, 0.0
        %v4225 = vmax.f32 %v4161, 0.0
        %v4226 = vmax.f32 %v4162, 0.0
        %v4227 = vmax.f32 %v4163, 0.0
        %v4228 = vmax.f32 %v4164, 0.0
        %v4229 = vmax.f32 %v4165, 0.0
        %v4230 = vmax.f32 %v4166, 0.0
        %v4231 = vmax.f32 %v4167, 0.0
        %v4232 = vmax.f32 %v4168, 0.0
        %v4233 = vmax.f32 %v4169, 0.0
        %v4234 = vmax.f32 %v4170, 0.0
        %v4235 = vmax.f32 %v4171, 0.0
        %v4236 = vmax.f32 %v4172, 0.0
        %v4237 = vmax.f32 %v4173, 0.0
        %v4238 = vmax.f32 %v4174, 0.0
        %v4239 = vmax.f32 %v4175, 0.0
        %v4240 = vpack.c.bf16 %v4180, %v4176
        %v4241 = vpack.c.bf16 %v4181, %v4177
        %v4242 = vpack.c.bf16 %v4182, %v4178
        %v4243 = vpack.c.bf16 %v4183, %v4179
        %v4244 = vpack.c.bf16 %v4188, %v4184
        %v4245 = vpack.c.bf16 %v4189, %v4185
        %v4246 = vpack.c.bf16 %v4190, %v4186
        %v4247 = vpack.c.bf16 %v4191, %v4187
        %v4248 = vpack.c.bf16 %v4196, %v4192
        %v4249 = vpack.c.bf16 %v4197, %v4193
        %v4250 = vpack.c.bf16 %v4198, %v4194
        %v4251 = vpack.c.bf16 %v4199, %v4195
        %v4252 = vpack.c.bf16 %v4204, %v4200
        %v4253 = vpack.c.bf16 %v4205, %v4201
        %v4254 = vpack.c.bf16 %v4206, %v4202
        %v4255 = vpack.c.bf16 %v4207, %v4203
        %v4256 = vpack.c.bf16 %v4212, %v4208
        %v4257 = vpack.c.bf16 %v4213, %v4209
        %v4258 = vpack.c.bf16 %v4214, %v4210
        %v4259 = vpack.c.bf16 %v4215, %v4211
        %v4260 = vpack.c.bf16 %v4220, %v4216
        %v4261 = vpack.c.bf16 %v4221, %v4217
        %v4262 = vpack.c.bf16 %v4222, %v4218
        %v4263 = vpack.c.bf16 %v4223, %v4219
        %v4264 = vpack.c.bf16 %v4228, %v4224
        %v4265 = vpack.c.bf16 %v4229, %v4225
        %v4266 = vpack.c.bf16 %v4230, %v4226
        %v4267 = vpack.c.bf16 %v4231, %v4227
        %v4268 = vpack.c.bf16 %v4236, %v4232
        %v4269 = vpack.c.bf16 %v4237, %v4233
        %v4270 = vpack.c.bf16 %v4238, %v4234
        %v4271 = vpack.c.bf16 %v4239, %v4235
        %v4304 = vunpack.c.l.b16 %v4240
        %v4305 = vunpack.c.l.b16 %v4241
        %v4306 = vunpack.c.l.b16 %v4242
        %v4307 = vunpack.c.l.b16 %v4243
        %v4308 = vunpack.c.h.b16 %v4240
        %v4309 = vunpack.c.h.b16 %v4241
        %v4310 = vunpack.c.h.b16 %v4242
        %v4311 = vunpack.c.h.b16 %v4243
        %v4312 = vunpack.c.l.b16 %v4244
        %v4313 = vunpack.c.l.b16 %v4245
        %v4314 = vunpack.c.l.b16 %v4246
        %v4315 = vunpack.c.l.b16 %v4247
        %v4316 = vunpack.c.h.b16 %v4244
        %v4317 = vunpack.c.h.b16 %v4245
        %v4318 = vunpack.c.h.b16 %v4246
        %v4319 = vunpack.c.h.b16 %v4247
        %v4320 = vunpack.c.l.b16 %v4248
        %v4321 = vunpack.c.l.b16 %v4249
        %v4322 = vunpack.c.l.b16 %v4250
        %v4323 = vunpack.c.l.b16 %v4251
        %v4324 = vunpack.c.h.b16 %v4248
        %v4325 = vunpack.c.h.b16 %v4249
        %v4326 = vunpack.c.h.b16 %v4250
        %v4327 = vunpack.c.h.b16 %v4251
        %v4328 = vunpack.c.l.b16 %v4252
        %v4329 = vunpack.c.l.b16 %v4253
        %v4330 = vunpack.c.l.b16 %v4254
        %v4331 = vunpack.c.l.b16 %v4255
        %v4332 = vunpack.c.h.b16 %v4252
        %v4333 = vunpack.c.h.b16 %v4253
        %v4334 = vunpack.c.h.b16 %v4254
        %v4335 = vunpack.c.h.b16 %v4255
        %v4336 = vunpack.c.l.b16 %v4256
        %v4337 = vunpack.c.l.b16 %v4257
        %v4338 = vunpack.c.l.b16 %v4258
        %v4339 = vunpack.c.l.b16 %v4259
        %v4340 = vunpack.c.h.b16 %v4256
        %v4341 = vunpack.c.h.b16 %v4257
        %v4342 = vunpack.c.h.b16 %v4258
        %v4343 = vunpack.c.h.b16 %v4259
        %v4344 = vunpack.c.l.b16 %v4260
        %v4345 = vunpack.c.l.b16 %v4261
        %v4346 = vunpack.c.l.b16 %v4262
        %v4347 = vunpack.c.l.b16 %v4263
        %v4348 = vunpack.c.h.b16 %v4260
        %v4349 = vunpack.c.h.b16 %v4261
        %v4350 = vunpack.c.h.b16 %v4262
        %v4351 = vunpack.c.h.b16 %v4263
        %v4352 = vunpack.c.l.b16 %v4264
        %v4353 = vunpack.c.l.b16 %v4265
        %v4354 = vunpack.c.l.b16 %v4266
        %v4355 = vunpack.c.l.b16 %v4267
        %v4356 = vunpack.c.h.b16 %v4264
        %v4357 = vunpack.c.h.b16 %v4265
        %v4358 = vunpack.c.h.b16 %v4266
        %v4359 = vunpack.c.h.b16 %v4267
        %v4360 = vunpack.c.l.b16 %v4268
        %v4361 = vunpack.c.l.b16 %v4269
        %v4362 = vunpack.c.l.b16 %v4270
        %v4363 = vunpack.c.l.b16 %v4271
        %v4364 = vunpack.c.h.b16 %v4268
        %v4365 = vunpack.c.h.b16 %v4269
        %v4366 = vunpack.c.h.b16 %v4270
        %v4367 = vunpack.c.h.b16 %v4271
        %v4368 = vpack.c.b16 %v4305, %v4304
        %v4369 = vpack.c.b16 %v4307, %v4306
        %v4370 = vpack.c.b16 %v4309, %v4308
        %v4371 = vpack.c.b16 %v4311, %v4310
        %v4372 = vpack.c.b16 %v4313, %v4312
        %v4373 = vpack.c.b16 %v4315, %v4314
        %v4374 = vpack.c.b16 %v4317, %v4316
        %v4375 = vpack.c.b16 %v4319, %v4318
        %v4376 = vpack.c.b16 %v4321, %v4320
        %v4377 = vpack.c.b16 %v4323, %v4322
        %v4378 = vpack.c.b16 %v4325, %v4324
        %v4379 = vpack.c.b16 %v4327, %v4326
        %v4380 = vpack.c.b16 %v4329, %v4328
        %v4381 = vpack.c.b16 %v4331, %v4330
        %v4382 = vpack.c.b16 %v4333, %v4332
        %v4383 = vpack.c.b16 %v4335, %v4334
        %v4384 = vpack.c.b16 %v4337, %v4336
        %v4385 = vpack.c.b16 %v4339, %v4338
        %v4386 = vpack.c.b16 %v4341, %v4340
        %v4387 = vpack.c.b16 %v4343, %v4342
        %v4388 = vpack.c.b16 %v4345, %v4344
        %v4389 = vpack.c.b16 %v4347, %v4346
        %v4390 = vpack.c.b16 %v4349, %v4348
        %v4391 = vpack.c.b16 %v4351, %v4350
        %v4392 = vpack.c.b16 %v4353, %v4352
        %v4393 = vpack.c.b16 %v4355, %v4354
        %v4394 = vpack.c.b16 %v4357, %v4356
        %v4395 = vpack.c.b16 %v4359, %v4358
        %v4396 = vpack.c.b16 %v4361, %v4360
        %v4397 = vpack.c.b16 %v4363, %v4362
        %v4398 = vpack.c.b16 %v4365, %v4364
        %v4399 = vpack.c.b16 %v4367, %v4366
        %4432 = vst [vmem:[%s380] sm:$0xff] %v4368
        %4433 = vst [vmem:[%s380 + $0x8] sm:$0xff] %v4369
        %4434 = vst [vmem:[%s380 + $0x10] sm:$0xff] %v4370
        %4435 = vst [vmem:[%s380 + $0x18] sm:$0xff] %v4371
        %4436 = vst [vmem:[%s380 + $0x20] sm:$0xff] %v4372
        %4437 = vst [vmem:[%s380 + $0x28] sm:$0xff] %v4373
        %4438 = vst [vmem:[%s380 + $0x30] sm:$0xff] %v4374
        %4439 = vst [vmem:[%s380 + $0x38] sm:$0xff] %v4375
        %4440 = vst [vmem:[%s380 + $0x40] sm:$0xff] %v4376
        %4441 = vst [vmem:[%s380 + $0x48] sm:$0xff] %v4377
        %4442 = vst [vmem:[%s380 + $0x50] sm:$0xff] %v4378
        %4443 = vst [vmem:[%s380 + $0x58] sm:$0xff] %v4379
        %4444 = vst [vmem:[%s380 + $0x60] sm:$0xff] %v4380
        %4445 = vst [vmem:[%s380 + $0x68] sm:$0xff] %v4381
        %4446 = vst [vmem:[%s380 + $0x70] sm:$0xff] %v4382
        %4447 = vst [vmem:[%s380 + $0x78] sm:$0xff] %v4383
        %4448 = vst [vmem:[%s380 + $0x80] sm:$0xff] %v4384
        %4449 = vst [vmem:[%s380 + $0x88] sm:$0xff] %v4385
        %4450 = vst [vmem:[%s380 + $0x90] sm:$0xff] %v4386
        %4451 = vst [vmem:[%s380 + $0x98] sm:$0xff] %v4387
        %4452 = vst [vmem:[%s380 + $0xa0] sm:$0xff] %v4388
        %4453 = vst [vmem:[%s380 + $0xa8] sm:$0xff] %v4389
        %4454 = vst [vmem:[%s380 + $0xb0] sm:$0xff] %v4390
        %4455 = vst [vmem:[%s380 + $0xb8] sm:$0xff] %v4391
        %4456 = vst [vmem:[%s380 + $0xc0] sm:$0xff] %v4392
        %4457 = vst [vmem:[%s380 + $0xc8] sm:$0xff] %v4393
        %4458 = vst [vmem:[%s380 + $0xd0] sm:$0xff] %v4394
        %4459 = vst [vmem:[%s380 + $0xd8] sm:$0xff] %v4395
        %4460 = vst [vmem:[%s380 + $0xe0] sm:$0xff] %v4396
        %4461 = vst [vmem:[%s380 + $0xe8] sm:$0xff] %v4397
        %4462 = vst [vmem:[%s380 + $0xf0] sm:$0xff] %v4398
        %4463 = vst [vmem:[%s380 + $0xf8] sm:$0xff] %v4399
        %s4464 = sand.u32 %s208, 1
        %s4465 = scalar_lea.sflag [#allocation5], %s4464
        %s4466 = sand.u32 %s208, 1
        %s4467 = smul.addr %s4466, 256
        %s4468 = scalar_lea.vmem [#allocation12], %s4467
        // Predicated region
        $region73: #{tpu_custom_call.1} parent=51 // pred_check
          %p4469 = pneg %p218
        $region74: #{tpu_custom_call.1} parent=51 // pred_check_branch
          %4471 = sbr.rel (%p4469) target = $region76
        $region75: #{tpu_custom_call.1} parent=51 // pred_region
          %s4472 = smul.u32 16, %s27
          %s4474 = ssub.s32 4096, 4096
          %4475 = vsyncadd %s4465, %s4474
          %s4476 = smul.addr %s4472, 4
          %s4477 = smul.addr %s4476, 64
          %s4478 = scalar_lea.hbm %s8, %s4477
          %s4479 = sshll.u32 %s4468, 4
          %s4480 = int_to_ptr.vmem [resolvable:$true] %s4479
          %4485 = dma.vmem_to_hbm [thread:$0]  %s4480, 4096, %s4478, %s4465, 256, 256, 16
        $region76: #{tpu_custom_call.1} parent=51 // pred_fallthru
          _
      $region52: #{tpu_custom_call.1} parent=5 // pred_fallthru
        _
      %p4486 = scmp.le.s32.totalorder 2, %s22
      // Predicated region
      $region77: #{tpu_custom_call.1} parent=5 // pred_check
        %p4487 = pneg %p4486
      $region78: #{tpu_custom_call.1} parent=5 // pred_check_branch
        %4489 = sbr.rel (%p4487) target = $region80
      $region79: #{tpu_custom_call.1} parent=5 // pred_region
        %s4490 = ssub.s32 %s22, 2
        // Predicated region
        $region81: #{tpu_custom_call.1} parent=79 // pred_check
          %p4491 = pneg %p224
        $region82: #{tpu_custom_call.1} parent=79 // pred_check_branch
          %4493 = sbr.rel (%p4491) target = $region84
        $region83: #{tpu_custom_call.1} parent=79 // pred_region
          %s4494 = sand.u32 %s209, 1
          %s4495 = scalar_lea.sflag [#allocation5], %s4494
          %s4496 = sand.u32 %s209, 1
          %s4497 = smul.addr %s4496, 256
          %s4498 = scalar_lea.vmem [#allocation12], %s4497
          %4499 = dma.done %s4495, 4096
        $region84: #{tpu_custom_call.1} parent=79 // pred_fallthru
          _
      $region80: #{tpu_custom_call.1} parent=5 // pred_fallthru
        _
    $region6: #{tpu_custom_call.1} parent=1 // loop_footer
      %s26 = sadd.s32 1, %s22
    $region7: #{tpu_custom_call.1} parent=1 // loop_footer_branch
      %21 = sbr.rel target = $region3
    $region8: #{tpu_custom_call.1} parent=1 // loop_exit
      _
    %4500 = vsyncpa [#allocation4], 1
    %s4501 = scalar_lea.sflag [#allocation4], 1
    %4502 = vsyncpa %s4501, 1
    %4503 = vsyncpa [#allocation7], 1
    %4504 = vsyncpa [#allocation10], 1
    %4505 = vsyncpa [#allocation5], 1
    %s4506 = scalar_lea.sflag [#allocation5], 1
    %4507 = vsyncpa %s4506, 1

</llo_original>
